<compile_context>
chip_gen: v5e
topology: v5e:2x2
jax: 0.10.0
libtpu: 0.0.40
codegen_flags: <defaults>
</compile_context>

<pallas_src>
import functools
import math

import jax
import jax.numpy as jnp
from jax import lax
from jax.experimental import pallas as pl
from jax.experimental.pallas import tpu as pltpu

LANE = 128
SUB = 8


def _round_up(x, m):
    return ((x + m - 1) // m) * m


def _vmem_bytes(shape, dtype):
    """Rough VMEM footprint of a buffer with (sublane, lane) tiling padding."""
    itemsize = jnp.dtype(dtype).itemsize
    if len(shape) < 2:
        n = 1
        for d in shape:
            n *= d
        return _round_up(max(n, 1) * itemsize, 512)
    lead = 1
    for d in shape[:-2]:
        lead *= d
    sub_tile = 8 * max(1, 4 // itemsize)          # 8 for f32, 16 for bf16
    return (lead * _round_up(shape[-2], sub_tile)
            * _round_up(shape[-1], LANE) * itemsize)


def _baseconv_kernel(xm_ref, xh_ref, w_ref, scale_ref, bias_ref, o_ref,
                     band_ref, *, ksize, stride, wp, qt, main_rows):
    """One grid step = one (image, Cout tile, output-row band).

    xm_ref:    (1, main_rows, Cin) bf16   main input band (flat q = h*Wp + w)
    xh_ref:    (1, halo_rows, Cin) bf16   K-image-row halo below the main band
    w_ref:     (K*K, Cin, TC)      bf16   per-tap weights
    scale_ref: (1, TC) f32                folded BN scale gamma / sqrt(var+eps)
    bias_ref:  (1, TC) f32                folded BN bias  beta - mean * scale
    o_ref:     (1, qt, TC)                output band, flat q = oh*Wp + ow
    band_ref:  (main_rows + halo_rows, Cin) bf16 scratch (contiguous band)

    There is no cross-step gating or scratch carry-over, so every grid axis is
    safe to run in parallel (v7x megacore).
    """
    # (1) Stitch main band + halo into one contiguous flat band.  This is the
    #     only data-movement overhead (~1/(K*K) of the slab reads below); no
    #     memsets anywhere — zero padding was done once in the wrapper.
    band_ref[:main_rows, :] = xm_ref[0]
    band_ref[main_rows:, :] = xh_ref[0]

    # (2) K*K shifted-slab dots accumulated in f32 on the MXU.  Output flat
    #     row l reads input flat row stride*l + (kh*Wp + kw).
    acc = None
    for t in range(ksize * ksize):
        kh, kw = divmod(t, ksize)
        off = kh * wp + kw
        if stride == 1:
            slab = band_ref[pl.ds(off, qt), :]
        else:
            slab = band_ref[pl.ds(off, qt, stride=stride), :]
        part = jnp.dot(slab, w_ref[t], preferred_element_type=jnp.float32)
        acc = part if acc is None else acc + part

    # (3) Folded-BN + SiLU epilogue in f32, lane-dense store (TC % 128 == 0).
    y = acc * scale_ref[...] + bias_ref[...]
    y = y * jax.nn.sigmoid(y)
    o_ref[0] = y.astype(o_ref.dtype)


def base_conv_forward(x_nchw, weight, bn_gamma, bn_beta, bn_mean, bn_var, *,
                      ksize, stride, groups=1, conv_bias=None, eps=1e-5,
                      target_rows=1024, out_dtype=jnp.float32):
    """Conv2d(k, stride, pad=(k-1)//2) -> BatchNorm2d(eval) -> SiLU.

    x_nchw: (N, Cin, H, W), weight: (Cout, Cin, K, K) (PyTorch conventions).
    Returns (N, Cout, Hout, Wout) in `out_dtype` (f32 by default).
    """
    if groups != 1:
        # TODO(synk): grouped convolution is not implemented in this kernel.
        raise NotImplementedError("groups > 1 is not supported")

    n, cin, h, w = x_nchw.shape
    cout = weight.shape[0]
    k, s = int(ksize), int(stride)
    pad = (k - 1) // 2
    h_out = (h + 2 * pad - k) // s + 1
    w_out = (w + 2 * pad - k) // s + 1

    # ---- tiling ------------------------------------------------------------
    wp = _round_up(w + 2 * pad, SUB)       # flat row stride (padded width)
    h_halo = k                              # halo image rows below each band
    mult = h_halo // math.gcd(h_halo, s)    # th multiple so halo blocks align
    th = max(1, min(h_out, max(1, target_rows // wp)))
    th = _round_up(th, mult)                # output image rows per band
    n_rt = -(-h_out // th)                  # number of row bands
    qt = th * wp                            # flat output rows per band
    main_rows = s * qt                      # flat input rows of the main block
    halo_rows = h_halo * wp                 # flat input rows of the halo block
    ratio = main_rows // halo_rows          # integer by construction

    cout_p = _round_up(cout, LANE)
    tc = cout_p                             # Cout tile: keep weights resident
    while tc % 256 == 0 and k * k * cin * tc * 2 > 8 * 2 ** 20:
        tc //= 2
    n_ct = cout_p // tc

    # ---- input: NCHW -> zero-padded, flattened NHWC bf16 (one fused pass) ---
    # TODO(synk): if the surrounding model is channels-last, the transpose can
    # be dropped entirely (layout plumbing only).
    hp_pad = (n_rt + 1) * s * th            # padded rows incl. bottom slack
    x_nhwc = jnp.transpose(x_nchw, (0, 2, 3, 1)).astype(jnp.bfloat16)
    x_p = jnp.pad(x_nhwc, ((0, 0),
                           (pad, hp_pad - h - pad),
                           (pad, wp - w - pad),
                           (0, 0)))
    x_flat = x_p.reshape(n, hp_pad * wp, cin)

    # ---- weights: (Cout,Cin,K,K) -> (K*K, Cin, Cout_p) bf16 -----------------
    # TODO(synk): for Cin=3/4 stems, packing the K*K taps along the lane axis
    # (contraction round_up(K*K*Cin,128)) would cut MXU pushes ~K*K-fold.
    w_t = jnp.transpose(weight, (2, 3, 1, 0)).reshape(k * k, cin, cout)
    w_t = jnp.pad(w_t.astype(jnp.float32),
                  ((0, 0), (0, 0), (0, cout_p - cout))).astype(jnp.bfloat16)

    # ---- folded BatchNorm (eval mode running stats) + optional conv bias ----
    scale = (bn_gamma / jnp.sqrt(bn_var + eps)).astype(jnp.float32)
    bias = (bn_beta - bn_mean * scale).astype(jnp.float32)
    if conv_bias is not None:
        bias = bias + scale * conv_bias.astype(jnp.float32)
    scale_p = jnp.pad(scale, (0, cout_p - cout)).reshape(1, cout_p)
    bias_p = jnp.pad(bias, (0, cout_p - cout)).reshape(1, cout_p)

    kernel = functools.partial(_baseconv_kernel, ksize=k, stride=s, wp=wp,
                               qt=qt, main_rows=main_rows)

    # ---- grid order / semantics --------------------------------------------
    if n_ct == 1:
        # Weights fully resident -> row bands innermost AND parallel (megacore
        # splits rows even at batch 1 on v7x); no weight re-DMA ever.
        grid = (n, n_rt, n_ct)
        semantics = ("parallel", "parallel", "arbitrary")
        im_main = lambda b, r, j: (b, r, 0)
        im_halo = lambda b, r, j: (b, (r + 1) * ratio, 0)
        im_w = lambda b, r, j: (0, 0, j)
        im_sb = lambda b, r, j: (0, j)
        im_out = lambda b, r, j: (b, r, j)
    else:
        # Weights tiled over Cout -> keep the Cout tile OUTSIDE the row loop so
        # the weight block is only re-fetched when the Cout tile changes.
        grid = (n, n_ct, n_rt)
        semantics = ("parallel", "arbitrary", "arbitrary")
        im_main = lambda b, j, r: (b, r, 0)
        im_halo = lambda b, j, r: (b, (r + 1) * ratio, 0)
        im_w = lambda b, j, r: (0, 0, j)
        im_sb = lambda b, j, r: (0, j)
        im_out = lambda b, j, r: (b, r, j)

    # ---- VMEM budget: derived from actual buffers, generation-aware cap -----
    need = (2 * _vmem_bytes((1, main_rows, cin), jnp.bfloat16)
            + 2 * _vmem_bytes((1, halo_rows, cin), jnp.bfloat16)
            + 2 * _vmem_bytes((k * k, cin, tc), jnp.bfloat16)
            + 4 * _vmem_bytes((1, tc), jnp.float32)
            + 2 * _vmem_bytes((1, qt, tc), out_dtype)
            + _vmem_bytes((main_rows + halo_rows, cin), jnp.bfloat16)
            + 3 * _vmem_bytes((qt, tc), jnp.float32))      # accumulator temps
    try:
        phys = getattr(pltpu.get_tpu_info(), "vmem_capacity_bytes", None)
    except Exception:
        phys = None
    cap = (phys * 3 // 4) if phys else 48 * 2 ** 20
    vmem_limit = int(max(min(need + (4 << 20), cap), 16 << 20))

    flops = 2 * n * h_out * w_out * k * k * cin * cout
    bytes_accessed = (x_flat.size * 2 + w_t.size * 2
                      + n * n_rt * qt * cout_p * jnp.dtype(out_dtype).itemsize
                      + 2 * cout_p * 4)

    out = pl.pallas_call(
        kernel,
        out_shape=jax.ShapeDtypeStruct((n, n_rt * qt, cout_p), out_dtype),
        grid_spec=pltpu.PrefetchScalarGridSpec(
            num_scalar_prefetch=0,
            grid=grid,
            in_specs=[
                pl.BlockSpec((1, main_rows, cin), im_main),
                pl.BlockSpec((1, halo_rows, cin), im_halo),
                pl.BlockSpec((k * k, cin, tc), im_w),
                pl.BlockSpec((1, tc), im_sb),
                pl.BlockSpec((1, tc), im_sb),
            ],
            out_specs=pl.BlockSpec((1, qt, tc), im_out),
            scratch_shapes=[
                pltpu.VMEM((main_rows + halo_rows, cin), jnp.bfloat16),
            ],
        ),
        compiler_params=pltpu.CompilerParams(
            dimension_semantics=semantics,
            vmem_limit_bytes=vmem_limit),
        cost_estimate=pl.CostEstimate(
            flops=flops,
            transcendentals=n * h_out * w_out * cout,
            bytes_accessed=bytes_accessed),
    )(x_flat, x_flat, w_t, scale_p, bias_p)

    # Drop garbage columns (ow in [Wout, Wp)) / rows / padded channels; back
    # to NCHW.  The reshape is layout-compatible (free in XLA).
    out = out.reshape(n, n_rt * th, wp, cout_p)[:, :h_out, :w_out, :cout]
    return jnp.transpose(out, (0, 3, 1, 2))


def _reference(x_nchw, weight, bn_gamma, bn_beta, bn_mean, bn_var,
               *, ksize, stride, eps=1e-5):
    pad = (ksize - 1) // 2
    y = lax.conv_general_dilated(
        x_nchw.astype(jnp.float32), weight.astype(jnp.float32),
        window_strides=(stride, stride),
        padding=((pad, pad), (pad, pad)),
        dimension_numbers=("NCHW", "OIHW", "NCHW"),
        preferred_element_type=jnp.float32)
    scale = bn_gamma / jnp.sqrt(bn_var + eps)
    bias = bn_beta - bn_mean * scale
    y = y * scale[None, :, None, None] + bias[None, :, None, None]
    return y * jax.nn.sigmoid(y)


if __name__ == "__main__":
    def run_case(name, *, batch, cin, h, w, cout, ksize, stride, **kwargs):
        key = jax.random.PRNGKey(0)
        k_x, k_w, k_g, k_b, k_m, k_v = jax.random.split(key, 6)
        x = jax.random.normal(k_x, (batch, cin, h, w), dtype=jnp.float32)
        weight = 0.1 * jax.random.normal(k_w, (cout, cin, ksize, ksize),
                                         dtype=jnp.float32)
        # Deterministic BatchNorm params / running statistics (eval mode).
        gamma = 1.0 + 0.1 * jax.random.normal(k_g, (cout,), dtype=jnp.float32)
        beta = 0.1 * jax.random.normal(k_b, (cout,), dtype=jnp.float32)
        mean = 0.1 * jax.random.normal(k_m, (cout,), dtype=jnp.float32)
        var = jnp.abs(1.0 + 0.1 * jax.random.normal(k_v, (cout,),
                                                    dtype=jnp.float32))

        out = base_conv_forward(x, weight, gamma, beta, mean, var,
                                ksize=ksize, stride=stride, **kwargs)
        out = jax.block_until_ready(out)

        # The kernel feeds bf16 operands to the MXU with f32 accumulation;
        # compare against an f32 reference on the same bf16-quantized inputs.
        x_q = x.astype(jnp.bfloat16).astype(jnp.float32)
        w_q = weight.astype(jnp.bfloat16).astype(jnp.float32)
        ref = _reference(x_q, w_q, gamma, beta, mean, var,
                         ksize=ksize, stride=stride)

        pad = (ksize - 1) // 2
        ho = (h + 2 * pad - ksize) // stride + 1
        wo = (w + 2 * pad - ksize) // stride + 1
        assert out.shape == (batch, cout, ho, wo), (name, out.shape)
        err = float(jnp.max(jnp.abs(out - ref)))
        assert jnp.allclose(out, ref, atol=1e-3, rtol=1e-3), (name, err)

    # 3x3 stride-1 (single band), 3x3 stride-2 (multi-band, strided slabs),
    # 1x1 stride-1 (pointwise) — all at small shapes.
    run_case("k3_s1", batch=2, cin=4, h=16, w=16, cout=8, ksize=3, stride=1)
    run_case("k3_s2_multiband", batch=2, cin=4, h=16, w=16, cout=8, ksize=3,
             stride=2, target_rows=96)
    run_case("k1_s1", batch=2, cin=4, h=16, w=16, cout=16, ksize=1, stride=1)

    print("KERNEL_OK")
</pallas_src>

<mosaic_0001>
module attributes {stable_mosaic.version = 11 : i64} {
  func.func @_baseconv_kernel(%arg0: i32, %arg1: i32, %arg2: i32, %arg3: memref<1x432x4xbf16, #tpu.memory_space<vmem>>, %arg4: memref<1x72x4xbf16, #tpu.memory_space<vmem>>, %arg5: memref<9x4x128xbf16, #tpu.memory_space<vmem>>, %arg6: memref<1x128xf32, #tpu.memory_space<vmem>>, %arg7: memref<1x128xf32, #tpu.memory_space<vmem>>, %arg8: memref<1x432x128xf32, #tpu.memory_space<vmem>>, %arg9: memref<504x4xbf16, #tpu.memory_space<vmem>>) attributes {dimension_semantics = [#tpu.dimension_semantics<parallel>, #tpu.dimension_semantics<parallel>, #tpu.dimension_semantics<arbitrary>], iteration_bounds = array<i64: 2, 1, 1>, scalar_prefetch = 0 : i64, scratch_operands = 1 : i64, tpu.core_type = #tpu.core_type<tc>, window_params = [{transform_indices = @transform_0, window_bounds = array<i64: 1, 432, 4>}, {transform_indices = @transform_1, window_bounds = array<i64: 1, 72, 4>}, {transform_indices = @transform_2, window_bounds = array<i64: 9, 4, 128>}, {transform_indices = @transform_3, window_bounds = array<i64: 1, 128>}, {transform_indices = @transform_4, window_bounds = array<i64: 1, 128>}, {transform_indices = @transform_5, window_bounds = array<i64: 1, 432, 128>}]} {
    %c0 = arith.constant 0 : index
    %c0_0 = arith.constant 0 : index
    %c0_1 = arith.constant 0 : index
    %0 = vector.load %arg3[%c0, %c0_0, %c0_1] : memref<1x432x4xbf16, #tpu.memory_space<vmem>>, vector<1x432x4xbf16>
    %1 = vector.shape_cast %0 : vector<1x432x4xbf16> to vector<432x4xbf16>
    %c0_2 = arith.constant 0 : index
    %c0_3 = arith.constant 0 : index
    %2 = vector.load %arg9[%c0_2, %c0_3] : memref<504x4xbf16, #tpu.memory_space<vmem>>, vector<432x4xbf16>
    tpu.vector_store %arg9[%c0_2, %c0_3], %1 {strides = array<i32>} : memref<504x4xbf16, #tpu.memory_space<vmem>>, vector<432x4xbf16>,
    %c0_4 = arith.constant 0 : index
    %c0_5 = arith.constant 0 : index
    %c0_6 = arith.constant 0 : index
    %3 = vector.load %arg4[%c0_4, %c0_5, %c0_6] : memref<1x72x4xbf16, #tpu.memory_space<vmem>>, vector<1x72x4xbf16>
    %4 = vector.shape_cast %3 : vector<1x72x4xbf16> to vector<72x4xbf16>
    %c432 = arith.constant 432 : index
    %c0_7 = arith.constant 0 : index
    %5 = vector.load %arg9[%c432, %c0_7] : memref<504x4xbf16, #tpu.memory_space<vmem>>, vector<72x4xbf16>
    tpu.vector_store %arg9[%c432, %c0_7], %4 {strides = array<i32>} : memref<504x4xbf16, #tpu.memory_space<vmem>>, vector<72x4xbf16>,
    %c0_8 = arith.constant 0 : index
    %c0_9 = arith.constant 0 : index
    %6 = vector.load %arg9[%c0_8, %c0_9] : memref<504x4xbf16, #tpu.memory_space<vmem>>, vector<432x4xbf16>
    %c0_10 = arith.constant 0 : index
    %c0_11 = arith.constant 0 : index
    %c0_12 = arith.constant 0 : index
    %7 = vector.load %arg5[%c0_10, %c0_11, %c0_12] : memref<9x4x128xbf16, #tpu.memory_space<vmem>>, vector<1x4x128xbf16>
    %8 = vector.shape_cast %7 : vector<1x4x128xbf16> to vector<4x128xbf16>
    %cst = arith.constant dense<0.000000e+00> : vector<432x128xf32>
    %9 = tpu.matmul %6, %8, %cst {dimension_numbers = #tpu.dot_dimension_numbers<[1], [0], [0], [1], [0, 0, 1, 1], [], []>} : vector<432x4xbf16>, vector<4x128xbf16>, vector<432x128xf32> -> vector<432x128xf32>
    %c1 = arith.constant 1 : index
    %c0_13 = arith.constant 0 : index
    %10 = vector.load %arg9[%c1, %c0_13] : memref<504x4xbf16, #tpu.memory_space<vmem>>, vector<432x4xbf16>
    %c1_14 = arith.constant 1 : index
    %c0_15 = arith.constant 0 : index
    %c0_16 = arith.constant 0 : index
    %11 = vector.load %arg5[%c1_14, %c0_15, %c0_16] : memref<9x4x128xbf16, #tpu.memory_space<vmem>>, vector<1x4x128xbf16>
    %12 = vector.shape_cast %11 : vector<1x4x128xbf16> to vector<4x128xbf16>
    %cst_17 = arith.constant dense<0.000000e+00> : vector<432x128xf32>
    %13 = tpu.matmul %10, %12, %cst_17 {dimension_numbers = #tpu.dot_dimension_numbers<[1], [0], [0], [1], [0, 0, 1, 1], [], []>} : vector<432x4xbf16>, vector<4x128xbf16>, vector<432x128xf32> -> vector<432x128xf32>
    %14 = arith.addf %9, %13 : vector<432x128xf32>
    %c2 = arith.constant 2 : index
    %c0_18 = arith.constant 0 : index
    %15 = vector.load %arg9[%c2, %c0_18] : memref<504x4xbf16, #tpu.memory_space<vmem>>, vector<432x4xbf16>
    %c2_19 = arith.constant 2 : index
    %c0_20 = arith.constant 0 : index
    %c0_21 = arith.constant 0 : index
    %16 = vector.load %arg5[%c2_19, %c0_20, %c0_21] : memref<9x4x128xbf16, #tpu.memory_space<vmem>>, vector<1x4x128xbf16>
    %17 = vector.shape_cast %16 : vector<1x4x128xbf16> to vector<4x128xbf16>
    %cst_22 = arith.constant dense<0.000000e+00> : vector<432x128xf32>
    %18 = tpu.matmul %15, %17, %cst_22 {dimension_numbers = #tpu.dot_dimension_numbers<[1], [0], [0], [1], [0, 0, 1, 1], [], []>} : vector<432x4xbf16>, vector<4x128xbf16>, vector<432x128xf32> -> vector<432x128xf32>
    %19 = arith.addf %14, %18 : vector<432x128xf32>
    %c24 = arith.constant 24 : index
    %c0_23 = arith.constant 0 : index
    %20 = vector.load %arg9[%c24, %c0_23] : memref<504x4xbf16, #tpu.memory_space<vmem>>, vector<432x4xbf16>
    %c3 = arith.constant 3 : index
    %c0_24 = arith.constant 0 : index
    %c0_25 = arith.constant 0 : index
    %21 = vector.load %arg5[%c3, %c0_24, %c0_25] : memref<9x4x128xbf16, #tpu.memory_space<vmem>>, vector<1x4x128xbf16>
    %22 = vector.shape_cast %21 : vector<1x4x128xbf16> to vector<4x128xbf16>
    %cst_26 = arith.constant dense<0.000000e+00> : vector<432x128xf32>
    %23 = tpu.matmul %20, %22, %cst_26 {dimension_numbers = #tpu.dot_dimension_numbers<[1], [0], [0], [1], [0, 0, 1, 1], [], []>} : vector<432x4xbf16>, vector<4x128xbf16>, vector<432x128xf32> -> vector<432x128xf32>
    %24 = arith.addf %19, %23 : vector<432x128xf32>
    %c25 = arith.constant 25 : index
    %c0_27 = arith.constant 0 : index
    %25 = vector.load %arg9[%c25, %c0_27] : memref<504x4xbf16, #tpu.memory_space<vmem>>, vector<432x4xbf16>
    %c4 = arith.constant 4 : index
    %c0_28 = arith.constant 0 : index
    %c0_29 = arith.constant 0 : index
    %26 = vector.load %arg5[%c4, %c0_28, %c0_29] : memref<9x4x128xbf16, #tpu.memory_space<vmem>>, vector<1x4x128xbf16>
    %27 = vector.shape_cast %26 : vector<1x4x128xbf16> to vector<4x128xbf16>
    %cst_30 = arith.constant dense<0.000000e+00> : vector<432x128xf32>
    %28 = tpu.matmul %25, %27, %cst_30 {dimension_numbers = #tpu.dot_dimension_numbers<[1], [0], [0], [1], [0, 0, 1, 1], [], []>} : vector<432x4xbf16>, vector<4x128xbf16>, vector<432x128xf32> -> vector<432x128xf32>
    %29 = arith.addf %24, %28 : vector<432x128xf32>
    %c26 = arith.constant 26 : index
    %c0_31 = arith.constant 0 : index
    %30 = vector.load %arg9[%c26, %c0_31] : memref<504x4xbf16, #tpu.memory_space<vmem>>, vector<432x4xbf16>
    %c5 = arith.constant 5 : index
    %c0_32 = arith.constant 0 : index
    %c0_33 = arith.constant 0 : index
    %31 = vector.load %arg5[%c5, %c0_32, %c0_33] : memref<9x4x128xbf16, #tpu.memory_space<vmem>>, vector<1x4x128xbf16>
    %32 = vector.shape_cast %31 : vector<1x4x128xbf16> to vector<4x128xbf16>
    %cst_34 = arith.constant dense<0.000000e+00> : vector<432x128xf32>
    %33 = tpu.matmul %30, %32, %cst_34 {dimension_numbers = #tpu.dot_dimension_numbers<[1], [0], [0], [1], [0, 0, 1, 1], [], []>} : vector<432x4xbf16>, vector<4x128xbf16>, vector<432x128xf32> -> vector<432x128xf32>
    %34 = arith.addf %29, %33 : vector<432x128xf32>
    %c48 = arith.constant 48 : index
    %c0_35 = arith.constant 0 : index
    %35 = vector.load %arg9[%c48, %c0_35] : memref<504x4xbf16, #tpu.memory_space<vmem>>, vector<432x4xbf16>
    %c6 = arith.constant 6 : index
    %c0_36 = arith.constant 0 : index
    %c0_37 = arith.constant 0 : index
    %36 = vector.load %arg5[%c6, %c0_36, %c0_37] : memref<9x4x128xbf16, #tpu.memory_space<vmem>>, vector<1x4x128xbf16>
    %37 = vector.shape_cast %36 : vector<1x4x128xbf16> to vector<4x128xbf16>
    %cst_38 = arith.constant dense<0.000000e+00> : vector<432x128xf32>
    %38 = tpu.matmul %35, %37, %cst_38 {dimension_numbers = #tpu.dot_dimension_numbers<[1], [0], [0], [1], [0, 0, 1, 1], [], []>} : vector<432x4xbf16>, vector<4x128xbf16>, vector<432x128xf32> -> vector<432x128xf32>
    %39 = arith.addf %34, %38 : vector<432x128xf32>
    %c49 = arith.constant 49 : index
    %c0_39 = arith.constant 0 : index
    %40 = vector.load %arg9[%c49, %c0_39] : memref<504x4xbf16, #tpu.memory_space<vmem>>, vector<432x4xbf16>
    %c7 = arith.constant 7 : index
    %c0_40 = arith.constant 0 : index
    %c0_41 = arith.constant 0 : index
    %41 = vector.load %arg5[%c7, %c0_40, %c0_41] : memref<9x4x128xbf16, #tpu.memory_space<vmem>>, vector<1x4x128xbf16>
    %42 = vector.shape_cast %41 : vector<1x4x128xbf16> to vector<4x128xbf16>
    %cst_42 = arith.constant dense<0.000000e+00> : vector<432x128xf32>
    %43 = tpu.matmul %40, %42, %cst_42 {dimension_numbers = #tpu.dot_dimension_numbers<[1], [0], [0], [1], [0, 0, 1, 1], [], []>} : vector<432x4xbf16>, vector<4x128xbf16>, vector<432x128xf32> -> vector<432x128xf32>
    %44 = arith.addf %39, %43 : vector<432x128xf32>
    %c50 = arith.constant 50 : index
    %c0_43 = arith.constant 0 : index
    %45 = vector.load %arg9[%c50, %c0_43] : memref<504x4xbf16, #tpu.memory_space<vmem>>, vector<432x4xbf16>
    %c8 = arith.constant 8 : index
    %c0_44 = arith.constant 0 : index
    %c0_45 = arith.constant 0 : index
    %46 = vector.load %arg5[%c8, %c0_44, %c0_45] : memref<9x4x128xbf16, #tpu.memory_space<vmem>>, vector<1x4x128xbf16>
    %47 = vector.shape_cast %46 : vector<1x4x128xbf16> to vector<4x128xbf16>
    %cst_46 = arith.constant dense<0.000000e+00> : vector<432x128xf32>
    %48 = tpu.matmul %45, %47, %cst_46 {dimension_numbers = #tpu.dot_dimension_numbers<[1], [0], [0], [1], [0, 0, 1, 1], [], []>} : vector<432x4xbf16>, vector<4x128xbf16>, vector<432x128xf32> -> vector<432x128xf32>
    %49 = arith.addf %44, %48 : vector<432x128xf32>
    %c0_47 = arith.constant 0 : index
    %c0_48 = arith.constant 0 : index
    %50 = vector.load %arg6[%c0_47, %c0_48] : memref<1x128xf32, #tpu.memory_space<vmem>>, vector<1x128xf32>
    %51 = vector.broadcast %50 : vector<1x128xf32> to vector<432x128xf32>
    %52 = arith.mulf %49, %51 : vector<432x128xf32>
    %c0_49 = arith.constant 0 : index
    %c0_50 = arith.constant 0 : index
    %53 = vector.load %arg7[%c0_49, %c0_50] : memref<1x128xf32, #tpu.memory_space<vmem>>, vector<1x128xf32>
    %54 = vector.broadcast %53 : vector<1x128xf32> to vector<432x128xf32>
    %55 = arith.addf %52, %54 : vector<432x128xf32>
    %56 = arith.negf %55 : vector<432x128xf32>
    %57 = math.exp %56 : vector<432x128xf32>
    %cst_51 = arith.constant 1.000000e+00 : f32
    %58 = vector.broadcast %cst_51 : f32 to vector<432x128xf32>
    %59 = arith.addf %58, %57 : vector<432x128xf32>
    %60 = arith.divf %58, %59 : vector<432x128xf32>
    %61 = arith.mulf %55, %60 : vector<432x128xf32>
    %c0_52 = arith.constant 0 : index
    %c0_53 = arith.constant 0 : index
    %c0_54 = arith.constant 0 : index
    %62 = vector.load %arg8[%c0_52, %c0_53, %c0_54] : memref<1x432x128xf32, #tpu.memory_space<vmem>>, vector<1x432x128xf32>
    %63 = vector.shape_cast %62 : vector<1x432x128xf32> to vector<432x128xf32>
    %64 = vector.shape_cast %61 : vector<432x128xf32> to vector<1x432x128xf32>
    tpu.vector_store %arg8[%c0_52, %c0_53, %c0_54], %64 {strides = array<i32>} : memref<1x432x128xf32, #tpu.memory_space<vmem>>, vector<1x432x128xf32>,
    return
  }
  func.func @transform_0(%arg0: i32, %arg1: i32, %arg2: i32) -> (i32, i32, i32) {
    %c0_i32 = arith.constant 0 : i32
    %c0_i32_0 = arith.constant 0 : i32
    return %arg0, %arg1, %c0_i32 : i32, i32, i32
  }
  func.func @transform_1(%arg0: i32, %arg1: i32, %arg2: i32) -> (i32, i32, i32) {
    %c1_i32 = arith.constant 1 : i32
    %0 = arith.addi %arg1, %c1_i32 : i32
    %c6_i32 = arith.constant 6 : i32
    %1 = arith.muli %0, %c6_i32 : i32
    %c0_i32 = arith.constant 0 : i32
    %c0_i32_0 = arith.constant 0 : i32
    return %arg0, %1, %c0_i32 : i32, i32, i32
  }
  func.func @transform_2(%arg0: i32, %arg1: i32, %arg2: i32) -> (i32, i32, i32) {
    %c0_i32 = arith.constant 0 : i32
    %c0_i32_0 = arith.constant 0 : i32
    %c0_i32_1 = arith.constant 0 : i32
    return %c0_i32, %c0_i32_0, %arg2 : i32, i32, i32
  }
  func.func @transform_3(%arg0: i32, %arg1: i32, %arg2: i32) -> (i32, i32) {
    %c0_i32 = arith.constant 0 : i32
    %c0_i32_0 = arith.constant 0 : i32
    return %c0_i32, %arg2 : i32, i32
  }
  func.func @transform_4(%arg0: i32, %arg1: i32, %arg2: i32) -> (i32, i32) {
    %c0_i32 = arith.constant 0 : i32
    %c0_i32_0 = arith.constant 0 : i32
    return %c0_i32, %arg2 : i32, i32
  }
  func.func @transform_5(%arg0: i32, %arg1: i32, %arg2: i32) -> (i32, i32, i32) {
    %c0_i32 = arith.constant 0 : i32
    return %arg0, %arg1, %arg2 : i32, i32, i32
  }
}

</mosaic_0001>

<llo_original>
// kernel: tpu_custom_call.1
$region0: #{tpu_custom_call.1}
  #allocation0 [shape = 'u32[]', space=smem, size = 0x4, offset = 0x4, fixed_abs, tag = 'smem constant byte address 0x4 - core index']
  #allocation1 [shape = 'u32[72,128]{1,0:T(1,128)}', space=vmem, size = 0x9000, scoped, tag = 'internal scratch']
  #allocation2 [shape = 'bf16[504,4]{1,0:T(8,128)(2,1)}', space=vmem, size = 0x1f800, scoped, tag = 'scratch operand']
  %s0 = inlined_call_operand.vmem [shape: bf16[2,864,4], index: 0, kind: input, shape index: {}]
  %s1 = inlined_call_operand.vmem [shape: bf16[2,864,4], index: 1, kind: input, shape index: {}]
  %s2 = inlined_call_operand.vmem [shape: bf16[9,4,128], index: 2, kind: input, shape index: {}]
  %s3 = inlined_call_operand.vmem [shape: f32[1,128], index: 3, kind: input, shape index: {}]
  %s4 = inlined_call_operand.vmem [shape: f32[1,128], index: 4, kind: input, shape index: {}]
  %s5 = inlined_call_operand.hbm [shape: f32[2,432,128], index: 5, kind: output, shape index: {}]
  %s6 = sld [smem:[#allocation0]]
  $region53: #{tpu_custom_call.1} parent=0
    _
  %s8 = ssub.s32 1, %s6
  %s9 = scalar_select 0, %s8, %s6
  $region1: #{tpu_custom_call.1} parent=0
    #allocation3 [shape = 'u8[442368]{0}', space=vmem, size = 0x6c000, scoped, tag = 'output window, operand 0']
    #allocation4 [shape = 's32[2]{0}', space=sflag, size = 0x8, scoped, tag = 'scoped memory for tpu_custom_call.1']
    %10 = vsyncpa [#allocation4], 0
    %s11 = scalar_lea.sflag [#allocation4], 1
    %12 = vsyncpa %s11, 0
    loop: start=0, step=1, limit=4
    $region2: #{tpu_custom_call.1} parent=1 // loop_pre_header
      _
    $region3: #{tpu_custom_call.1} parent=1 // loop_header
      %s14 = sphi 0, %s18
      %p15 = scmp.ge.s32.totalorder %s14, 4
      %s21 = sphi 0, %s40
      %s22 = sphi 0, %s36
      %s23 = sphi 0, %s32
      %s24 = sphi 0, %s21
      %s25 = sphi 0, %s22
      %s26 = sphi 0, %s23
      %s27 = sphi 0, %s24
      %s28 = sphi 0, %s25
      %s29 = sphi 0, %s26
      %s45 = sphi 0, %s47
      %s48 = sphi 0, %s45
      %s49 = sphi 0, %s48
      %s65 = sphi 0, %s49
      %s77 = sphi 0, %s79
      %s80 = sphi 0, %s77
      %s81 = sphi 0, %s80
      %s97 = sphi 0, %s81
      %s103 = sphi 0, %s105
      %s106 = sphi 0, %s103
      %s107 = sphi 0, %s106
      %s123 = sphi 0, %s107
      %s129 = sphi 0, %s131
      %s132 = sphi 0, %s129
      %s133 = sphi 0, %s132
      %s149 = sphi 0, %s133
      %s155 = sphi 0, %s157
      %s158 = sphi 0, %s155
      %s159 = sphi 0, %s158
      %s175 = sphi 0, %s159
      %s185 = sphi 0, %s187
      %s188 = sphi 0, %s185
      %s189 = sphi 0, %s188
      %s205 = sphi 0, %s189
    $region4: #{tpu_custom_call.1} parent=1 // loop_header_branch
      %17 = sbr.rel (%p15) target = $region8
    $region5: #{tpu_custom_call.1} parent=1 // loop_body
      %s19 = ssub.s32 %s14, 1
      %s20 = ssub.s32 %s14, 2
      %s30 = sadd.s32 1, %s23
      %p31 = scmp.ge.s32.totalorder %s30, 1
      %s32 = scalar_select %p31, 0, %s30
      %s33 = sadd.s32 1, %s22
      %s34 = scalar_select %p31, %s33, %s22
      %p35 = scmp.ge.s32.totalorder %s34, 1
      %s36 = scalar_select %p35, 0, %s34
      %s37 = sadd.s32 1, %s21
      %s38 = scalar_select %p35, %s37, %s21
      %p39 = scmp.ge.s32.totalorder %s38, 2
      %s40 = scalar_select %p39, 0, %s38
      %s41 = ssub.s32 %s21, %s40
      %s42 = ssub.s32 %s22, %s36
      %s43 = sor.u32 %s41, %s42
      %p44 = scmp.eq.s32.totalorder %s43, 0
      %s46 = sadd.s32 %s45, 1
      %s47 = scalar_select %p44, %s45, %s46
      %p50 = pneg %p44
      %p51 = scmp.eq.s32.totalorder %s14, 1
      %p52 = por %p50, %p51
      %p53 = scmp.ne.s32.totalorder %s45, %s48
      %p54 = scmp.eq.s32.totalorder %s14, 0
      %p55 = por %p53, %p54
      %p56 = scmp.ne.s32.totalorder %s45, %s48
      %p57 = scmp.eq.s32.totalorder %s19, 1
      %p58 = por %p56, %p57
      %p59 = scmp.ne.s32.totalorder %s48, %s49
      %p60 = scmp.eq.s32.totalorder %s19, 0
      %p61 = por %p59, %p60
      %p62 = scmp.ne.s32.totalorder %s48, %s49
      %p63 = scmp.eq.s32.totalorder %s20, 1
      %p64 = por %p62, %p63
      %p66 = scmp.ne.s32.totalorder %s49, %s65
      %p67 = scmp.eq.s32.totalorder %s20, 0
      %p68 = por %p66, %p67
      %s69 = sadd.s32 %s22, 1
      %s70 = smul.u32 %s69, 6
      %s71 = sadd.s32 %s36, 1
      %s72 = smul.u32 %s71, 6
      %s73 = ssub.s32 %s21, %s40
      %s74 = ssub.s32 %s70, %s72
      %s75 = sor.u32 %s73, %s74
      %p76 = scmp.eq.s32.totalorder %s75, 0
      %s78 = sadd.s32 %s77, 1
      %s79 = scalar_select %p76, %s77, %s78
      %p82 = pneg %p76
      %p83 = scmp.eq.s32.totalorder %s14, 1
      %p84 = por %p82, %p83
      %p85 = scmp.ne.s32.totalorder %s77, %s80
      %p86 = scmp.eq.s32.totalorder %s14, 0
      %p87 = por %p85, %p86
      %p88 = scmp.ne.s32.totalorder %s77, %s80
      %p89 = scmp.eq.s32.totalorder %s19, 1
      %p90 = por %p88, %p89
      %p91 = scmp.ne.s32.totalorder %s80, %s81
      %p92 = scmp.eq.s32.totalorder %s19, 0
      %p93 = por %p91, %p92
      %p94 = scmp.ne.s32.totalorder %s80, %s81
      %p95 = scmp.eq.s32.totalorder %s20, 1
      %p96 = por %p94, %p95
      %p98 = scmp.ne.s32.totalorder %s81, %s97
      %p99 = scmp.eq.s32.totalorder %s20, 0
      %p100 = por %p98, %p99
      %s101 = ssub.s32 %s23, %s32
      %p102 = scmp.eq.s32.totalorder %s101, 0
      %s104 = sadd.s32 %s103, 1
      %s105 = scalar_select %p102, %s103, %s104
      %p108 = pneg %p102
      %p109 = scmp.eq.s32.totalorder %s14, 1
      %p110 = por %p108, %p109
      %p111 = scmp.ne.s32.totalorder %s103, %s106
      %p112 = scmp.eq.s32.totalorder %s14, 0
      %p113 = por %p111, %p112
      %p114 = scmp.ne.s32.totalorder %s103, %s106
      %p115 = scmp.eq.s32.totalorder %s19, 1
      %p116 = por %p114, %p115
      %p117 = scmp.ne.s32.totalorder %s106, %s107
      %p118 = scmp.eq.s32.totalorder %s19, 0
      %p119 = por %p117, %p118
      %p120 = scmp.ne.s32.totalorder %s106, %s107
      %p121 = scmp.eq.s32.totalorder %s20, 1
      %p122 = por %p120, %p121
      %p124 = scmp.ne.s32.totalorder %s107, %s123
      %p125 = scmp.eq.s32.totalorder %s20, 0
      %p126 = por %p124, %p125
      %s127 = ssub.s32 %s23, %s32
      %p128 = scmp.eq.s32.totalorder %s127, 0
      %s130 = sadd.s32 %s129, 1
      %s131 = scalar_select %p128, %s129, %s130
      %p134 = pneg %p128
      %p135 = scmp.eq.s32.totalorder %s14, 1
      %p136 = por %p134, %p135
      %p137 = scmp.ne.s32.totalorder %s129, %s132
      %p138 = scmp.eq.s32.totalorder %s14, 0
      %p139 = por %p137, %p138
      %p140 = scmp.ne.s32.totalorder %s129, %s132
      %p141 = scmp.eq.s32.totalorder %s19, 1
      %p142 = por %p140, %p141
      %p143 = scmp.ne.s32.totalorder %s132, %s133
      %p144 = scmp.eq.s32.totalorder %s19, 0
      %p145 = por %p143, %p144
      %p146 = scmp.ne.s32.totalorder %s132, %s133
      %p147 = scmp.eq.s32.totalorder %s20, 1
      %p148 = por %p146, %p147
      %p150 = scmp.ne.s32.totalorder %s133, %s149
      %p151 = scmp.eq.s32.totalorder %s20, 0
      %p152 = por %p150, %p151
      %s153 = ssub.s32 %s23, %s32
      %p154 = scmp.eq.s32.totalorder %s153, 0
      %s156 = sadd.s32 %s155, 1
      %s157 = scalar_select %p154, %s155, %s156
      %p160 = pneg %p154
      %p161 = scmp.eq.s32.totalorder %s14, 1
      %p162 = por %p160, %p161
      %p163 = scmp.ne.s32.totalorder %s155, %s158
      %p164 = scmp.eq.s32.totalorder %s14, 0
      %p165 = por %p163, %p164
      %p166 = scmp.ne.s32.totalorder %s155, %s158
      %p167 = scmp.eq.s32.totalorder %s19, 1
      %p168 = por %p166, %p167
      %p169 = scmp.ne.s32.totalorder %s158, %s159
      %p170 = scmp.eq.s32.totalorder %s19, 0
      %p171 = por %p169, %p170
      %p172 = scmp.ne.s32.totalorder %s158, %s159
      %p173 = scmp.eq.s32.totalorder %s20, 1
      %p174 = por %p172, %p173
      %p176 = scmp.ne.s32.totalorder %s159, %s175
      %p177 = scmp.eq.s32.totalorder %s20, 0
      %p178 = por %p176, %p177
      %s179 = ssub.s32 %s21, %s40
      %s180 = ssub.s32 %s22, %s36
      %s181 = sor.u32 %s179, %s180
      %s182 = ssub.s32 %s23, %s32
      %s183 = sor.u32 %s181, %s182
      %p184 = scmp.eq.s32.totalorder %s183, 0
      %s186 = sadd.s32 %s185, 1
      %s187 = scalar_select %p184, %s185, %s186
      %p190 = pneg %p184
      %p191 = scmp.eq.s32.totalorder %s14, 1
      %p192 = por %p190, %p191
      %p193 = scmp.ne.s32.totalorder %s185, %s188
      %p194 = scmp.eq.s32.totalorder %s14, 0
      %p195 = por %p193, %p194
      %p196 = scmp.ne.s32.totalorder %s185, %s188
      %p197 = scmp.eq.s32.totalorder %s19, 1
      %p198 = por %p196, %p197
      %p199 = scmp.ne.s32.totalorder %s188, %s189
      %p200 = scmp.eq.s32.totalorder %s19, 0
      %p201 = por %p199, %p200
      %p202 = scmp.ne.s32.totalorder %s188, %s189
      %p203 = scmp.eq.s32.totalorder %s20, 1
      %p204 = por %p202, %p203
      %p206 = scmp.ne.s32.totalorder %s189, %s205
      %p207 = scmp.eq.s32.totalorder %s20, 0
      %p208 = por %p206, %p207
      %p209 = scmp.le.s32.totalorder 1, %s14
      %p210 = scmp.lt.s32.totalorder %s14, 3
      %p211 = pnand %p209, %p210
      %p212 = pneg %p211
      // Predicated region
      $region9: #{tpu_custom_call.1} parent=5 // pred_check
        _
      $region10: #{tpu_custom_call.1} parent=5 // pred_check_branch
        %214 = sbr.rel (%p211) target = $region12
      $region11: #{tpu_custom_call.1} parent=5 // pred_region
        %s215 = ssub.s32 %s14, 1
        // Predicated region
        $region13: #{tpu_custom_call.1} parent=11 // pred_check
          %p216 = pneg %p119
        $region14: #{tpu_custom_call.1} parent=11 // pred_check_branch
          %218 = sbr.rel (%p216) target = $region16
        $region15: #{tpu_custom_call.1} parent=11 // pred_region
          %p219 = scmp.lt.s32.totalorder %s26, 0
          %s220 = scalar_select %p219, %s26, 0
          %s221 = smul.addr %s220, 2
          %s222 = scalar_lea.vmem %s2, %s221
        $region16: #{tpu_custom_call.1} parent=11 // pred_fallthru
          _
        // Predicated region
        $region17: #{tpu_custom_call.1} parent=11 // pred_check
          %p223 = pneg %p145
        $region18: #{tpu_custom_call.1} parent=11 // pred_check_branch
          %225 = sbr.rel (%p223) target = $region20
        $region19: #{tpu_custom_call.1} parent=11 // pred_region
          %p226 = scmp.lt.s32.totalorder %s26, 0
          %s227 = scalar_select %p226, %s26, 0
          %s228 = scalar_lea.vmem %s3, %s227
        $region20: #{tpu_custom_call.1} parent=11 // pred_fallthru
          _
        // Predicated region
        $region21: #{tpu_custom_call.1} parent=11 // pred_check
          %p229 = pneg %p171
        $region22: #{tpu_custom_call.1} parent=11 // pred_check_branch
          %231 = sbr.rel (%p229) target = $region24
        $region23: #{tpu_custom_call.1} parent=11 // pred_region
          %p232 = scmp.lt.s32.totalorder %s26, 0
          %s233 = scalar_select %p232, %s26, 0
          %s234 = scalar_lea.vmem %s4, %s233
        $region24: #{tpu_custom_call.1} parent=11 // pred_fallthru
          _
      $region12: #{tpu_custom_call.1} parent=5 // pred_fallthru
        _
      %p235 = scmp.lt.s32.totalorder %s14, 2
      // Predicated region
      $region25: #{tpu_custom_call.1} parent=5 // pred_check
        %p236 = pneg %p235
      $region26: #{tpu_custom_call.1} parent=5 // pred_check_branch
        %238 = sbr.rel (%p236) target = $region28
      $region27: #{tpu_custom_call.1} parent=5 // pred_region
        // Predicated region
        $region29: #{tpu_custom_call.1} parent=27 // pred_check
          %p239 = pneg %p55
        $region30: #{tpu_custom_call.1} parent=27 // pred_check_branch
          %241 = sbr.rel (%p239) target = $region32
        $region31: #{tpu_custom_call.1} parent=27 // pred_region
          %s242 = smul.u32 54, %s22
          %p243 = scmp.lt.s32.totalorder %s21, 1
          %s244 = scalar_select %p243, %s21, 1
          %p245 = scmp.lt.s32.totalorder %s242, 107
          %s246 = scalar_select %p245, %s242, 107
          %s247 = smul.addr %s244, 108
          %s248 = sadd.s32 %s246, %s247
          %s249 = smul.addr %s248, 4
          %s250 = scalar_lea.vmem %s0, %s249
          %s251 = smul.u32 54, %s22
        $region32: #{tpu_custom_call.1} parent=27 // pred_fallthru
          _
        // Predicated region
        $region33: #{tpu_custom_call.1} parent=27 // pred_check
          %p252 = pneg %p87
        $region34: #{tpu_custom_call.1} parent=27 // pred_check_branch
          %254 = sbr.rel (%p252) target = $region36
        $region35: #{tpu_custom_call.1} parent=27 // pred_region
          %s255 = sadd.s32 %s22, 1
          %s256 = smul.u32 %s255, 6
          %s257 = smul.u32 9, %s256
          %p258 = scmp.lt.s32.totalorder %s21, 1
          %s259 = scalar_select %p258, %s21, 1
          %p260 = scmp.lt.s32.totalorder %s257, 107
          %s261 = scalar_select %p260, %s257, 107
          %s262 = smul.addr %s259, 108
          %s263 = sadd.s32 %s261, %s262
          %s264 = smul.addr %s263, 4
          %s265 = scalar_lea.vmem %s1, %s264
          %s266 = sadd.s32 %s22, 1
          %s267 = smul.u32 %s266, 6
          %s268 = smul.u32 9, %s267
        $region36: #{tpu_custom_call.1} parent=27 // pred_fallthru
          _
      $region28: #{tpu_custom_call.1} parent=5 // pred_fallthru
        _
      %p269 = scmp.le.s32.totalorder 1, %s14
      %p270 = scmp.lt.s32.totalorder %s14, 3
      %p271 = pnand %p269, %p270
      %p272 = pneg %p271
      // Predicated region
      $region37: #{tpu_custom_call.1} parent=5 // pred_check
        _
      $region38: #{tpu_custom_call.1} parent=5 // pred_check_branch
        %274 = sbr.rel (%p271) target = $region40
      $region39: #{tpu_custom_call.1} parent=5 // pred_region
        %s275 = ssub.s32 %s14, 1
        %s276 = smul.u32 54, %s25
        %p277 = scmp.lt.s32.totalorder %s24, 1
        %s278 = scalar_select %p277, %s24, 1
        %p279 = scmp.lt.s32.totalorder %s276, 107
        %s280 = scalar_select %p279, %s276, 107
        %s281 = smul.addr %s278, 108
        %s282 = sadd.s32 %s280, %s281
        %s283 = smul.addr %s282, 4
        %s284 = scalar_lea.vmem %s0, %s283
        %p285 = pneg %p61
        %p286 = pneg %p58
        %s287 = sadd.s32 %s25, 1
        %s288 = smul.u32 %s287, 6
        %s289 = smul.u32 9, %s288
        %p290 = scmp.lt.s32.totalorder %s24, 1
        %s291 = scalar_select %p290, %s24, 1
        %p292 = scmp.lt.s32.totalorder %s289, 107
        %s293 = scalar_select %p292, %s289, 107
        %s294 = smul.addr %s291, 108
        %s295 = sadd.s32 %s293, %s294
        %s296 = smul.addr %s295, 4
        %s297 = scalar_lea.vmem %s1, %s296
        %p298 = pneg %p93
        %p299 = pneg %p90
        %p300 = scmp.lt.s32.totalorder %s26, 0
        %s301 = scalar_select %p300, %s26, 0
        %s302 = smul.addr %s301, 2
        %s303 = scalar_lea.vmem %s2, %s302
        %p304 = pneg %p119
        %p305 = pneg %p116
        %p306 = scmp.lt.s32.totalorder %s26, 0
        %s307 = scalar_select %p306, %s26, 0
        %s308 = scalar_lea.vmem %s3, %s307
        %p309 = pneg %p145
        %p310 = pneg %p142
        %p311 = scmp.lt.s32.totalorder %s26, 0
        %s312 = scalar_select %p311, %s26, 0
        %s313 = scalar_lea.vmem %s4, %s312
        %p314 = pneg %p171
        %p315 = pneg %p168
        %p316 = pneg %p201
        %p317 = pneg %p198
        %s318 = sand.u32 %s188, 1
        %s319 = scalar_lea.sflag [#allocation4], %s318
        %s320 = sand.u32 %s188, 1
        %s321 = smul.addr %s320, 432
        %s322 = scalar_lea.vmem [#allocation3], %s321
        %s323 = smul.u32 54, %s25
        %p324 = scmp.lt.s32.totalorder %s24, 1
        %s325 = scalar_select %p324, %s24, 1
        %p326 = scmp.lt.s32.totalorder %s323, 107
        %s327 = scalar_select %p326, %s323, 107
        %s328 = smul.addr %s325, 108
        %s329 = sadd.s32 %s327, %s328
        %s330 = smul.addr %s329, 4
        %s331 = scalar_lea.vmem %s0, %s330
        %s332 = smul.u32 54, %s25
        %s333 = sadd.s32 %s25, 1
        %s334 = smul.u32 %s333, 6
        %s335 = smul.u32 9, %s334
        %p336 = scmp.lt.s32.totalorder %s24, 1
        %s337 = scalar_select %p336, %s24, 1
        %p338 = scmp.lt.s32.totalorder %s335, 107
        %s339 = scalar_select %p338, %s335, 107
        %s340 = smul.addr %s337, 108
        %s341 = sadd.s32 %s339, %s340
        %s342 = smul.addr %s341, 4
        %s343 = scalar_lea.vmem %s1, %s342
        %s344 = sadd.s32 %s25, 1
        %s345 = smul.u32 %s344, 6
        %s346 = smul.u32 9, %s345
        %p347 = scmp.lt.s32.totalorder %s26, 0
        %s348 = scalar_select %p347, %s26, 0
        %s349 = smul.addr %s348, 2
        %s350 = scalar_lea.vmem %s2, %s349
        %p351 = scmp.lt.s32.totalorder %s26, 0
        %s352 = scalar_select %p351, %s26, 0
        %s353 = scalar_lea.vmem %s3, %s352
        %p354 = scmp.lt.s32.totalorder %s26, 0
        %s355 = scalar_select %p354, %s26, 0
        %s356 = scalar_lea.vmem %s4, %s355
        %s357 = smul.u32 54, %s25
        %v359 = vld [vmem:[%s331] sm:$0xf]
        %v360 = vld [vmem:[%s331 + $0x4] sm:$0xf]
        %v361 = vld [vmem:[%s331 + $0x8] sm:$0xf]
        %v362 = vld [vmem:[%s331 + $0xc] sm:$0xf]
        %v363 = vld [vmem:[%s331 + $0x10] sm:$0xf]
        %v364 = vld [vmem:[%s331 + $0x14] sm:$0xf]
        %v365 = vld [vmem:[%s331 + $0x18] sm:$0xf]
        %v366 = vld [vmem:[%s331 + $0x1c] sm:$0xf]
        %v367 = vld [vmem:[%s331 + $0x20] sm:$0xf]
        %v368 = vld [vmem:[%s331 + $0x24] sm:$0xf]
        %v369 = vld [vmem:[%s331 + $0x28] sm:$0xf]
        %v370 = vld [vmem:[%s331 + $0x2c] sm:$0xf]
        %v371 = vld [vmem:[%s331 + $0x30] sm:$0xf]
        %v372 = vld [vmem:[%s331 + $0x34] sm:$0xf]
        %v373 = vld [vmem:[%s331 + $0x38] sm:$0xf]
        %v374 = vld [vmem:[%s331 + $0x3c] sm:$0xf]
        %v375 = vld [vmem:[%s331 + $0x40] sm:$0xf]
        %v376 = vld [vmem:[%s331 + $0x44] sm:$0xf]
        %v377 = vld [vmem:[%s331 + $0x48] sm:$0xf]
        %v378 = vld [vmem:[%s331 + $0x4c] sm:$0xf]
        %v379 = vld [vmem:[%s331 + $0x50] sm:$0xf]
        %v380 = vld [vmem:[%s331 + $0x54] sm:$0xf]
        %v381 = vld [vmem:[%s331 + $0x58] sm:$0xf]
        %v382 = vld [vmem:[%s331 + $0x5c] sm:$0xf]
        %v383 = vld [vmem:[%s331 + $0x60] sm:$0xf]
        %v384 = vld [vmem:[%s331 + $0x64] sm:$0xf]
        %v385 = vld [vmem:[%s331 + $0x68] sm:$0xf]
        %v386 = vld [vmem:[%s331 + $0x6c] sm:$0xf]
        %v387 = vld [vmem:[%s331 + $0x70] sm:$0xf]
        %v388 = vld [vmem:[%s331 + $0x74] sm:$0xf]
        %v389 = vld [vmem:[%s331 + $0x78] sm:$0xf]
        %v390 = vld [vmem:[%s331 + $0x7c] sm:$0xf]
        %v391 = vld [vmem:[%s331 + $0x80] sm:$0xf]
        %v392 = vld [vmem:[%s331 + $0x84] sm:$0xf]
        %v393 = vld [vmem:[%s331 + $0x88] sm:$0xf]
        %v394 = vld [vmem:[%s331 + $0x8c] sm:$0xf]
        %v395 = vld [vmem:[%s331 + $0x90] sm:$0xf]
        %v396 = vld [vmem:[%s331 + $0x94] sm:$0xf]
        %v397 = vld [vmem:[%s331 + $0x98] sm:$0xf]
        %v398 = vld [vmem:[%s331 + $0x9c] sm:$0xf]
        %v399 = vld [vmem:[%s331 + $0xa0] sm:$0xf]
        %v400 = vld [vmem:[%s331 + $0xa4] sm:$0xf]
        %v401 = vld [vmem:[%s331 + $0xa8] sm:$0xf]
        %v402 = vld [vmem:[%s331 + $0xac] sm:$0xf]
        %v403 = vld [vmem:[%s331 + $0xb0] sm:$0xf]
        %v404 = vld [vmem:[%s331 + $0xb4] sm:$0xf]
        %v405 = vld [vmem:[%s331 + $0xb8] sm:$0xf]
        %v406 = vld [vmem:[%s331 + $0xbc] sm:$0xf]
        %v407 = vld [vmem:[%s331 + $0xc0] sm:$0xf]
        %v408 = vld [vmem:[%s331 + $0xc4] sm:$0xf]
        %v409 = vld [vmem:[%s331 + $0xc8] sm:$0xf]
        %v410 = vld [vmem:[%s331 + $0xcc] sm:$0xf]
        %v411 = vld [vmem:[%s331 + $0xd0] sm:$0xf]
        %v412 = vld [vmem:[%s331 + $0xd4] sm:$0xf]
        %vm413 = vcmask 27648
        %414 = vst.msk [vmem:[#allocation2] sm:$0xf] %vm413, %v359
        %415 = vst.msk [vmem:[#allocation2 + $0x4] sm:$0xf] %vm413, %v360
        %416 = vst.msk [vmem:[#allocation2 + $0x8] sm:$0xf] %vm413, %v361
        %417 = vst.msk [vmem:[#allocation2 + $0xc] sm:$0xf] %vm413, %v362
        %418 = vst.msk [vmem:[#allocation2 + $0x10] sm:$0xf] %vm413, %v363
        %419 = vst.msk [vmem:[#allocation2 + $0x14] sm:$0xf] %vm413, %v364
        %420 = vst.msk [vmem:[#allocation2 + $0x18] sm:$0xf] %vm413, %v365
        %421 = vst.msk [vmem:[#allocation2 + $0x1c] sm:$0xf] %vm413, %v366
        %422 = vst.msk [vmem:[#allocation2 + $0x20] sm:$0xf] %vm413, %v367
        %423 = vst.msk [vmem:[#allocation2 + $0x24] sm:$0xf] %vm413, %v368
        %424 = vst.msk [vmem:[#allocation2 + $0x28] sm:$0xf] %vm413, %v369
        %425 = vst.msk [vmem:[#allocation2 + $0x2c] sm:$0xf] %vm413, %v370
        %426 = vst.msk [vmem:[#allocation2 + $0x30] sm:$0xf] %vm413, %v371
        %427 = vst.msk [vmem:[#allocation2 + $0x34] sm:$0xf] %vm413, %v372
        %428 = vst.msk [vmem:[#allocation2 + $0x38] sm:$0xf] %vm413, %v373
        %429 = vst.msk [vmem:[#allocation2 + $0x3c] sm:$0xf] %vm413, %v374
        %430 = vst.msk [vmem:[#allocation2 + $0x40] sm:$0xf] %vm413, %v375
        %431 = vst.msk [vmem:[#allocation2 + $0x44] sm:$0xf] %vm413, %v376
        %432 = vst.msk [vmem:[#allocation2 + $0x48] sm:$0xf] %vm413, %v377
        %433 = vst.msk [vmem:[#allocation2 + $0x4c] sm:$0xf] %vm413, %v378
        %434 = vst.msk [vmem:[#allocation2 + $0x50] sm:$0xf] %vm413, %v379
        %435 = vst.msk [vmem:[#allocation2 + $0x54] sm:$0xf] %vm413, %v380
        %436 = vst.msk [vmem:[#allocation2 + $0x58] sm:$0xf] %vm413, %v381
        %437 = vst.msk [vmem:[#allocation2 + $0x5c] sm:$0xf] %vm413, %v382
        %438 = vst.msk [vmem:[#allocation2 + $0x60] sm:$0xf] %vm413, %v383
        %439 = vst.msk [vmem:[#allocation2 + $0x64] sm:$0xf] %vm413, %v384
        %440 = vst.msk [vmem:[#allocation2 + $0x68] sm:$0xf] %vm413, %v385
        %441 = vst.msk [vmem:[#allocation2 + $0x6c] sm:$0xf] %vm413, %v386
        %442 = vst.msk [vmem:[#allocation2 + $0x70] sm:$0xf] %vm413, %v387
        %443 = vst.msk [vmem:[#allocation2 + $0x74] sm:$0xf] %vm413, %v388
        %444 = vst.msk [vmem:[#allocation2 + $0x78] sm:$0xf] %vm413, %v389
        %445 = vst.msk [vmem:[#allocation2 + $0x7c] sm:$0xf] %vm413, %v390
        %446 = vst.msk [vmem:[#allocation2 + $0x80] sm:$0xf] %vm413, %v391
        %447 = vst.msk [vmem:[#allocation2 + $0x84] sm:$0xf] %vm413, %v392
        %448 = vst.msk [vmem:[#allocation2 + $0x88] sm:$0xf] %vm413, %v393
        %449 = vst.msk [vmem:[#allocation2 + $0x8c] sm:$0xf] %vm413, %v394
        %450 = vst.msk [vmem:[#allocation2 + $0x90] sm:$0xf] %vm413, %v395
        %451 = vst.msk [vmem:[#allocation2 + $0x94] sm:$0xf] %vm413, %v396
        %452 = vst.msk [vmem:[#allocation2 + $0x98] sm:$0xf] %vm413, %v397
        %453 = vst.msk [vmem:[#allocation2 + $0x9c] sm:$0xf] %vm413, %v398
        %454 = vst.msk [vmem:[#allocation2 + $0xa0] sm:$0xf] %vm413, %v399
        %455 = vst.msk [vmem:[#allocation2 + $0xa4] sm:$0xf] %vm413, %v400
        %456 = vst.msk [vmem:[#allocation2 + $0xa8] sm:$0xf] %vm413, %v401
        %457 = vst.msk [vmem:[#allocation2 + $0xac] sm:$0xf] %vm413, %v402
        %458 = vst.msk [vmem:[#allocation2 + $0xb0] sm:$0xf] %vm413, %v403
        %459 = vst.msk [vmem:[#allocation2 + $0xb4] sm:$0xf] %vm413, %v404
        %460 = vst.msk [vmem:[#allocation2 + $0xb8] sm:$0xf] %vm413, %v405
        %461 = vst.msk [vmem:[#allocation2 + $0xbc] sm:$0xf] %vm413, %v406
        %462 = vst.msk [vmem:[#allocation2 + $0xc0] sm:$0xf] %vm413, %v407
        %463 = vst.msk [vmem:[#allocation2 + $0xc4] sm:$0xf] %vm413, %v408
        %464 = vst.msk [vmem:[#allocation2 + $0xc8] sm:$0xf] %vm413, %v409
        %465 = vst.msk [vmem:[#allocation2 + $0xcc] sm:$0xf] %vm413, %v410
        %466 = vst.msk [vmem:[#allocation2 + $0xd0] sm:$0xf] %vm413, %v411
        %467 = vst.msk [vmem:[#allocation2 + $0xd4] sm:$0xf] %vm413, %v412
        %v468 = vld [vmem:[%s343] sm:$0xf]
        %v469 = vld [vmem:[%s343 + $0x4] sm:$0xf]
        %v470 = vld [vmem:[%s343 + $0x8] sm:$0xf]
        %v471 = vld [vmem:[%s343 + $0xc] sm:$0xf]
        %v472 = vld [vmem:[%s343 + $0x10] sm:$0xf]
        %v473 = vld [vmem:[%s343 + $0x14] sm:$0xf]
        %v474 = vld [vmem:[%s343 + $0x18] sm:$0xf]
        %v475 = vld [vmem:[%s343 + $0x1c] sm:$0xf]
        %v476 = vld [vmem:[%s343 + $0x20] sm:$0xf]
        %477 = vst.msk [vmem:[#allocation2 + $0xd8] sm:$0xf] %vm413, %v468
        %478 = vst.msk [vmem:[#allocation2 + $0xdc] sm:$0xf] %vm413, %v469
        %479 = vst.msk [vmem:[#allocation2 + $0xe0] sm:$0xf] %vm413, %v470
        %480 = vst.msk [vmem:[#allocation2 + $0xe4] sm:$0xf] %vm413, %v471
        %481 = vst.msk [vmem:[#allocation2 + $0xe8] sm:$0xf] %vm413, %v472
        %482 = vst.msk [vmem:[#allocation2 + $0xec] sm:$0xf] %vm413, %v473
        %483 = vst.msk [vmem:[#allocation2 + $0xf0] sm:$0xf] %vm413, %v474
        %484 = vst.msk [vmem:[#allocation2 + $0xf4] sm:$0xf] %vm413, %v475
        %485 = vst.msk [vmem:[#allocation2 + $0xf8] sm:$0xf] %vm413, %v476
        %v486 = vld [vmem:[#allocation2] sm:$0xf]
        %v487 = vld [vmem:[#allocation2 + $0x4] sm:$0xf]
        %v488 = vld [vmem:[#allocation2 + $0x8] sm:$0xf]
        %v489 = vld [vmem:[#allocation2 + $0xc] sm:$0xf]
        %v490 = vld [vmem:[#allocation2 + $0x10] sm:$0xf]
        %v491 = vld [vmem:[#allocation2 + $0x14] sm:$0xf]
        %v492 = vld [vmem:[#allocation2 + $0x18] sm:$0xf]
        %v493 = vld [vmem:[#allocation2 + $0x1c] sm:$0xf]
        %v494 = vld [vmem:[#allocation2 + $0x20] sm:$0xf]
        %v495 = vld [vmem:[#allocation2 + $0x24] sm:$0xf]
        %v496 = vld [vmem:[#allocation2 + $0x28] sm:$0xf]
        %v497 = vld [vmem:[#allocation2 + $0x2c] sm:$0xf]
        %v498 = vld [vmem:[#allocation2 + $0x30] sm:$0xf]
        %v499 = vld [vmem:[#allocation2 + $0x34] sm:$0xf]
        %v500 = vld [vmem:[#allocation2 + $0x38] sm:$0xf]
        %v501 = vld [vmem:[#allocation2 + $0x3c] sm:$0xf]
        %v502 = vld [vmem:[#allocation2 + $0x40] sm:$0xf]
        %v503 = vld [vmem:[#allocation2 + $0x44] sm:$0xf]
        %v504 = vld [vmem:[#allocation2 + $0x48] sm:$0xf]
        %v505 = vld [vmem:[#allocation2 + $0x4c] sm:$0xf]
        %v506 = vld [vmem:[#allocation2 + $0x50] sm:$0xf]
        %v507 = vld [vmem:[#allocation2 + $0x54] sm:$0xf]
        %v508 = vld [vmem:[#allocation2 + $0x58] sm:$0xf]
        %v509 = vld [vmem:[#allocation2 + $0x5c] sm:$0xf]
        %v510 = vld [vmem:[#allocation2 + $0x60] sm:$0xf]
        %v511 = vld [vmem:[#allocation2 + $0x64] sm:$0xf]
        %v512 = vld [vmem:[#allocation2 + $0x68] sm:$0xf]
        %v513 = vld [vmem:[#allocation2 + $0x6c] sm:$0xf]
        %v514 = vld [vmem:[#allocation2 + $0x70] sm:$0xf]
        %v515 = vld [vmem:[#allocation2 + $0x74] sm:$0xf]
        %v516 = vld [vmem:[#allocation2 + $0x78] sm:$0xf]
        %v517 = vld [vmem:[#allocation2 + $0x7c] sm:$0xf]
        %v518 = vld [vmem:[#allocation2 + $0x80] sm:$0xf]
        %v519 = vld [vmem:[#allocation2 + $0x84] sm:$0xf]
        %v520 = vld [vmem:[#allocation2 + $0x88] sm:$0xf]
        %v521 = vld [vmem:[#allocation2 + $0x8c] sm:$0xf]
        %v522 = vld [vmem:[#allocation2 + $0x90] sm:$0xf]
        %v523 = vld [vmem:[#allocation2 + $0x94] sm:$0xf]
        %v524 = vld [vmem:[#allocation2 + $0x98] sm:$0xf]
        %v525 = vld [vmem:[#allocation2 + $0x9c] sm:$0xf]
        %v526 = vld [vmem:[#allocation2 + $0xa0] sm:$0xf]
        %v527 = vld [vmem:[#allocation2 + $0xa4] sm:$0xf]
        %v528 = vld [vmem:[#allocation2 + $0xa8] sm:$0xf]
        %v529 = vld [vmem:[#allocation2 + $0xac] sm:$0xf]
        %v530 = vld [vmem:[#allocation2 + $0xb0] sm:$0xf]
        %v531 = vld [vmem:[#allocation2 + $0xb4] sm:$0xf]
        %v532 = vld [vmem:[#allocation2 + $0xb8] sm:$0xf]
        %v533 = vld [vmem:[#allocation2 + $0xbc] sm:$0xf]
        %v534 = vld [vmem:[#allocation2 + $0xc0] sm:$0xf]
        %v535 = vld [vmem:[#allocation2 + $0xc4] sm:$0xf]
        %v536 = vld [vmem:[#allocation2 + $0xc8] sm:$0xf]
        %v537 = vld [vmem:[#allocation2 + $0xcc] sm:$0xf]
        %v538 = vld [vmem:[#allocation2 + $0xd0] sm:$0xf]
        %v539 = vld [vmem:[#allocation2 + $0xd4] sm:$0xf]
        %v540 = vld [vmem:[%s350] sm:$0x3]
        %v541 = vld [vmem:[#allocation2 + $0xd8] sm:$0x1]
        %s542 = scalar_lea.vmem %s350, 2
        %v543 = vld [vmem:[%s542] sm:$0x3]
        %v599 = vunpack.c.l.b16 %v486
        %v600 = vunpack.c.l.b16 %v487
        %v601 = vunpack.c.l.b16 %v488
        %v602 = vunpack.c.l.b16 %v489
        %v603 = vunpack.c.l.b16 %v490
        %v604 = vunpack.c.l.b16 %v491
        %v605 = vunpack.c.l.b16 %v492
        %v606 = vunpack.c.l.b16 %v493
        %v607 = vunpack.c.l.b16 %v494
        %v608 = vunpack.c.l.b16 %v495
        %v609 = vunpack.c.l.b16 %v496
        %v610 = vunpack.c.l.b16 %v497
        %v611 = vunpack.c.l.b16 %v498
        %v612 = vunpack.c.l.b16 %v499
        %v613 = vunpack.c.l.b16 %v500
        %v614 = vunpack.c.l.b16 %v501
        %v615 = vunpack.c.l.b16 %v502
        %v616 = vunpack.c.l.b16 %v503
        %v617 = vunpack.c.l.b16 %v504
        %v618 = vunpack.c.l.b16 %v505
        %v619 = vunpack.c.l.b16 %v506
        %v620 = vunpack.c.l.b16 %v507
        %v621 = vunpack.c.l.b16 %v508
        %v622 = vunpack.c.l.b16 %v509
        %v623 = vunpack.c.l.b16 %v510
        %v624 = vunpack.c.l.b16 %v511
        %v625 = vunpack.c.l.b16 %v512
        %v626 = vunpack.c.l.b16 %v513
        %v627 = vunpack.c.l.b16 %v514
        %v628 = vunpack.c.l.b16 %v515
        %v629 = vunpack.c.l.b16 %v516
        %v630 = vunpack.c.l.b16 %v517
        %v631 = vunpack.c.l.b16 %v518
        %v632 = vunpack.c.l.b16 %v519
        %v633 = vunpack.c.l.b16 %v520
        %v634 = vunpack.c.l.b16 %v521
        %v635 = vunpack.c.l.b16 %v522
        %v636 = vunpack.c.l.b16 %v523
        %v637 = vunpack.c.l.b16 %v524
        %v638 = vunpack.c.l.b16 %v525
        %v639 = vunpack.c.l.b16 %v526
        %v640 = vunpack.c.l.b16 %v527
        %v641 = vunpack.c.l.b16 %v528
        %v642 = vunpack.c.l.b16 %v529
        %v643 = vunpack.c.l.b16 %v530
        %v644 = vunpack.c.l.b16 %v531
        %v645 = vunpack.c.l.b16 %v532
        %v646 = vunpack.c.l.b16 %v533
        %v647 = vunpack.c.l.b16 %v534
        %v648 = vunpack.c.l.b16 %v535
        %v649 = vunpack.c.l.b16 %v536
        %v650 = vunpack.c.l.b16 %v537
        %v651 = vunpack.c.l.b16 %v538
        %v652 = vunpack.c.l.b16 %v539
        %v653 = vunpack.c.l.b16 %v541
        %v654 = vpack.c.b16 %v600, %v599
        %v655 = vpack.c.b16 %v602, %v601
        %v656 = vpack.c.b16 %v604, %v603
        %v657 = vpack.c.b16 %v606, %v605
        %v658 = vpack.c.b16 %v608, %v607
        %v659 = vpack.c.b16 %v610, %v609
        %v660 = vpack.c.b16 %v612, %v611
        %v661 = vpack.c.b16 %v614, %v613
        %v662 = vpack.c.b16 %v616, %v615
        %v663 = vpack.c.b16 %v618, %v617
        %v664 = vpack.c.b16 %v620, %v619
        %v665 = vpack.c.b16 %v622, %v621
        %v666 = vpack.c.b16 %v624, %v623
        %v667 = vpack.c.b16 %v626, %v625
        %v668 = vpack.c.b16 %v628, %v627
        %v669 = vpack.c.b16 %v630, %v629
        %v670 = vpack.c.b16 %v632, %v631
        %v671 = vpack.c.b16 %v634, %v633
        %v672 = vpack.c.b16 %v636, %v635
        %v673 = vpack.c.b16 %v638, %v637
        %v674 = vpack.c.b16 %v640, %v639
        %v675 = vpack.c.b16 %v642, %v641
        %v676 = vpack.c.b16 %v644, %v643
        %v677 = vpack.c.b16 %v646, %v645
        %v678 = vpack.c.b16 %v648, %v647
        %v679 = vpack.c.b16 %v650, %v649
        %v680 = vpack.c.b16 %v652, %v651
        %v681 = vpack.c.b16 %v653, %v653
        %vm682 = vsmask.f32 7424
        %v684 = vshrl.u32 %v654, 16
        %v686 = vshll.u32 %v654, 16
        %v688 = vrot.slane %v686, 1
        %v689 = vor.u32 %v684, %v688
        %v691 = vshll.u32 %v655, 16
        %v693 = vrot.slane %v691, 1
        %v694 = vsel %vm682, %v689, %v693
        %v695 = vshrl.u32 %v655, 16
        %v697 = vor.u32 %v695, %v693
        %v699 = vshll.u32 %v656, 16
        %v701 = vrot.slane %v699, 1
        %v702 = vsel %vm682, %v697, %v701
        %v703 = vshrl.u32 %v656, 16
        %v705 = vor.u32 %v703, %v701
        %v707 = vshll.u32 %v657, 16
        %v709 = vrot.slane %v707, 1
        %v710 = vsel %vm682, %v705, %v709
        %v711 = vshrl.u32 %v657, 16
        %v713 = vor.u32 %v711, %v709
        %v715 = vshll.u32 %v658, 16
        %v717 = vrot.slane %v715, 1
        %v718 = vsel %vm682, %v713, %v717
        %v719 = vshrl.u32 %v658, 16
        %v721 = vor.u32 %v719, %v717
        %v723 = vshll.u32 %v659, 16
        %v725 = vrot.slane %v723, 1
        %v726 = vsel %vm682, %v721, %v725
        %v727 = vshrl.u32 %v659, 16
        %v729 = vor.u32 %v727, %v725
        %v731 = vshll.u32 %v660, 16
        %v733 = vrot.slane %v731, 1
        %v734 = vsel %vm682, %v729, %v733
        %v735 = vshrl.u32 %v660, 16
        %v737 = vor.u32 %v735, %v733
        %v739 = vshll.u32 %v661, 16
        %v741 = vrot.slane %v739, 1
        %v742 = vsel %vm682, %v737, %v741
        %v743 = vshrl.u32 %v661, 16
        %v745 = vor.u32 %v743, %v741
        %v747 = vshll.u32 %v662, 16
        %v749 = vrot.slane %v747, 1
        %v750 = vsel %vm682, %v745, %v749
        %v751 = vshrl.u32 %v662, 16
        %v753 = vor.u32 %v751, %v749
        %v755 = vshll.u32 %v663, 16
        %v757 = vrot.slane %v755, 1
        %v758 = vsel %vm682, %v753, %v757
        %v759 = vshrl.u32 %v663, 16
        %v761 = vor.u32 %v759, %v757
        %v763 = vshll.u32 %v664, 16
        %v765 = vrot.slane %v763, 1
        %v766 = vsel %vm682, %v761, %v765
        %v767 = vshrl.u32 %v664, 16
        %v769 = vor.u32 %v767, %v765
        %v771 = vshll.u32 %v665, 16
        %v773 = vrot.slane %v771, 1
        %v774 = vsel %vm682, %v769, %v773
        %v775 = vshrl.u32 %v665, 16
        %v777 = vor.u32 %v775, %v773
        %v779 = vshll.u32 %v666, 16
        %v781 = vrot.slane %v779, 1
        %v782 = vsel %vm682, %v777, %v781
        %v783 = vshrl.u32 %v666, 16
        %v785 = vor.u32 %v783, %v781
        %v787 = vshll.u32 %v667, 16
        %v789 = vrot.slane %v787, 1
        %v790 = vsel %vm682, %v785, %v789
        %v791 = vshrl.u32 %v667, 16
        %v793 = vor.u32 %v791, %v789
        %v795 = vshll.u32 %v668, 16
        %v797 = vrot.slane %v795, 1
        %v798 = vsel %vm682, %v793, %v797
        %v799 = vshrl.u32 %v668, 16
        %v801 = vor.u32 %v799, %v797
        %v803 = vshll.u32 %v669, 16
        %v805 = vrot.slane %v803, 1
        %v806 = vsel %vm682, %v801, %v805
        %v807 = vshrl.u32 %v669, 16
        %v809 = vor.u32 %v807, %v805
        %v811 = vshll.u32 %v670, 16
        %v813 = vrot.slane %v811, 1
        %v814 = vsel %vm682, %v809, %v813
        %v815 = vshrl.u32 %v670, 16
        %v817 = vor.u32 %v815, %v813
        %v819 = vshll.u32 %v671, 16
        %v821 = vrot.slane %v819, 1
        %v822 = vsel %vm682, %v817, %v821
        %v823 = vshrl.u32 %v671, 16
        %v825 = vor.u32 %v823, %v821
        %v827 = vshll.u32 %v672, 16
        %v829 = vrot.slane %v827, 1
        %v830 = vsel %vm682, %v825, %v829
        %v831 = vshrl.u32 %v672, 16
        %v833 = vor.u32 %v831, %v829
        %v835 = vshll.u32 %v673, 16
        %v837 = vrot.slane %v835, 1
        %v838 = vsel %vm682, %v833, %v837
        %v839 = vshrl.u32 %v673, 16
        %v841 = vor.u32 %v839, %v837
        %v843 = vshll.u32 %v674, 16
        %v845 = vrot.slane %v843, 1
        %v846 = vsel %vm682, %v841, %v845
        %v847 = vshrl.u32 %v674, 16
        %v849 = vor.u32 %v847, %v845
        %v851 = vshll.u32 %v675, 16
        %v853 = vrot.slane %v851, 1
        %v854 = vsel %vm682, %v849, %v853
        %v855 = vshrl.u32 %v675, 16
        %v857 = vor.u32 %v855, %v853
        %v859 = vshll.u32 %v676, 16
        %v861 = vrot.slane %v859, 1
        %v862 = vsel %vm682, %v857, %v861
        %v863 = vshrl.u32 %v676, 16
        %v865 = vor.u32 %v863, %v861
        %v867 = vshll.u32 %v677, 16
        %v869 = vrot.slane %v867, 1
        %v870 = vsel %vm682, %v865, %v869
        %v871 = vshrl.u32 %v677, 16
        %v873 = vor.u32 %v871, %v869
        %v875 = vshll.u32 %v678, 16
        %v877 = vrot.slane %v875, 1
        %v878 = vsel %vm682, %v873, %v877
        %v879 = vshrl.u32 %v678, 16
        %v881 = vor.u32 %v879, %v877
        %v883 = vshll.u32 %v679, 16
        %v885 = vrot.slane %v883, 1
        %v886 = vsel %vm682, %v881, %v885
        %v887 = vshrl.u32 %v679, 16
        %v889 = vor.u32 %v887, %v885
        %v891 = vshll.u32 %v680, 16
        %v893 = vrot.slane %v891, 1
        %v894 = vsel %vm682, %v889, %v893
        %v895 = vshrl.u32 %v680, 16
        %v897 = vor.u32 %v895, %v893
        %v899 = vshll.u32 %v681, 16
        %v901 = vrot.slane %v899, 1
        %v902 = vsel %vm682, %v897, %v901
        %vm903 = vcmask 31744
        %v905 = vsel %vm903, %v694, 0
        %v908 = vsel %vm903, %v702, 0
        %v911 = vsel %vm903, %v710, 0
        %v914 = vsel %vm903, %v718, 0
        %v917 = vsel %vm903, %v726, 0
        %v920 = vsel %vm903, %v734, 0
        %v923 = vsel %vm903, %v742, 0
        %v926 = vsel %vm903, %v750, 0
        %v929 = vsel %vm903, %v758, 0
        %v932 = vsel %vm903, %v766, 0
        %v935 = vsel %vm903, %v774, 0
        %v938 = vsel %vm903, %v782, 0
        %v941 = vsel %vm903, %v790, 0
        %v944 = vsel %vm903, %v798, 0
        %v947 = vsel %vm903, %v806, 0
        %v950 = vsel %vm903, %v814, 0
        %v953 = vsel %vm903, %v822, 0
        %v956 = vsel %vm903, %v830, 0
        %v959 = vsel %vm903, %v838, 0
        %v962 = vsel %vm903, %v846, 0
        %v965 = vsel %vm903, %v854, 0
        %v968 = vsel %vm903, %v862, 0
        %v971 = vsel %vm903, %v870, 0
        %v974 = vsel %vm903, %v878, 0
        %v977 = vsel %vm903, %v886, 0
        %v980 = vsel %vm903, %v894, 0
        %v983 = vsel %vm903, %v902, 0
        %vm985 = vcmask 1041408
        %v987 = vsel %vm985, %v543, 0
        %989 = vmatpush.bf16.msra.mxu0 0
        %990 = vmatpush.bf16.msra.mxu0 0
        %991 = vmatpush.bf16.msra.mxu0 0
        %992 = vmatpush.bf16.msra.mxu0 0
        %993 = vmatpush.bf16.msra.mxu0 0
        %994 = vmatpush.bf16.msra.mxu0 0
        %995 = vmatpush.bf16.msra.mxu0 0
        %996 = vmatpush.bf16.msra.mxu0 %v987
        %997 = vmatmul.bf16.gmra.mxu0 %v905
        %v998 = vpop.f32.mrf.mxu0
        %v999 = vadd.f32 0.0, %v998
        %v1000 = vpop.f32.mrf.mxu0
        %v1001 = vadd.f32 0.0, %v1000
        %1002 = vmatmul.bf16.gmra.mxu0 %v908
        %v1003 = vpop.f32.mrf.mxu0
        %v1004 = vadd.f32 0.0, %v1003
        %v1005 = vpop.f32.mrf.mxu0
        %v1006 = vadd.f32 0.0, %v1005
        %1007 = vmatmul.bf16.gmra.mxu0 %v911
        %v1008 = vpop.f32.mrf.mxu0
        %v1009 = vadd.f32 0.0, %v1008
        %v1010 = vpop.f32.mrf.mxu0
        %v1011 = vadd.f32 0.0, %v1010
        %1012 = vmatmul.bf16.gmra.mxu0 %v914
        %v1013 = vpop.f32.mrf.mxu0
        %v1014 = vadd.f32 0.0, %v1013
        %v1015 = vpop.f32.mrf.mxu0
        %v1016 = vadd.f32 0.0, %v1015
        %1017 = vmatmul.bf16.gmra.mxu0 %v917
        %v1018 = vpop.f32.mrf.mxu0
        %v1019 = vadd.f32 0.0, %v1018
        %v1020 = vpop.f32.mrf.mxu0
        %v1021 = vadd.f32 0.0, %v1020
        %1022 = vmatmul.bf16.gmra.mxu0 %v920
        %v1023 = vpop.f32.mrf.mxu0
        %v1024 = vadd.f32 0.0, %v1023
        %v1025 = vpop.f32.mrf.mxu0
        %v1026 = vadd.f32 0.0, %v1025
        %1027 = vmatmul.bf16.gmra.mxu0 %v923
        %v1028 = vpop.f32.mrf.mxu0
        %v1029 = vadd.f32 0.0, %v1028
        %v1030 = vpop.f32.mrf.mxu0
        %v1031 = vadd.f32 0.0, %v1030
        %1032 = vmatmul.bf16.gmra.mxu0 %v926
        %v1033 = vpop.f32.mrf.mxu0
        %v1034 = vadd.f32 0.0, %v1033
        %v1035 = vpop.f32.mrf.mxu0
        %v1036 = vadd.f32 0.0, %v1035
        %1037 = vmatmul.bf16.gmra.mxu0 %v929
        %v1038 = vpop.f32.mrf.mxu0
        %v1039 = vadd.f32 0.0, %v1038
        %v1040 = vpop.f32.mrf.mxu0
        %v1041 = vadd.f32 0.0, %v1040
        %1042 = vmatmul.bf16.gmra.mxu0 %v932
        %v1043 = vpop.f32.mrf.mxu0
        %v1044 = vadd.f32 0.0, %v1043
        %v1045 = vpop.f32.mrf.mxu0
        %v1046 = vadd.f32 0.0, %v1045
        %1047 = vmatmul.bf16.gmra.mxu0 %v935
        %v1048 = vpop.f32.mrf.mxu0
        %v1049 = vadd.f32 0.0, %v1048
        %v1050 = vpop.f32.mrf.mxu0
        %v1051 = vadd.f32 0.0, %v1050
        %1052 = vmatmul.bf16.gmra.mxu0 %v938
        %v1053 = vpop.f32.mrf.mxu0
        %v1054 = vadd.f32 0.0, %v1053
        %v1055 = vpop.f32.mrf.mxu0
        %v1056 = vadd.f32 0.0, %v1055
        %1057 = vmatmul.bf16.gmra.mxu0 %v941
        %v1058 = vpop.f32.mrf.mxu0
        %v1059 = vadd.f32 0.0, %v1058
        %v1060 = vpop.f32.mrf.mxu0
        %v1061 = vadd.f32 0.0, %v1060
        %1062 = vmatmul.bf16.gmra.mxu0 %v944
        %v1063 = vpop.f32.mrf.mxu0
        %v1064 = vadd.f32 0.0, %v1063
        %v1065 = vpop.f32.mrf.mxu0
        %v1066 = vadd.f32 0.0, %v1065
        %1067 = vmatmul.bf16.gmra.mxu0 %v947
        %v1068 = vpop.f32.mrf.mxu0
        %v1069 = vadd.f32 0.0, %v1068
        %v1070 = vpop.f32.mrf.mxu0
        %v1071 = vadd.f32 0.0, %v1070
        %1072 = vmatmul.bf16.gmra.mxu0 %v950
        %v1073 = vpop.f32.mrf.mxu0
        %v1074 = vadd.f32 0.0, %v1073
        %v1075 = vpop.f32.mrf.mxu0
        %v1076 = vadd.f32 0.0, %v1075
        %1077 = vmatmul.bf16.gmra.mxu0 %v953
        %v1078 = vpop.f32.mrf.mxu0
        %v1079 = vadd.f32 0.0, %v1078
        %v1080 = vpop.f32.mrf.mxu0
        %v1081 = vadd.f32 0.0, %v1080
        %1082 = vmatmul.bf16.gmra.mxu0 %v956
        %v1083 = vpop.f32.mrf.mxu0
        %v1084 = vadd.f32 0.0, %v1083
        %v1085 = vpop.f32.mrf.mxu0
        %v1086 = vadd.f32 0.0, %v1085
        %1087 = vmatmul.bf16.gmra.mxu0 %v959
        %v1088 = vpop.f32.mrf.mxu0
        %v1089 = vadd.f32 0.0, %v1088
        %v1090 = vpop.f32.mrf.mxu0
        %v1091 = vadd.f32 0.0, %v1090
        %1092 = vmatmul.bf16.gmra.mxu0 %v962
        %v1093 = vpop.f32.mrf.mxu0
        %v1094 = vadd.f32 0.0, %v1093
        %v1095 = vpop.f32.mrf.mxu0
        %v1096 = vadd.f32 0.0, %v1095
        %1097 = vmatmul.bf16.gmra.mxu0 %v965
        %v1098 = vpop.f32.mrf.mxu0
        %v1099 = vadd.f32 0.0, %v1098
        %v1100 = vpop.f32.mrf.mxu0
        %v1101 = vadd.f32 0.0, %v1100
        %1102 = vmatmul.bf16.gmra.mxu0 %v968
        %v1103 = vpop.f32.mrf.mxu0
        %v1104 = vadd.f32 0.0, %v1103
        %v1105 = vpop.f32.mrf.mxu0
        %v1106 = vadd.f32 0.0, %v1105
        %1107 = vmatmul.bf16.gmra.mxu0 %v971
        %v1108 = vpop.f32.mrf.mxu0
        %v1109 = vadd.f32 0.0, %v1108
        %v1110 = vpop.f32.mrf.mxu0
        %v1111 = vadd.f32 0.0, %v1110
        %1112 = vmatmul.bf16.gmra.mxu0 %v974
        %v1113 = vpop.f32.mrf.mxu0
        %v1114 = vadd.f32 0.0, %v1113
        %v1115 = vpop.f32.mrf.mxu0
        %v1116 = vadd.f32 0.0, %v1115
        %1117 = vmatmul.bf16.gmra.mxu0 %v977
        %v1118 = vpop.f32.mrf.mxu0
        %v1119 = vadd.f32 0.0, %v1118
        %v1120 = vpop.f32.mrf.mxu0
        %v1121 = vadd.f32 0.0, %v1120
        %1122 = vmatmul.bf16.gmra.mxu0 %v980
        %v1123 = vpop.f32.mrf.mxu0
        %v1124 = vadd.f32 0.0, %v1123
        %v1125 = vpop.f32.mrf.mxu0
        %v1126 = vadd.f32 0.0, %v1125
        %1127 = vmatmul.bf16.gmra.mxu0 %v983
        %v1128 = vpop.f32.mrf.mxu0
        %v1129 = vadd.f32 0.0, %v1128
        %v1130 = vpop.f32.mrf.mxu0
        %v1131 = vadd.f32 0.0, %v1130
        %1132 = vdwg.mxu0
        %v1133 = vsel %vm903, %v654, 0
        %v1135 = vsel %vm903, %v655, 0
        %v1137 = vsel %vm903, %v656, 0
        %v1139 = vsel %vm903, %v657, 0
        %v1141 = vsel %vm903, %v658, 0
        %v1143 = vsel %vm903, %v659, 0
        %v1145 = vsel %vm903, %v660, 0
        %v1147 = vsel %vm903, %v661, 0
        %v1149 = vsel %vm903, %v662, 0
        %v1151 = vsel %vm903, %v663, 0
        %v1153 = vsel %vm903, %v664, 0
        %v1155 = vsel %vm903, %v665, 0
        %v1157 = vsel %vm903, %v666, 0
        %v1159 = vsel %vm903, %v667, 0
        %v1161 = vsel %vm903, %v668, 0
        %v1163 = vsel %vm903, %v669, 0
        %v1165 = vsel %vm903, %v670, 0
        %v1167 = vsel %vm903, %v671, 0
        %v1169 = vsel %vm903, %v672, 0
        %v1171 = vsel %vm903, %v673, 0
        %v1173 = vsel %vm903, %v674, 0
        %v1175 = vsel %vm903, %v675, 0
        %v1177 = vsel %vm903, %v676, 0
        %v1179 = vsel %vm903, %v677, 0
        %v1181 = vsel %vm903, %v678, 0
        %v1183 = vsel %vm903, %v679, 0
        %v1185 = vsel %vm903, %v680, 0
        %v1188 = vsel %vm985, %v540, 0
        %1190 = vmatpush.bf16.msra.mxu0 0
        %1191 = vmatpush.bf16.msra.mxu0 0
        %1192 = vmatpush.bf16.msra.mxu0 0
        %1193 = vmatpush.bf16.msra.mxu0 0
        %1194 = vmatpush.bf16.msra.mxu0 0
        %1195 = vmatpush.bf16.msra.mxu0 0
        %1196 = vmatpush.bf16.msra.mxu0 0
        %1197 = vmatpush.bf16.msra.mxu0 %v1188
        %1198 = vmatmul.bf16.gmra.mxu0 %v1133
        %v1199 = vpop.f32.mrf.mxu0
        %v1200 = vadd.f32 %v999, %v1199
        %v1201 = vpop.f32.mrf.mxu0
        %v1202 = vadd.f32 %v1001, %v1201
        %1203 = vmatmul.bf16.gmra.mxu0 %v1135
        %v1204 = vpop.f32.mrf.mxu0
        %v1205 = vadd.f32 %v1004, %v1204
        %v1206 = vpop.f32.mrf.mxu0
        %v1207 = vadd.f32 %v1006, %v1206
        %1208 = vmatmul.bf16.gmra.mxu0 %v1137
        %v1209 = vpop.f32.mrf.mxu0
        %v1210 = vadd.f32 %v1009, %v1209
        %v1211 = vpop.f32.mrf.mxu0
        %v1212 = vadd.f32 %v1011, %v1211
        %1213 = vmatmul.bf16.gmra.mxu0 %v1139
        %v1214 = vpop.f32.mrf.mxu0
        %v1215 = vadd.f32 %v1014, %v1214
        %v1216 = vpop.f32.mrf.mxu0
        %v1217 = vadd.f32 %v1016, %v1216
        %1218 = vmatmul.bf16.gmra.mxu0 %v1141
        %v1219 = vpop.f32.mrf.mxu0
        %v1220 = vadd.f32 %v1019, %v1219
        %v1221 = vpop.f32.mrf.mxu0
        %v1222 = vadd.f32 %v1021, %v1221
        %1223 = vmatmul.bf16.gmra.mxu0 %v1143
        %v1224 = vpop.f32.mrf.mxu0
        %v1225 = vadd.f32 %v1024, %v1224
        %v1226 = vpop.f32.mrf.mxu0
        %v1227 = vadd.f32 %v1026, %v1226
        %1228 = vmatmul.bf16.gmra.mxu0 %v1145
        %v1229 = vpop.f32.mrf.mxu0
        %v1230 = vadd.f32 %v1029, %v1229
        %v1231 = vpop.f32.mrf.mxu0
        %v1232 = vadd.f32 %v1031, %v1231
        %1233 = vmatmul.bf16.gmra.mxu0 %v1147
        %v1234 = vpop.f32.mrf.mxu0
        %v1235 = vadd.f32 %v1034, %v1234
        %v1236 = vpop.f32.mrf.mxu0
        %v1237 = vadd.f32 %v1036, %v1236
        %1238 = vmatmul.bf16.gmra.mxu0 %v1149
        %v1239 = vpop.f32.mrf.mxu0
        %v1240 = vadd.f32 %v1039, %v1239
        %v1241 = vpop.f32.mrf.mxu0
        %v1242 = vadd.f32 %v1041, %v1241
        %1243 = vmatmul.bf16.gmra.mxu0 %v1151
        %v1244 = vpop.f32.mrf.mxu0
        %v1245 = vadd.f32 %v1044, %v1244
        %v1246 = vpop.f32.mrf.mxu0
        %v1247 = vadd.f32 %v1046, %v1246
        %1248 = vmatmul.bf16.gmra.mxu0 %v1153
        %v1249 = vpop.f32.mrf.mxu0
        %v1250 = vadd.f32 %v1049, %v1249
        %v1251 = vpop.f32.mrf.mxu0
        %v1252 = vadd.f32 %v1051, %v1251
        %1253 = vmatmul.bf16.gmra.mxu0 %v1155
        %v1254 = vpop.f32.mrf.mxu0
        %v1255 = vadd.f32 %v1054, %v1254
        %v1256 = vpop.f32.mrf.mxu0
        %v1257 = vadd.f32 %v1056, %v1256
        %1258 = vmatmul.bf16.gmra.mxu0 %v1157
        %v1259 = vpop.f32.mrf.mxu0
        %v1260 = vadd.f32 %v1059, %v1259
        %v1261 = vpop.f32.mrf.mxu0
        %v1262 = vadd.f32 %v1061, %v1261
        %1263 = vmatmul.bf16.gmra.mxu0 %v1159
        %v1264 = vpop.f32.mrf.mxu0
        %v1265 = vadd.f32 %v1064, %v1264
        %v1266 = vpop.f32.mrf.mxu0
        %v1267 = vadd.f32 %v1066, %v1266
        %1268 = vmatmul.bf16.gmra.mxu0 %v1161
        %v1269 = vpop.f32.mrf.mxu0
        %v1270 = vadd.f32 %v1069, %v1269
        %v1271 = vpop.f32.mrf.mxu0
        %v1272 = vadd.f32 %v1071, %v1271
        %1273 = vmatmul.bf16.gmra.mxu0 %v1163
        %v1274 = vpop.f32.mrf.mxu0
        %v1275 = vadd.f32 %v1074, %v1274
        %v1276 = vpop.f32.mrf.mxu0
        %v1277 = vadd.f32 %v1076, %v1276
        %1278 = vmatmul.bf16.gmra.mxu0 %v1165
        %v1279 = vpop.f32.mrf.mxu0
        %v1280 = vadd.f32 %v1079, %v1279
        %v1281 = vpop.f32.mrf.mxu0
        %v1282 = vadd.f32 %v1081, %v1281
        %1283 = vmatmul.bf16.gmra.mxu0 %v1167
        %v1284 = vpop.f32.mrf.mxu0
        %v1285 = vadd.f32 %v1084, %v1284
        %v1286 = vpop.f32.mrf.mxu0
        %v1287 = vadd.f32 %v1086, %v1286
        %1288 = vmatmul.bf16.gmra.mxu0 %v1169
        %v1289 = vpop.f32.mrf.mxu0
        %v1290 = vadd.f32 %v1089, %v1289
        %v1291 = vpop.f32.mrf.mxu0
        %v1292 = vadd.f32 %v1091, %v1291
        %1293 = vmatmul.bf16.gmra.mxu0 %v1171
        %v1294 = vpop.f32.mrf.mxu0
        %v1295 = vadd.f32 %v1094, %v1294
        %v1296 = vpop.f32.mrf.mxu0
        %v1297 = vadd.f32 %v1096, %v1296
        %1298 = vmatmul.bf16.gmra.mxu0 %v1173
        %v1299 = vpop.f32.mrf.mxu0
        %v1300 = vadd.f32 %v1099, %v1299
        %v1301 = vpop.f32.mrf.mxu0
        %v1302 = vadd.f32 %v1101, %v1301
        %1303 = vmatmul.bf16.gmra.mxu0 %v1175
        %v1304 = vpop.f32.mrf.mxu0
        %v1305 = vadd.f32 %v1104, %v1304
        %v1306 = vpop.f32.mrf.mxu0
        %v1307 = vadd.f32 %v1106, %v1306
        %1308 = vmatmul.bf16.gmra.mxu0 %v1177
        %v1309 = vpop.f32.mrf.mxu0
        %v1310 = vadd.f32 %v1109, %v1309
        %v1311 = vpop.f32.mrf.mxu0
        %v1312 = vadd.f32 %v1111, %v1311
        %1313 = vmatmul.bf16.gmra.mxu0 %v1179
        %v1314 = vpop.f32.mrf.mxu0
        %v1315 = vadd.f32 %v1114, %v1314
        %v1316 = vpop.f32.mrf.mxu0
        %v1317 = vadd.f32 %v1116, %v1316
        %1318 = vmatmul.bf16.gmra.mxu0 %v1181
        %v1319 = vpop.f32.mrf.mxu0
        %v1320 = vadd.f32 %v1119, %v1319
        %v1321 = vpop.f32.mrf.mxu0
        %v1322 = vadd.f32 %v1121, %v1321
        %1323 = vmatmul.bf16.gmra.mxu0 %v1183
        %v1324 = vpop.f32.mrf.mxu0
        %v1325 = vadd.f32 %v1124, %v1324
        %v1326 = vpop.f32.mrf.mxu0
        %v1327 = vadd.f32 %v1126, %v1326
        %1328 = vmatmul.bf16.gmra.mxu0 %v1185
        %v1329 = vpop.f32.mrf.mxu0
        %v1330 = vadd.f32 %v1129, %v1329
        %v1331 = vpop.f32.mrf.mxu0
        %v1332 = vadd.f32 %v1131, %v1331
        %1333 = vdwg.mxu0
        %v1334 = vld [vmem:[#allocation2] sm:$0xe]
        %s1335 = scalar_lea.vmem %s350, 4
        %v1336 = vld [vmem:[%s1335] sm:$0x3]
        %v1338 = vunpack.c.l.b16 %v1334
        %v1339 = vpack.c.b16 %v600, %v1338
        %vm1340 = vcmask 1046528
        %v1341 = vrot.slane %v1339, 1
        %v1342 = vrot.slane %v655, 1
        %v1343 = vsel %vm1340, %v1341, %v1342
        %v1344 = vrot.slane %v656, 1
        %v1345 = vsel %vm1340, %v1342, %v1344
        %v1346 = vrot.slane %v657, 1
        %v1347 = vsel %vm1340, %v1344, %v1346
        %v1348 = vrot.slane %v658, 1
        %v1349 = vsel %vm1340, %v1346, %v1348
        %v1350 = vrot.slane %v659, 1
        %v1351 = vsel %vm1340, %v1348, %v1350
        %v1352 = vrot.slane %v660, 1
        %v1353 = vsel %vm1340, %v1350, %v1352
        %v1354 = vrot.slane %v661, 1
        %v1355 = vsel %vm1340, %v1352, %v1354
        %v1356 = vrot.slane %v662, 1
        %v1357 = vsel %vm1340, %v1354, %v1356
        %v1358 = vrot.slane %v663, 1
        %v1359 = vsel %vm1340, %v1356, %v1358
        %v1360 = vrot.slane %v664, 1
        %v1361 = vsel %vm1340, %v1358, %v1360
        %v1362 = vrot.slane %v665, 1
        %v1363 = vsel %vm1340, %v1360, %v1362
        %v1364 = vrot.slane %v666, 1
        %v1365 = vsel %vm1340, %v1362, %v1364
        %v1366 = vrot.slane %v667, 1
        %v1367 = vsel %vm1340, %v1364, %v1366
        %v1368 = vrot.slane %v668, 1
        %v1369 = vsel %vm1340, %v1366, %v1368
        %v1370 = vrot.slane %v669, 1
        %v1371 = vsel %vm1340, %v1368, %v1370
        %v1372 = vrot.slane %v670, 1
        %v1373 = vsel %vm1340, %v1370, %v1372
        %v1374 = vrot.slane %v671, 1
        %v1375 = vsel %vm1340, %v1372, %v1374
        %v1376 = vrot.slane %v672, 1
        %v1377 = vsel %vm1340, %v1374, %v1376
        %v1378 = vrot.slane %v673, 1
        %v1379 = vsel %vm1340, %v1376, %v1378
        %v1380 = vrot.slane %v674, 1
        %v1381 = vsel %vm1340, %v1378, %v1380
        %v1382 = vrot.slane %v675, 1
        %v1383 = vsel %vm1340, %v1380, %v1382
        %v1384 = vrot.slane %v676, 1
        %v1385 = vsel %vm1340, %v1382, %v1384
        %v1386 = vrot.slane %v677, 1
        %v1387 = vsel %vm1340, %v1384, %v1386
        %v1388 = vrot.slane %v678, 1
        %v1389 = vsel %vm1340, %v1386, %v1388
        %v1390 = vrot.slane %v679, 1
        %v1391 = vsel %vm1340, %v1388, %v1390
        %v1392 = vrot.slane %v680, 1
        %v1393 = vsel %vm1340, %v1390, %v1392
        %v1394 = vrot.slane %v681, 1
        %v1395 = vsel %vm1340, %v1392, %v1394
        %v1397 = vsel %vm903, %v1343, 0
        %v1400 = vsel %vm903, %v1345, 0
        %v1403 = vsel %vm903, %v1347, 0
        %v1406 = vsel %vm903, %v1349, 0
        %v1409 = vsel %vm903, %v1351, 0
        %v1412 = vsel %vm903, %v1353, 0
        %v1415 = vsel %vm903, %v1355, 0
        %v1418 = vsel %vm903, %v1357, 0
        %v1421 = vsel %vm903, %v1359, 0
        %v1424 = vsel %vm903, %v1361, 0
        %v1427 = vsel %vm903, %v1363, 0
        %v1430 = vsel %vm903, %v1365, 0
        %v1433 = vsel %vm903, %v1367, 0
        %v1436 = vsel %vm903, %v1369, 0
        %v1439 = vsel %vm903, %v1371, 0
        %v1442 = vsel %vm903, %v1373, 0
        %v1445 = vsel %vm903, %v1375, 0
        %v1448 = vsel %vm903, %v1377, 0
        %v1451 = vsel %vm903, %v1379, 0
        %v1454 = vsel %vm903, %v1381, 0
        %v1457 = vsel %vm903, %v1383, 0
        %v1460 = vsel %vm903, %v1385, 0
        %v1463 = vsel %vm903, %v1387, 0
        %v1466 = vsel %vm903, %v1389, 0
        %v1469 = vsel %vm903, %v1391, 0
        %v1472 = vsel %vm903, %v1393, 0
        %v1475 = vsel %vm903, %v1395, 0
        %v1478 = vsel %vm985, %v1336, 0
        %1480 = vmatpush.bf16.msra.mxu0 0
        %1481 = vmatpush.bf16.msra.mxu0 0
        %1482 = vmatpush.bf16.msra.mxu0 0
        %1483 = vmatpush.bf16.msra.mxu0 0
        %1484 = vmatpush.bf16.msra.mxu0 0
        %1485 = vmatpush.bf16.msra.mxu0 0
        %1486 = vmatpush.bf16.msra.mxu0 0
        %1487 = vmatpush.bf16.msra.mxu0 %v1478
        %1488 = vmatmul.bf16.gmra.mxu0 %v1397
        %v1489 = vpop.f32.mrf.mxu0
        %v1490 = vadd.f32 0.0, %v1489
        %v1491 = vpop.f32.mrf.mxu0
        %v1492 = vadd.f32 0.0, %v1491
        %1493 = vmatmul.bf16.gmra.mxu0 %v1400
        %v1494 = vpop.f32.mrf.mxu0
        %v1495 = vadd.f32 0.0, %v1494
        %v1496 = vpop.f32.mrf.mxu0
        %v1497 = vadd.f32 0.0, %v1496
        %1498 = vmatmul.bf16.gmra.mxu0 %v1403
        %v1499 = vpop.f32.mrf.mxu0
        %v1500 = vadd.f32 0.0, %v1499
        %v1501 = vpop.f32.mrf.mxu0
        %v1502 = vadd.f32 0.0, %v1501
        %1503 = vmatmul.bf16.gmra.mxu0 %v1406
        %v1504 = vpop.f32.mrf.mxu0
        %v1505 = vadd.f32 0.0, %v1504
        %v1506 = vpop.f32.mrf.mxu0
        %v1507 = vadd.f32 0.0, %v1506
        %1508 = vmatmul.bf16.gmra.mxu0 %v1409
        %v1509 = vpop.f32.mrf.mxu0
        %v1510 = vadd.f32 0.0, %v1509
        %v1511 = vpop.f32.mrf.mxu0
        %v1512 = vadd.f32 0.0, %v1511
        %1513 = vmatmul.bf16.gmra.mxu0 %v1412
        %v1514 = vpop.f32.mrf.mxu0
        %v1515 = vadd.f32 0.0, %v1514
        %v1516 = vpop.f32.mrf.mxu0
        %v1517 = vadd.f32 0.0, %v1516
        %1518 = vmatmul.bf16.gmra.mxu0 %v1415
        %v1519 = vpop.f32.mrf.mxu0
        %v1520 = vadd.f32 0.0, %v1519
        %v1521 = vpop.f32.mrf.mxu0
        %v1522 = vadd.f32 0.0, %v1521
        %1523 = vmatmul.bf16.gmra.mxu0 %v1418
        %v1524 = vpop.f32.mrf.mxu0
        %v1525 = vadd.f32 0.0, %v1524
        %v1526 = vpop.f32.mrf.mxu0
        %v1527 = vadd.f32 0.0, %v1526
        %1528 = vmatmul.bf16.gmra.mxu0 %v1421
        %v1529 = vpop.f32.mrf.mxu0
        %v1530 = vadd.f32 0.0, %v1529
        %v1531 = vpop.f32.mrf.mxu0
        %v1532 = vadd.f32 0.0, %v1531
        %1533 = vmatmul.bf16.gmra.mxu0 %v1424
        %v1534 = vpop.f32.mrf.mxu0
        %v1535 = vadd.f32 0.0, %v1534
        %v1536 = vpop.f32.mrf.mxu0
        %v1537 = vadd.f32 0.0, %v1536
        %1538 = vmatmul.bf16.gmra.mxu0 %v1427
        %v1539 = vpop.f32.mrf.mxu0
        %v1540 = vadd.f32 0.0, %v1539
        %v1541 = vpop.f32.mrf.mxu0
        %v1542 = vadd.f32 0.0, %v1541
        %1543 = vmatmul.bf16.gmra.mxu0 %v1430
        %v1544 = vpop.f32.mrf.mxu0
        %v1545 = vadd.f32 0.0, %v1544
        %v1546 = vpop.f32.mrf.mxu0
        %v1547 = vadd.f32 0.0, %v1546
        %1548 = vmatmul.bf16.gmra.mxu0 %v1433
        %v1549 = vpop.f32.mrf.mxu0
        %v1550 = vadd.f32 0.0, %v1549
        %v1551 = vpop.f32.mrf.mxu0
        %v1552 = vadd.f32 0.0, %v1551
        %1553 = vmatmul.bf16.gmra.mxu0 %v1436
        %v1554 = vpop.f32.mrf.mxu0
        %v1555 = vadd.f32 0.0, %v1554
        %v1556 = vpop.f32.mrf.mxu0
        %v1557 = vadd.f32 0.0, %v1556
        %1558 = vmatmul.bf16.gmra.mxu0 %v1439
        %v1559 = vpop.f32.mrf.mxu0
        %v1560 = vadd.f32 0.0, %v1559
        %v1561 = vpop.f32.mrf.mxu0
        %v1562 = vadd.f32 0.0, %v1561
        %1563 = vmatmul.bf16.gmra.mxu0 %v1442
        %v1564 = vpop.f32.mrf.mxu0
        %v1565 = vadd.f32 0.0, %v1564
        %v1566 = vpop.f32.mrf.mxu0
        %v1567 = vadd.f32 0.0, %v1566
        %1568 = vmatmul.bf16.gmra.mxu0 %v1445
        %v1569 = vpop.f32.mrf.mxu0
        %v1570 = vadd.f32 0.0, %v1569
        %v1571 = vpop.f32.mrf.mxu0
        %v1572 = vadd.f32 0.0, %v1571
        %1573 = vmatmul.bf16.gmra.mxu0 %v1448
        %v1574 = vpop.f32.mrf.mxu0
        %v1575 = vadd.f32 0.0, %v1574
        %v1576 = vpop.f32.mrf.mxu0
        %v1577 = vadd.f32 0.0, %v1576
        %1578 = vmatmul.bf16.gmra.mxu0 %v1451
        %v1579 = vpop.f32.mrf.mxu0
        %v1580 = vadd.f32 0.0, %v1579
        %v1581 = vpop.f32.mrf.mxu0
        %v1582 = vadd.f32 0.0, %v1581
        %1583 = vmatmul.bf16.gmra.mxu0 %v1454
        %v1584 = vpop.f32.mrf.mxu0
        %v1585 = vadd.f32 0.0, %v1584
        %v1586 = vpop.f32.mrf.mxu0
        %v1587 = vadd.f32 0.0, %v1586
        %1588 = vmatmul.bf16.gmra.mxu0 %v1457
        %v1589 = vpop.f32.mrf.mxu0
        %v1590 = vadd.f32 0.0, %v1589
        %v1591 = vpop.f32.mrf.mxu0
        %v1592 = vadd.f32 0.0, %v1591
        %1593 = vmatmul.bf16.gmra.mxu0 %v1460
        %v1594 = vpop.f32.mrf.mxu0
        %v1595 = vadd.f32 0.0, %v1594
        %v1596 = vpop.f32.mrf.mxu0
        %v1597 = vadd.f32 0.0, %v1596
        %1598 = vmatmul.bf16.gmra.mxu0 %v1463
        %v1599 = vpop.f32.mrf.mxu0
        %v1600 = vadd.f32 0.0, %v1599
        %v1601 = vpop.f32.mrf.mxu0
        %v1602 = vadd.f32 0.0, %v1601
        %1603 = vmatmul.bf16.gmra.mxu0 %v1466
        %v1604 = vpop.f32.mrf.mxu0
        %v1605 = vadd.f32 0.0, %v1604
        %v1606 = vpop.f32.mrf.mxu0
        %v1607 = vadd.f32 0.0, %v1606
        %1608 = vmatmul.bf16.gmra.mxu0 %v1469
        %v1609 = vpop.f32.mrf.mxu0
        %v1610 = vadd.f32 0.0, %v1609
        %v1611 = vpop.f32.mrf.mxu0
        %v1612 = vadd.f32 0.0, %v1611
        %1613 = vmatmul.bf16.gmra.mxu0 %v1472
        %v1614 = vpop.f32.mrf.mxu0
        %v1615 = vadd.f32 0.0, %v1614
        %v1616 = vpop.f32.mrf.mxu0
        %v1617 = vadd.f32 0.0, %v1616
        %1618 = vmatmul.bf16.gmra.mxu0 %v1475
        %v1619 = vpop.f32.mrf.mxu0
        %v1620 = vadd.f32 0.0, %v1619
        %v1621 = vpop.f32.mrf.mxu0
        %v1622 = vadd.f32 0.0, %v1621
        %1623 = vdwg.mxu0
        %v1624 = vadd.f32 %v1200, %v1490
        %v1625 = vadd.f32 %v1202, %v1492
        %v1626 = vadd.f32 %v1205, %v1495
        %v1627 = vadd.f32 %v1207, %v1497
        %v1628 = vadd.f32 %v1210, %v1500
        %v1629 = vadd.f32 %v1212, %v1502
        %v1630 = vadd.f32 %v1215, %v1505
        %v1631 = vadd.f32 %v1217, %v1507
        %v1632 = vadd.f32 %v1220, %v1510
        %v1633 = vadd.f32 %v1222, %v1512
        %v1634 = vadd.f32 %v1225, %v1515
        %v1635 = vadd.f32 %v1227, %v1517
        %v1636 = vadd.f32 %v1230, %v1520
        %v1637 = vadd.f32 %v1232, %v1522
        %v1638 = vadd.f32 %v1235, %v1525
        %v1639 = vadd.f32 %v1237, %v1527
        %v1640 = vadd.f32 %v1240, %v1530
        %v1641 = vadd.f32 %v1242, %v1532
        %v1642 = vadd.f32 %v1245, %v1535
        %v1643 = vadd.f32 %v1247, %v1537
        %v1644 = vadd.f32 %v1250, %v1540
        %v1645 = vadd.f32 %v1252, %v1542
        %v1646 = vadd.f32 %v1255, %v1545
        %v1647 = vadd.f32 %v1257, %v1547
        %v1648 = vadd.f32 %v1260, %v1550
        %v1649 = vadd.f32 %v1262, %v1552
        %v1650 = vadd.f32 %v1265, %v1555
        %v1651 = vadd.f32 %v1267, %v1557
        %v1652 = vadd.f32 %v1270, %v1560
        %v1653 = vadd.f32 %v1272, %v1562
        %v1654 = vadd.f32 %v1275, %v1565
        %v1655 = vadd.f32 %v1277, %v1567
        %v1656 = vadd.f32 %v1280, %v1570
        %v1657 = vadd.f32 %v1282, %v1572
        %v1658 = vadd.f32 %v1285, %v1575
        %v1659 = vadd.f32 %v1287, %v1577
        %v1660 = vadd.f32 %v1290, %v1580
        %v1661 = vadd.f32 %v1292, %v1582
        %v1662 = vadd.f32 %v1295, %v1585
        %v1663 = vadd.f32 %v1297, %v1587
        %v1664 = vadd.f32 %v1300, %v1590
        %v1665 = vadd.f32 %v1302, %v1592
        %v1666 = vadd.f32 %v1305, %v1595
        %v1667 = vadd.f32 %v1307, %v1597
        %v1668 = vadd.f32 %v1310, %v1600
        %v1669 = vadd.f32 %v1312, %v1602
        %v1670 = vadd.f32 %v1315, %v1605
        %v1671 = vadd.f32 %v1317, %v1607
        %v1672 = vadd.f32 %v1320, %v1610
        %v1673 = vadd.f32 %v1322, %v1612
        %v1674 = vadd.f32 %v1325, %v1615
        %v1675 = vadd.f32 %v1327, %v1617
        %v1676 = vadd.f32 %v1330, %v1620
        %v1677 = vadd.f32 %v1332, %v1622
        %v1678 = vld [vmem:[#allocation2 + $0xc] sm:$0xf]
        %v1679 = vld [vmem:[#allocation2 + $0x10] sm:$0xf]
        %v1680 = vld [vmem:[#allocation2 + $0x14] sm:$0xf]
        %v1681 = vld [vmem:[#allocation2 + $0x18] sm:$0xf]
        %v1682 = vld [vmem:[#allocation2 + $0x1c] sm:$0xf]
        %v1683 = vld [vmem:[#allocation2 + $0x20] sm:$0xf]
        %v1684 = vld [vmem:[#allocation2 + $0x24] sm:$0xf]
        %v1685 = vld [vmem:[#allocation2 + $0x28] sm:$0xf]
        %v1686 = vld [vmem:[#allocation2 + $0x2c] sm:$0xf]
        %v1687 = vld [vmem:[#allocation2 + $0x30] sm:$0xf]
        %v1688 = vld [vmem:[#allocation2 + $0x34] sm:$0xf]
        %v1689 = vld [vmem:[#allocation2 + $0x38] sm:$0xf]
        %v1690 = vld [vmem:[#allocation2 + $0x3c] sm:$0xf]
        %v1691 = vld [vmem:[#allocation2 + $0x40] sm:$0xf]
        %v1692 = vld [vmem:[#allocation2 + $0x44] sm:$0xf]
        %v1693 = vld [vmem:[#allocation2 + $0x48] sm:$0xf]
        %v1694 = vld [vmem:[#allocation2 + $0x4c] sm:$0xf]
        %v1695 = vld [vmem:[#allocation2 + $0x50] sm:$0xf]
        %v1696 = vld [vmem:[#allocation2 + $0x54] sm:$0xf]
        %v1697 = vld [vmem:[#allocation2 + $0x58] sm:$0xf]
        %v1698 = vld [vmem:[#allocation2 + $0x5c] sm:$0xf]
        %v1699 = vld [vmem:[#allocation2 + $0x60] sm:$0xf]
        %v1700 = vld [vmem:[#allocation2 + $0x64] sm:$0xf]
        %v1701 = vld [vmem:[#allocation2 + $0x68] sm:$0xf]
        %v1702 = vld [vmem:[#allocation2 + $0x6c] sm:$0xf]
        %v1703 = vld [vmem:[#allocation2 + $0x70] sm:$0xf]
        %v1704 = vld [vmem:[#allocation2 + $0x74] sm:$0xf]
        %v1705 = vld [vmem:[#allocation2 + $0x78] sm:$0xf]
        %v1706 = vld [vmem:[#allocation2 + $0x7c] sm:$0xf]
        %v1707 = vld [vmem:[#allocation2 + $0x80] sm:$0xf]
        %v1708 = vld [vmem:[#allocation2 + $0x84] sm:$0xf]
        %v1709 = vld [vmem:[#allocation2 + $0x88] sm:$0xf]
        %v1710 = vld [vmem:[#allocation2 + $0x8c] sm:$0xf]
        %v1711 = vld [vmem:[#allocation2 + $0x90] sm:$0xf]
        %v1712 = vld [vmem:[#allocation2 + $0x94] sm:$0xf]
        %v1713 = vld [vmem:[#allocation2 + $0x98] sm:$0xf]
        %v1714 = vld [vmem:[#allocation2 + $0x9c] sm:$0xf]
        %v1715 = vld [vmem:[#allocation2 + $0xa0] sm:$0xf]
        %v1716 = vld [vmem:[#allocation2 + $0xa4] sm:$0xf]
        %v1717 = vld [vmem:[#allocation2 + $0xa8] sm:$0xf]
        %v1718 = vld [vmem:[#allocation2 + $0xac] sm:$0xf]
        %v1719 = vld [vmem:[#allocation2 + $0xb0] sm:$0xf]
        %v1720 = vld [vmem:[#allocation2 + $0xb4] sm:$0xf]
        %v1721 = vld [vmem:[#allocation2 + $0xb8] sm:$0xf]
        %v1722 = vld [vmem:[#allocation2 + $0xbc] sm:$0xf]
        %v1723 = vld [vmem:[#allocation2 + $0xc0] sm:$0xf]
        %v1724 = vld [vmem:[#allocation2 + $0xc4] sm:$0xf]
        %v1725 = vld [vmem:[#allocation2 + $0xc8] sm:$0xf]
        %v1726 = vld [vmem:[#allocation2 + $0xcc] sm:$0xf]
        %v1727 = vld [vmem:[#allocation2 + $0xd0] sm:$0xf]
        %v1728 = vld [vmem:[#allocation2 + $0xd4] sm:$0xf]
        %v1729 = vld [vmem:[#allocation2 + $0xd8] sm:$0xf]
        %v1730 = vld [vmem:[#allocation2 + $0xdc] sm:$0xf]
        %v1731 = vld [vmem:[#allocation2 + $0xe0] sm:$0xf]
        %s1732 = scalar_lea.vmem %s350, 6
        %v1733 = vld [vmem:[%s1732] sm:$0x3]
        %v1788 = vunpack.c.l.b16 %v1678
        %v1789 = vunpack.c.l.b16 %v1679
        %v1790 = vunpack.c.l.b16 %v1680
        %v1791 = vunpack.c.l.b16 %v1681
        %v1792 = vunpack.c.l.b16 %v1682
        %v1793 = vunpack.c.l.b16 %v1683
        %v1794 = vunpack.c.l.b16 %v1684
        %v1795 = vunpack.c.l.b16 %v1685
        %v1796 = vunpack.c.l.b16 %v1686
        %v1797 = vunpack.c.l.b16 %v1687
        %v1798 = vunpack.c.l.b16 %v1688
        %v1799 = vunpack.c.l.b16 %v1689
        %v1800 = vunpack.c.l.b16 %v1690
        %v1801 = vunpack.c.l.b16 %v1691
        %v1802 = vunpack.c.l.b16 %v1692
        %v1803 = vunpack.c.l.b16 %v1693
        %v1804 = vunpack.c.l.b16 %v1694
        %v1805 = vunpack.c.l.b16 %v1695
        %v1806 = vunpack.c.l.b16 %v1696
        %v1807 = vunpack.c.l.b16 %v1697
        %v1808 = vunpack.c.l.b16 %v1698
        %v1809 = vunpack.c.l.b16 %v1699
        %v1810 = vunpack.c.l.b16 %v1700
        %v1811 = vunpack.c.l.b16 %v1701
        %v1812 = vunpack.c.l.b16 %v1702
        %v1813 = vunpack.c.l.b16 %v1703
        %v1814 = vunpack.c.l.b16 %v1704
        %v1815 = vunpack.c.l.b16 %v1705
        %v1816 = vunpack.c.l.b16 %v1706
        %v1817 = vunpack.c.l.b16 %v1707
        %v1818 = vunpack.c.l.b16 %v1708
        %v1819 = vunpack.c.l.b16 %v1709
        %v1820 = vunpack.c.l.b16 %v1710
        %v1821 = vunpack.c.l.b16 %v1711
        %v1822 = vunpack.c.l.b16 %v1712
        %v1823 = vunpack.c.l.b16 %v1713
        %v1824 = vunpack.c.l.b16 %v1714
        %v1825 = vunpack.c.l.b16 %v1715
        %v1826 = vunpack.c.l.b16 %v1716
        %v1827 = vunpack.c.l.b16 %v1717
        %v1828 = vunpack.c.l.b16 %v1718
        %v1829 = vunpack.c.l.b16 %v1719
        %v1830 = vunpack.c.l.b16 %v1720
        %v1831 = vunpack.c.l.b16 %v1721
        %v1832 = vunpack.c.l.b16 %v1722
        %v1833 = vunpack.c.l.b16 %v1723
        %v1834 = vunpack.c.l.b16 %v1724
        %v1835 = vunpack.c.l.b16 %v1725
        %v1836 = vunpack.c.l.b16 %v1726
        %v1837 = vunpack.c.l.b16 %v1727
        %v1838 = vunpack.c.l.b16 %v1728
        %v1839 = vunpack.c.l.b16 %v1729
        %v1840 = vunpack.c.l.b16 %v1730
        %v1841 = vunpack.c.l.b16 %v1731
        %v1842 = vpack.c.b16 %v1789, %v1788
        %v1843 = vpack.c.b16 %v1791, %v1790
        %v1844 = vpack.c.b16 %v1793, %v1792
        %v1845 = vpack.c.b16 %v1795, %v1794
        %v1846 = vpack.c.b16 %v1797, %v1796
        %v1847 = vpack.c.b16 %v1799, %v1798
        %v1848 = vpack.c.b16 %v1801, %v1800
        %v1849 = vpack.c.b16 %v1803, %v1802
        %v1850 = vpack.c.b16 %v1805, %v1804
        %v1851 = vpack.c.b16 %v1807, %v1806
        %v1852 = vpack.c.b16 %v1809, %v1808
        %v1853 = vpack.c.b16 %v1811, %v1810
        %v1854 = vpack.c.b16 %v1813, %v1812
        %v1855 = vpack.c.b16 %v1815, %v1814
        %v1856 = vpack.c.b16 %v1817, %v1816
        %v1857 = vpack.c.b16 %v1819, %v1818
        %v1858 = vpack.c.b16 %v1821, %v1820
        %v1859 = vpack.c.b16 %v1823, %v1822
        %v1860 = vpack.c.b16 %v1825, %v1824
        %v1861 = vpack.c.b16 %v1827, %v1826
        %v1862 = vpack.c.b16 %v1829, %v1828
        %v1863 = vpack.c.b16 %v1831, %v1830
        %v1864 = vpack.c.b16 %v1833, %v1832
        %v1865 = vpack.c.b16 %v1835, %v1834
        %v1866 = vpack.c.b16 %v1837, %v1836
        %v1867 = vpack.c.b16 %v1839, %v1838
        %v1868 = vpack.c.b16 %v1841, %v1840
        %v1870 = vsel %vm903, %v1842, 0
        %v1873 = vsel %vm903, %v1843, 0
        %v1876 = vsel %vm903, %v1844, 0
        %v1879 = vsel %vm903, %v1845, 0
        %v1882 = vsel %vm903, %v1846, 0
        %v1885 = vsel %vm903, %v1847, 0
        %v1888 = vsel %vm903, %v1848, 0
        %v1891 = vsel %vm903, %v1849, 0
        %v1894 = vsel %vm903, %v1850, 0
        %v1897 = vsel %vm903, %v1851, 0
        %v1900 = vsel %vm903, %v1852, 0
        %v1903 = vsel %vm903, %v1853, 0
        %v1906 = vsel %vm903, %v1854, 0
        %v1909 = vsel %vm903, %v1855, 0
        %v1912 = vsel %vm903, %v1856, 0
        %v1915 = vsel %vm903, %v1857, 0
        %v1918 = vsel %vm903, %v1858, 0
        %v1921 = vsel %vm903, %v1859, 0
        %v1924 = vsel %vm903, %v1860, 0
        %v1927 = vsel %vm903, %v1861, 0
        %v1930 = vsel %vm903, %v1862, 0
        %v1933 = vsel %vm903, %v1863, 0
        %v1936 = vsel %vm903, %v1864, 0
        %v1939 = vsel %vm903, %v1865, 0
        %v1942 = vsel %vm903, %v1866, 0
        %v1945 = vsel %vm903, %v1867, 0
        %v1948 = vsel %vm903, %v1868, 0
        %v1951 = vsel %vm985, %v1733, 0
        %1953 = vmatpush.bf16.msra.mxu0 0
        %1954 = vmatpush.bf16.msra.mxu0 0
        %1955 = vmatpush.bf16.msra.mxu0 0
        %1956 = vmatpush.bf16.msra.mxu0 0
        %1957 = vmatpush.bf16.msra.mxu0 0
        %1958 = vmatpush.bf16.msra.mxu0 0
        %1959 = vmatpush.bf16.msra.mxu0 0
        %1960 = vmatpush.bf16.msra.mxu0 %v1951
        %1961 = vmatmul.bf16.gmra.mxu0 %v1870
        %v1962 = vpop.f32.mrf.mxu0
        %v1963 = vadd.f32 0.0, %v1962
        %v1964 = vpop.f32.mrf.mxu0
        %v1965 = vadd.f32 0.0, %v1964
        %1966 = vmatmul.bf16.gmra.mxu0 %v1873
        %v1967 = vpop.f32.mrf.mxu0
        %v1968 = vadd.f32 0.0, %v1967
        %v1969 = vpop.f32.mrf.mxu0
        %v1970 = vadd.f32 0.0, %v1969
        %1971 = vmatmul.bf16.gmra.mxu0 %v1876
        %v1972 = vpop.f32.mrf.mxu0
        %v1973 = vadd.f32 0.0, %v1972
        %v1974 = vpop.f32.mrf.mxu0
        %v1975 = vadd.f32 0.0, %v1974
        %1976 = vmatmul.bf16.gmra.mxu0 %v1879
        %v1977 = vpop.f32.mrf.mxu0
        %v1978 = vadd.f32 0.0, %v1977
        %v1979 = vpop.f32.mrf.mxu0
        %v1980 = vadd.f32 0.0, %v1979
        %1981 = vmatmul.bf16.gmra.mxu0 %v1882
        %v1982 = vpop.f32.mrf.mxu0
        %v1983 = vadd.f32 0.0, %v1982
        %v1984 = vpop.f32.mrf.mxu0
        %v1985 = vadd.f32 0.0, %v1984
        %1986 = vmatmul.bf16.gmra.mxu0 %v1885
        %v1987 = vpop.f32.mrf.mxu0
        %v1988 = vadd.f32 0.0, %v1987
        %v1989 = vpop.f32.mrf.mxu0
        %v1990 = vadd.f32 0.0, %v1989
        %1991 = vmatmul.bf16.gmra.mxu0 %v1888
        %v1992 = vpop.f32.mrf.mxu0
        %v1993 = vadd.f32 0.0, %v1992
        %v1994 = vpop.f32.mrf.mxu0
        %v1995 = vadd.f32 0.0, %v1994
        %1996 = vmatmul.bf16.gmra.mxu0 %v1891
        %v1997 = vpop.f32.mrf.mxu0
        %v1998 = vadd.f32 0.0, %v1997
        %v1999 = vpop.f32.mrf.mxu0
        %v2000 = vadd.f32 0.0, %v1999
        %2001 = vmatmul.bf16.gmra.mxu0 %v1894
        %v2002 = vpop.f32.mrf.mxu0
        %v2003 = vadd.f32 0.0, %v2002
        %v2004 = vpop.f32.mrf.mxu0
        %v2005 = vadd.f32 0.0, %v2004
        %2006 = vmatmul.bf16.gmra.mxu0 %v1897
        %v2007 = vpop.f32.mrf.mxu0
        %v2008 = vadd.f32 0.0, %v2007
        %v2009 = vpop.f32.mrf.mxu0
        %v2010 = vadd.f32 0.0, %v2009
        %2011 = vmatmul.bf16.gmra.mxu0 %v1900
        %v2012 = vpop.f32.mrf.mxu0
        %v2013 = vadd.f32 0.0, %v2012
        %v2014 = vpop.f32.mrf.mxu0
        %v2015 = vadd.f32 0.0, %v2014
        %2016 = vmatmul.bf16.gmra.mxu0 %v1903
        %v2017 = vpop.f32.mrf.mxu0
        %v2018 = vadd.f32 0.0, %v2017
        %v2019 = vpop.f32.mrf.mxu0
        %v2020 = vadd.f32 0.0, %v2019
        %2021 = vmatmul.bf16.gmra.mxu0 %v1906
        %v2022 = vpop.f32.mrf.mxu0
        %v2023 = vadd.f32 0.0, %v2022
        %v2024 = vpop.f32.mrf.mxu0
        %v2025 = vadd.f32 0.0, %v2024
        %2026 = vmatmul.bf16.gmra.mxu0 %v1909
        %v2027 = vpop.f32.mrf.mxu0
        %v2028 = vadd.f32 0.0, %v2027
        %v2029 = vpop.f32.mrf.mxu0
        %v2030 = vadd.f32 0.0, %v2029
        %2031 = vmatmul.bf16.gmra.mxu0 %v1912
        %v2032 = vpop.f32.mrf.mxu0
        %v2033 = vadd.f32 0.0, %v2032
        %v2034 = vpop.f32.mrf.mxu0
        %v2035 = vadd.f32 0.0, %v2034
        %2036 = vmatmul.bf16.gmra.mxu0 %v1915
        %v2037 = vpop.f32.mrf.mxu0
        %v2038 = vadd.f32 0.0, %v2037
        %v2039 = vpop.f32.mrf.mxu0
        %v2040 = vadd.f32 0.0, %v2039
        %2041 = vmatmul.bf16.gmra.mxu0 %v1918
        %v2042 = vpop.f32.mrf.mxu0
        %v2043 = vadd.f32 0.0, %v2042
        %v2044 = vpop.f32.mrf.mxu0
        %v2045 = vadd.f32 0.0, %v2044
        %2046 = vmatmul.bf16.gmra.mxu0 %v1921
        %v2047 = vpop.f32.mrf.mxu0
        %v2048 = vadd.f32 0.0, %v2047
        %v2049 = vpop.f32.mrf.mxu0
        %v2050 = vadd.f32 0.0, %v2049
        %2051 = vmatmul.bf16.gmra.mxu0 %v1924
        %v2052 = vpop.f32.mrf.mxu0
        %v2053 = vadd.f32 0.0, %v2052
        %v2054 = vpop.f32.mrf.mxu0
        %v2055 = vadd.f32 0.0, %v2054
        %2056 = vmatmul.bf16.gmra.mxu0 %v1927
        %v2057 = vpop.f32.mrf.mxu0
        %v2058 = vadd.f32 0.0, %v2057
        %v2059 = vpop.f32.mrf.mxu0
        %v2060 = vadd.f32 0.0, %v2059
        %2061 = vmatmul.bf16.gmra.mxu0 %v1930
        %v2062 = vpop.f32.mrf.mxu0
        %v2063 = vadd.f32 0.0, %v2062
        %v2064 = vpop.f32.mrf.mxu0
        %v2065 = vadd.f32 0.0, %v2064
        %2066 = vmatmul.bf16.gmra.mxu0 %v1933
        %v2067 = vpop.f32.mrf.mxu0
        %v2068 = vadd.f32 0.0, %v2067
        %v2069 = vpop.f32.mrf.mxu0
        %v2070 = vadd.f32 0.0, %v2069
        %2071 = vmatmul.bf16.gmra.mxu0 %v1936
        %v2072 = vpop.f32.mrf.mxu0
        %v2073 = vadd.f32 0.0, %v2072
        %v2074 = vpop.f32.mrf.mxu0
        %v2075 = vadd.f32 0.0, %v2074
        %2076 = vmatmul.bf16.gmra.mxu0 %v1939
        %v2077 = vpop.f32.mrf.mxu0
        %v2078 = vadd.f32 0.0, %v2077
        %v2079 = vpop.f32.mrf.mxu0
        %v2080 = vadd.f32 0.0, %v2079
        %2081 = vmatmul.bf16.gmra.mxu0 %v1942
        %v2082 = vpop.f32.mrf.mxu0
        %v2083 = vadd.f32 0.0, %v2082
        %v2084 = vpop.f32.mrf.mxu0
        %v2085 = vadd.f32 0.0, %v2084
        %2086 = vmatmul.bf16.gmra.mxu0 %v1945
        %v2087 = vpop.f32.mrf.mxu0
        %v2088 = vadd.f32 0.0, %v2087
        %v2089 = vpop.f32.mrf.mxu0
        %v2090 = vadd.f32 0.0, %v2089
        %2091 = vmatmul.bf16.gmra.mxu0 %v1948
        %v2092 = vpop.f32.mrf.mxu0
        %v2093 = vadd.f32 0.0, %v2092
        %v2094 = vpop.f32.mrf.mxu0
        %v2095 = vadd.f32 0.0, %v2094
        %2096 = vdwg.mxu0
        %v2097 = vadd.f32 %v1624, %v1963
        %v2098 = vadd.f32 %v1625, %v1965
        %v2099 = vadd.f32 %v1626, %v1968
        %v2100 = vadd.f32 %v1627, %v1970
        %v2101 = vadd.f32 %v1628, %v1973
        %v2102 = vadd.f32 %v1629, %v1975
        %v2103 = vadd.f32 %v1630, %v1978
        %v2104 = vadd.f32 %v1631, %v1980
        %v2105 = vadd.f32 %v1632, %v1983
        %v2106 = vadd.f32 %v1633, %v1985
        %v2107 = vadd.f32 %v1634, %v1988
        %v2108 = vadd.f32 %v1635, %v1990
        %v2109 = vadd.f32 %v1636, %v1993
        %v2110 = vadd.f32 %v1637, %v1995
        %v2111 = vadd.f32 %v1638, %v1998
        %v2112 = vadd.f32 %v1639, %v2000
        %v2113 = vadd.f32 %v1640, %v2003
        %v2114 = vadd.f32 %v1641, %v2005
        %v2115 = vadd.f32 %v1642, %v2008
        %v2116 = vadd.f32 %v1643, %v2010
        %v2117 = vadd.f32 %v1644, %v2013
        %v2118 = vadd.f32 %v1645, %v2015
        %v2119 = vadd.f32 %v1646, %v2018
        %v2120 = vadd.f32 %v1647, %v2020
        %v2121 = vadd.f32 %v1648, %v2023
        %v2122 = vadd.f32 %v1649, %v2025
        %v2123 = vadd.f32 %v1650, %v2028
        %v2124 = vadd.f32 %v1651, %v2030
        %v2125 = vadd.f32 %v1652, %v2033
        %v2126 = vadd.f32 %v1653, %v2035
        %v2127 = vadd.f32 %v1654, %v2038
        %v2128 = vadd.f32 %v1655, %v2040
        %v2129 = vadd.f32 %v1656, %v2043
        %v2130 = vadd.f32 %v1657, %v2045
        %v2131 = vadd.f32 %v1658, %v2048
        %v2132 = vadd.f32 %v1659, %v2050
        %v2133 = vadd.f32 %v1660, %v2053
        %v2134 = vadd.f32 %v1661, %v2055
        %v2135 = vadd.f32 %v1662, %v2058
        %v2136 = vadd.f32 %v1663, %v2060
        %v2137 = vadd.f32 %v1664, %v2063
        %v2138 = vadd.f32 %v1665, %v2065
        %v2139 = vadd.f32 %v1666, %v2068
        %v2140 = vadd.f32 %v1667, %v2070
        %v2141 = vadd.f32 %v1668, %v2073
        %v2142 = vadd.f32 %v1669, %v2075
        %v2143 = vadd.f32 %v1670, %v2078
        %v2144 = vadd.f32 %v1671, %v2080
        %v2145 = vadd.f32 %v1672, %v2083
        %v2146 = vadd.f32 %v1673, %v2085
        %v2147 = vadd.f32 %v1674, %v2088
        %v2148 = vadd.f32 %v1675, %v2090
        %v2149 = vadd.f32 %v1676, %v2093
        %v2150 = vadd.f32 %v1677, %v2095
        %v2151 = vld [vmem:[#allocation2 + $0xc] sm:$0xf]
        %v2152 = vld [vmem:[#allocation2 + $0x10] sm:$0xf]
        %v2153 = vld [vmem:[#allocation2 + $0x14] sm:$0xf]
        %v2154 = vld [vmem:[#allocation2 + $0x18] sm:$0xf]
        %v2155 = vld [vmem:[#allocation2 + $0x1c] sm:$0xf]
        %v2156 = vld [vmem:[#allocation2 + $0x20] sm:$0xf]
        %v2157 = vld [vmem:[#allocation2 + $0x24] sm:$0xf]
        %v2158 = vld [vmem:[#allocation2 + $0x28] sm:$0xf]
        %v2159 = vld [vmem:[#allocation2 + $0x2c] sm:$0xf]
        %v2160 = vld [vmem:[#allocation2 + $0x30] sm:$0xf]
        %v2161 = vld [vmem:[#allocation2 + $0x34] sm:$0xf]
        %v2162 = vld [vmem:[#allocation2 + $0x38] sm:$0xf]
        %v2163 = vld [vmem:[#allocation2 + $0x3c] sm:$0xf]
        %v2164 = vld [vmem:[#allocation2 + $0x40] sm:$0xf]
        %v2165 = vld [vmem:[#allocation2 + $0x44] sm:$0xf]
        %v2166 = vld [vmem:[#allocation2 + $0x48] sm:$0xf]
        %v2167 = vld [vmem:[#allocation2 + $0x4c] sm:$0xf]
        %v2168 = vld [vmem:[#allocation2 + $0x50] sm:$0xf]
        %v2169 = vld [vmem:[#allocation2 + $0x54] sm:$0xf]
        %v2170 = vld [vmem:[#allocation2 + $0x58] sm:$0xf]
        %v2171 = vld [vmem:[#allocation2 + $0x5c] sm:$0xf]
        %v2172 = vld [vmem:[#allocation2 + $0x60] sm:$0xf]
        %v2173 = vld [vmem:[#allocation2 + $0x64] sm:$0xf]
        %v2174 = vld [vmem:[#allocation2 + $0x68] sm:$0xf]
        %v2175 = vld [vmem:[#allocation2 + $0x6c] sm:$0xf]
        %v2176 = vld [vmem:[#allocation2 + $0x70] sm:$0xf]
        %v2177 = vld [vmem:[#allocation2 + $0x74] sm:$0xf]
        %v2178 = vld [vmem:[#allocation2 + $0x78] sm:$0xf]
        %v2179 = vld [vmem:[#allocation2 + $0x7c] sm:$0xf]
        %v2180 = vld [vmem:[#allocation2 + $0x80] sm:$0xf]
        %v2181 = vld [vmem:[#allocation2 + $0x84] sm:$0xf]
        %v2182 = vld [vmem:[#allocation2 + $0x88] sm:$0xf]
        %v2183 = vld [vmem:[#allocation2 + $0x8c] sm:$0xf]
        %v2184 = vld [vmem:[#allocation2 + $0x90] sm:$0xf]
        %v2185 = vld [vmem:[#allocation2 + $0x94] sm:$0xf]
        %v2186 = vld [vmem:[#allocation2 + $0x98] sm:$0xf]
        %v2187 = vld [vmem:[#allocation2 + $0x9c] sm:$0xf]
        %v2188 = vld [vmem:[#allocation2 + $0xa0] sm:$0xf]
        %v2189 = vld [vmem:[#allocation2 + $0xa4] sm:$0xf]
        %v2190 = vld [vmem:[#allocation2 + $0xa8] sm:$0xf]
        %v2191 = vld [vmem:[#allocation2 + $0xac] sm:$0xf]
        %v2192 = vld [vmem:[#allocation2 + $0xb0] sm:$0xf]
        %v2193 = vld [vmem:[#allocation2 + $0xb4] sm:$0xf]
        %v2194 = vld [vmem:[#allocation2 + $0xb8] sm:$0xf]
        %v2195 = vld [vmem:[#allocation2 + $0xbc] sm:$0xf]
        %v2196 = vld [vmem:[#allocation2 + $0xc0] sm:$0xf]
        %v2197 = vld [vmem:[#allocation2 + $0xc4] sm:$0xf]
        %v2198 = vld [vmem:[#allocation2 + $0xc8] sm:$0xf]
        %v2199 = vld [vmem:[#allocation2 + $0xcc] sm:$0xf]
        %v2200 = vld [vmem:[#allocation2 + $0xd0] sm:$0xf]
        %v2201 = vld [vmem:[#allocation2 + $0xd4] sm:$0xf]
        %v2202 = vld [vmem:[#allocation2 + $0xd8] sm:$0xf]
        %v2203 = vld [vmem:[#allocation2 + $0xdc] sm:$0xf]
        %v2204 = vld [vmem:[#allocation2 + $0xe0] sm:$0xf]
        %v2205 = vld [vmem:[#allocation2 + $0xe4] sm:$0x1]
        %s2206 = scalar_lea.vmem %s350, 8
        %v2207 = vld [vmem:[%s2206] sm:$0x3]
        %v2263 = vunpack.c.l.b16 %v2151
        %v2264 = vunpack.c.l.b16 %v2152
        %v2265 = vunpack.c.l.b16 %v2153
        %v2266 = vunpack.c.l.b16 %v2154
        %v2267 = vunpack.c.l.b16 %v2155
        %v2268 = vunpack.c.l.b16 %v2156
        %v2269 = vunpack.c.l.b16 %v2157
        %v2270 = vunpack.c.l.b16 %v2158
        %v2271 = vunpack.c.l.b16 %v2159
        %v2272 = vunpack.c.l.b16 %v2160
        %v2273 = vunpack.c.l.b16 %v2161
        %v2274 = vunpack.c.l.b16 %v2162
        %v2275 = vunpack.c.l.b16 %v2163
        %v2276 = vunpack.c.l.b16 %v2164
        %v2277 = vunpack.c.l.b16 %v2165
        %v2278 = vunpack.c.l.b16 %v2166
        %v2279 = vunpack.c.l.b16 %v2167
        %v2280 = vunpack.c.l.b16 %v2168
        %v2281 = vunpack.c.l.b16 %v2169
        %v2282 = vunpack.c.l.b16 %v2170
        %v2283 = vunpack.c.l.b16 %v2171
        %v2284 = vunpack.c.l.b16 %v2172
        %v2285 = vunpack.c.l.b16 %v2173
        %v2286 = vunpack.c.l.b16 %v2174
        %v2287 = vunpack.c.l.b16 %v2175
        %v2288 = vunpack.c.l.b16 %v2176
        %v2289 = vunpack.c.l.b16 %v2177
        %v2290 = vunpack.c.l.b16 %v2178
        %v2291 = vunpack.c.l.b16 %v2179
        %v2292 = vunpack.c.l.b16 %v2180
        %v2293 = vunpack.c.l.b16 %v2181
        %v2294 = vunpack.c.l.b16 %v2182
        %v2295 = vunpack.c.l.b16 %v2183
        %v2296 = vunpack.c.l.b16 %v2184
        %v2297 = vunpack.c.l.b16 %v2185
        %v2298 = vunpack.c.l.b16 %v2186
        %v2299 = vunpack.c.l.b16 %v2187
        %v2300 = vunpack.c.l.b16 %v2188
        %v2301 = vunpack.c.l.b16 %v2189
        %v2302 = vunpack.c.l.b16 %v2190
        %v2303 = vunpack.c.l.b16 %v2191
        %v2304 = vunpack.c.l.b16 %v2192
        %v2305 = vunpack.c.l.b16 %v2193
        %v2306 = vunpack.c.l.b16 %v2194
        %v2307 = vunpack.c.l.b16 %v2195
        %v2308 = vunpack.c.l.b16 %v2196
        %v2309 = vunpack.c.l.b16 %v2197
        %v2310 = vunpack.c.l.b16 %v2198
        %v2311 = vunpack.c.l.b16 %v2199
        %v2312 = vunpack.c.l.b16 %v2200
        %v2313 = vunpack.c.l.b16 %v2201
        %v2314 = vunpack.c.l.b16 %v2202
        %v2315 = vunpack.c.l.b16 %v2203
        %v2316 = vunpack.c.l.b16 %v2204
        %v2317 = vunpack.c.l.b16 %v2205
        %v2318 = vpack.c.b16 %v2264, %v2263
        %v2319 = vpack.c.b16 %v2266, %v2265
        %v2320 = vpack.c.b16 %v2268, %v2267
        %v2321 = vpack.c.b16 %v2270, %v2269
        %v2322 = vpack.c.b16 %v2272, %v2271
        %v2323 = vpack.c.b16 %v2274, %v2273
        %v2324 = vpack.c.b16 %v2276, %v2275
        %v2325 = vpack.c.b16 %v2278, %v2277
        %v2326 = vpack.c.b16 %v2280, %v2279
        %v2327 = vpack.c.b16 %v2282, %v2281
        %v2328 = vpack.c.b16 %v2284, %v2283
        %v2329 = vpack.c.b16 %v2286, %v2285
        %v2330 = vpack.c.b16 %v2288, %v2287
        %v2331 = vpack.c.b16 %v2290, %v2289
        %v2332 = vpack.c.b16 %v2292, %v2291
        %v2333 = vpack.c.b16 %v2294, %v2293
        %v2334 = vpack.c.b16 %v2296, %v2295
        %v2335 = vpack.c.b16 %v2298, %v2297
        %v2336 = vpack.c.b16 %v2300, %v2299
        %v2337 = vpack.c.b16 %v2302, %v2301
        %v2338 = vpack.c.b16 %v2304, %v2303
        %v2339 = vpack.c.b16 %v2306, %v2305
        %v2340 = vpack.c.b16 %v2308, %v2307
        %v2341 = vpack.c.b16 %v2310, %v2309
        %v2342 = vpack.c.b16 %v2312, %v2311
        %v2343 = vpack.c.b16 %v2314, %v2313
        %v2344 = vpack.c.b16 %v2316, %v2315
        %v2345 = vpack.c.b16 %v2317, %v2317
        %v2347 = vshrl.u32 %v2318, 16
        %v2349 = vshll.u32 %v2318, 16
        %v2351 = vrot.slane %v2349, 1
        %v2352 = vor.u32 %v2347, %v2351
        %v2354 = vshll.u32 %v2319, 16
        %v2356 = vrot.slane %v2354, 1
        %v2357 = vsel %vm682, %v2352, %v2356
        %v2358 = vshrl.u32 %v2319, 16
        %v2360 = vor.u32 %v2358, %v2356
        %v2362 = vshll.u32 %v2320, 16
        %v2364 = vrot.slane %v2362, 1
        %v2365 = vsel %vm682, %v2360, %v2364
        %v2366 = vshrl.u32 %v2320, 16
        %v2368 = vor.u32 %v2366, %v2364
        %v2370 = vshll.u32 %v2321, 16
        %v2372 = vrot.slane %v2370, 1
        %v2373 = vsel %vm682, %v2368, %v2372
        %v2374 = vshrl.u32 %v2321, 16
        %v2376 = vor.u32 %v2374, %v2372
        %v2378 = vshll.u32 %v2322, 16
        %v2380 = vrot.slane %v2378, 1
        %v2381 = vsel %vm682, %v2376, %v2380
        %v2382 = vshrl.u32 %v2322, 16
        %v2384 = vor.u32 %v2382, %v2380
        %v2386 = vshll.u32 %v2323, 16
        %v2388 = vrot.slane %v2386, 1
        %v2389 = vsel %vm682, %v2384, %v2388
        %v2390 = vshrl.u32 %v2323, 16
        %v2392 = vor.u32 %v2390, %v2388
        %v2394 = vshll.u32 %v2324, 16
        %v2396 = vrot.slane %v2394, 1
        %v2397 = vsel %vm682, %v2392, %v2396
        %v2398 = vshrl.u32 %v2324, 16
        %v2400 = vor.u32 %v2398, %v2396
        %v2402 = vshll.u32 %v2325, 16
        %v2404 = vrot.slane %v2402, 1
        %v2405 = vsel %vm682, %v2400, %v2404
        %v2406 = vshrl.u32 %v2325, 16
        %v2408 = vor.u32 %v2406, %v2404
        %v2410 = vshll.u32 %v2326, 16
        %v2412 = vrot.slane %v2410, 1
        %v2413 = vsel %vm682, %v2408, %v2412
        %v2414 = vshrl.u32 %v2326, 16
        %v2416 = vor.u32 %v2414, %v2412
        %v2418 = vshll.u32 %v2327, 16
        %v2420 = vrot.slane %v2418, 1
        %v2421 = vsel %vm682, %v2416, %v2420
        %v2422 = vshrl.u32 %v2327, 16
        %v2424 = vor.u32 %v2422, %v2420
        %v2426 = vshll.u32 %v2328, 16
        %v2428 = vrot.slane %v2426, 1
        %v2429 = vsel %vm682, %v2424, %v2428
        %v2430 = vshrl.u32 %v2328, 16
        %v2432 = vor.u32 %v2430, %v2428
        %v2434 = vshll.u32 %v2329, 16
        %v2436 = vrot.slane %v2434, 1
        %v2437 = vsel %vm682, %v2432, %v2436
        %v2438 = vshrl.u32 %v2329, 16
        %v2440 = vor.u32 %v2438, %v2436
        %v2442 = vshll.u32 %v2330, 16
        %v2444 = vrot.slane %v2442, 1
        %v2445 = vsel %vm682, %v2440, %v2444
        %v2446 = vshrl.u32 %v2330, 16
        %v2448 = vor.u32 %v2446, %v2444
        %v2450 = vshll.u32 %v2331, 16
        %v2452 = vrot.slane %v2450, 1
        %v2453 = vsel %vm682, %v2448, %v2452
        %v2454 = vshrl.u32 %v2331, 16
        %v2456 = vor.u32 %v2454, %v2452
        %v2458 = vshll.u32 %v2332, 16
        %v2460 = vrot.slane %v2458, 1
        %v2461 = vsel %vm682, %v2456, %v2460
        %v2462 = vshrl.u32 %v2332, 16
        %v2464 = vor.u32 %v2462, %v2460
        %v2466 = vshll.u32 %v2333, 16
        %v2468 = vrot.slane %v2466, 1
        %v2469 = vsel %vm682, %v2464, %v2468
        %v2470 = vshrl.u32 %v2333, 16
        %v2472 = vor.u32 %v2470, %v2468
        %v2474 = vshll.u32 %v2334, 16
        %v2476 = vrot.slane %v2474, 1
        %v2477 = vsel %vm682, %v2472, %v2476
        %v2478 = vshrl.u32 %v2334, 16
        %v2480 = vor.u32 %v2478, %v2476
        %v2482 = vshll.u32 %v2335, 16
        %v2484 = vrot.slane %v2482, 1
        %v2485 = vsel %vm682, %v2480, %v2484
        %v2486 = vshrl.u32 %v2335, 16
        %v2488 = vor.u32 %v2486, %v2484
        %v2490 = vshll.u32 %v2336, 16
        %v2492 = vrot.slane %v2490, 1
        %v2493 = vsel %vm682, %v2488, %v2492
        %v2494 = vshrl.u32 %v2336, 16
        %v2496 = vor.u32 %v2494, %v2492
        %v2498 = vshll.u32 %v2337, 16
        %v2500 = vrot.slane %v2498, 1
        %v2501 = vsel %vm682, %v2496, %v2500
        %v2502 = vshrl.u32 %v2337, 16
        %v2504 = vor.u32 %v2502, %v2500
        %v2506 = vshll.u32 %v2338, 16
        %v2508 = vrot.slane %v2506, 1
        %v2509 = vsel %vm682, %v2504, %v2508
        %v2510 = vshrl.u32 %v2338, 16
        %v2512 = vor.u32 %v2510, %v2508
        %v2514 = vshll.u32 %v2339, 16
        %v2516 = vrot.slane %v2514, 1
        %v2517 = vsel %vm682, %v2512, %v2516
        %v2518 = vshrl.u32 %v2339, 16
        %v2520 = vor.u32 %v2518, %v2516
        %v2522 = vshll.u32 %v2340, 16
        %v2524 = vrot.slane %v2522, 1
        %v2525 = vsel %vm682, %v2520, %v2524
        %v2526 = vshrl.u32 %v2340, 16
        %v2528 = vor.u32 %v2526, %v2524
        %v2530 = vshll.u32 %v2341, 16
        %v2532 = vrot.slane %v2530, 1
        %v2533 = vsel %vm682, %v2528, %v2532
        %v2534 = vshrl.u32 %v2341, 16
        %v2536 = vor.u32 %v2534, %v2532
        %v2538 = vshll.u32 %v2342, 16
        %v2540 = vrot.slane %v2538, 1
        %v2541 = vsel %vm682, %v2536, %v2540
        %v2542 = vshrl.u32 %v2342, 16
        %v2544 = vor.u32 %v2542, %v2540
        %v2546 = vshll.u32 %v2343, 16
        %v2548 = vrot.slane %v2546, 1
        %v2549 = vsel %vm682, %v2544, %v2548
        %v2550 = vshrl.u32 %v2343, 16
        %v2552 = vor.u32 %v2550, %v2548
        %v2554 = vshll.u32 %v2344, 16
        %v2556 = vrot.slane %v2554, 1
        %v2557 = vsel %vm682, %v2552, %v2556
        %v2558 = vshrl.u32 %v2344, 16
        %v2560 = vor.u32 %v2558, %v2556
        %v2562 = vshll.u32 %v2345, 16
        %v2564 = vrot.slane %v2562, 1
        %v2565 = vsel %vm682, %v2560, %v2564
        %v2567 = vsel %vm903, %v2357, 0
        %v2570 = vsel %vm903, %v2365, 0
        %v2573 = vsel %vm903, %v2373, 0
        %v2576 = vsel %vm903, %v2381, 0
        %v2579 = vsel %vm903, %v2389, 0
        %v2582 = vsel %vm903, %v2397, 0
        %v2585 = vsel %vm903, %v2405, 0
        %v2588 = vsel %vm903, %v2413, 0
        %v2591 = vsel %vm903, %v2421, 0
        %v2594 = vsel %vm903, %v2429, 0
        %v2597 = vsel %vm903, %v2437, 0
        %v2600 = vsel %vm903, %v2445, 0
        %v2603 = vsel %vm903, %v2453, 0
        %v2606 = vsel %vm903, %v2461, 0
        %v2609 = vsel %vm903, %v2469, 0
        %v2612 = vsel %vm903, %v2477, 0
        %v2615 = vsel %vm903, %v2485, 0
        %v2618 = vsel %vm903, %v2493, 0
        %v2621 = vsel %vm903, %v2501, 0
        %v2624 = vsel %vm903, %v2509, 0
        %v2627 = vsel %vm903, %v2517, 0
        %v2630 = vsel %vm903, %v2525, 0
        %v2633 = vsel %vm903, %v2533, 0
        %v2636 = vsel %vm903, %v2541, 0
        %v2639 = vsel %vm903, %v2549, 0
        %v2642 = vsel %vm903, %v2557, 0
        %v2645 = vsel %vm903, %v2565, 0
        %v2648 = vsel %vm985, %v2207, 0
        %2650 = vmatpush.bf16.msra.mxu0 0
        %2651 = vmatpush.bf16.msra.mxu0 0
        %2652 = vmatpush.bf16.msra.mxu0 0
        %2653 = vmatpush.bf16.msra.mxu0 0
        %2654 = vmatpush.bf16.msra.mxu0 0
        %2655 = vmatpush.bf16.msra.mxu0 0
        %2656 = vmatpush.bf16.msra.mxu0 0
        %2657 = vmatpush.bf16.msra.mxu0 %v2648
        %2658 = vmatmul.bf16.gmra.mxu0 %v2567
        %v2659 = vpop.f32.mrf.mxu0
        %v2660 = vadd.f32 0.0, %v2659
        %v2661 = vpop.f32.mrf.mxu0
        %v2662 = vadd.f32 0.0, %v2661
        %2663 = vmatmul.bf16.gmra.mxu0 %v2570
        %v2664 = vpop.f32.mrf.mxu0
        %v2665 = vadd.f32 0.0, %v2664
        %v2666 = vpop.f32.mrf.mxu0
        %v2667 = vadd.f32 0.0, %v2666
        %2668 = vmatmul.bf16.gmra.mxu0 %v2573
        %v2669 = vpop.f32.mrf.mxu0
        %v2670 = vadd.f32 0.0, %v2669
        %v2671 = vpop.f32.mrf.mxu0
        %v2672 = vadd.f32 0.0, %v2671
        %2673 = vmatmul.bf16.gmra.mxu0 %v2576
        %v2674 = vpop.f32.mrf.mxu0
        %v2675 = vadd.f32 0.0, %v2674
        %v2676 = vpop.f32.mrf.mxu0
        %v2677 = vadd.f32 0.0, %v2676
        %2678 = vmatmul.bf16.gmra.mxu0 %v2579
        %v2679 = vpop.f32.mrf.mxu0
        %v2680 = vadd.f32 0.0, %v2679
        %v2681 = vpop.f32.mrf.mxu0
        %v2682 = vadd.f32 0.0, %v2681
        %2683 = vmatmul.bf16.gmra.mxu0 %v2582
        %v2684 = vpop.f32.mrf.mxu0
        %v2685 = vadd.f32 0.0, %v2684
        %v2686 = vpop.f32.mrf.mxu0
        %v2687 = vadd.f32 0.0, %v2686
        %2688 = vmatmul.bf16.gmra.mxu0 %v2585
        %v2689 = vpop.f32.mrf.mxu0
        %v2690 = vadd.f32 0.0, %v2689
        %v2691 = vpop.f32.mrf.mxu0
        %v2692 = vadd.f32 0.0, %v2691
        %2693 = vmatmul.bf16.gmra.mxu0 %v2588
        %v2694 = vpop.f32.mrf.mxu0
        %v2695 = vadd.f32 0.0, %v2694
        %v2696 = vpop.f32.mrf.mxu0
        %v2697 = vadd.f32 0.0, %v2696
        %2698 = vmatmul.bf16.gmra.mxu0 %v2591
        %v2699 = vpop.f32.mrf.mxu0
        %v2700 = vadd.f32 0.0, %v2699
        %v2701 = vpop.f32.mrf.mxu0
        %v2702 = vadd.f32 0.0, %v2701
        %2703 = vmatmul.bf16.gmra.mxu0 %v2594
        %v2704 = vpop.f32.mrf.mxu0
        %v2705 = vadd.f32 0.0, %v2704
        %v2706 = vpop.f32.mrf.mxu0
        %v2707 = vadd.f32 0.0, %v2706
        %2708 = vmatmul.bf16.gmra.mxu0 %v2597
        %v2709 = vpop.f32.mrf.mxu0
        %v2710 = vadd.f32 0.0, %v2709
        %v2711 = vpop.f32.mrf.mxu0
        %v2712 = vadd.f32 0.0, %v2711
        %2713 = vmatmul.bf16.gmra.mxu0 %v2600
        %v2714 = vpop.f32.mrf.mxu0
        %v2715 = vadd.f32 0.0, %v2714
        %v2716 = vpop.f32.mrf.mxu0
        %v2717 = vadd.f32 0.0, %v2716
        %2718 = vmatmul.bf16.gmra.mxu0 %v2603
        %v2719 = vpop.f32.mrf.mxu0
        %v2720 = vadd.f32 0.0, %v2719
        %v2721 = vpop.f32.mrf.mxu0
        %v2722 = vadd.f32 0.0, %v2721
        %2723 = vmatmul.bf16.gmra.mxu0 %v2606
        %v2724 = vpop.f32.mrf.mxu0
        %v2725 = vadd.f32 0.0, %v2724
        %v2726 = vpop.f32.mrf.mxu0
        %v2727 = vadd.f32 0.0, %v2726
        %2728 = vmatmul.bf16.gmra.mxu0 %v2609
        %v2729 = vpop.f32.mrf.mxu0
        %v2730 = vadd.f32 0.0, %v2729
        %v2731 = vpop.f32.mrf.mxu0
        %v2732 = vadd.f32 0.0, %v2731
        %2733 = vmatmul.bf16.gmra.mxu0 %v2612
        %v2734 = vpop.f32.mrf.mxu0
        %v2735 = vadd.f32 0.0, %v2734
        %v2736 = vpop.f32.mrf.mxu0
        %v2737 = vadd.f32 0.0, %v2736
        %2738 = vmatmul.bf16.gmra.mxu0 %v2615
        %v2739 = vpop.f32.mrf.mxu0
        %v2740 = vadd.f32 0.0, %v2739
        %v2741 = vpop.f32.mrf.mxu0
        %v2742 = vadd.f32 0.0, %v2741
        %2743 = vmatmul.bf16.gmra.mxu0 %v2618
        %v2744 = vpop.f32.mrf.mxu0
        %v2745 = vadd.f32 0.0, %v2744
        %v2746 = vpop.f32.mrf.mxu0
        %v2747 = vadd.f32 0.0, %v2746
        %2748 = vmatmul.bf16.gmra.mxu0 %v2621
        %v2749 = vpop.f32.mrf.mxu0
        %v2750 = vadd.f32 0.0, %v2749
        %v2751 = vpop.f32.mrf.mxu0
        %v2752 = vadd.f32 0.0, %v2751
        %2753 = vmatmul.bf16.gmra.mxu0 %v2624
        %v2754 = vpop.f32.mrf.mxu0
        %v2755 = vadd.f32 0.0, %v2754
        %v2756 = vpop.f32.mrf.mxu0
        %v2757 = vadd.f32 0.0, %v2756
        %2758 = vmatmul.bf16.gmra.mxu0 %v2627
        %v2759 = vpop.f32.mrf.mxu0
        %v2760 = vadd.f32 0.0, %v2759
        %v2761 = vpop.f32.mrf.mxu0
        %v2762 = vadd.f32 0.0, %v2761
        %2763 = vmatmul.bf16.gmra.mxu0 %v2630
        %v2764 = vpop.f32.mrf.mxu0
        %v2765 = vadd.f32 0.0, %v2764
        %v2766 = vpop.f32.mrf.mxu0
        %v2767 = vadd.f32 0.0, %v2766
        %2768 = vmatmul.bf16.gmra.mxu0 %v2633
        %v2769 = vpop.f32.mrf.mxu0
        %v2770 = vadd.f32 0.0, %v2769
        %v2771 = vpop.f32.mrf.mxu0
        %v2772 = vadd.f32 0.0, %v2771
        %2773 = vmatmul.bf16.gmra.mxu0 %v2636
        %v2774 = vpop.f32.mrf.mxu0
        %v2775 = vadd.f32 0.0, %v2774
        %v2776 = vpop.f32.mrf.mxu0
        %v2777 = vadd.f32 0.0, %v2776
        %2778 = vmatmul.bf16.gmra.mxu0 %v2639
        %v2779 = vpop.f32.mrf.mxu0
        %v2780 = vadd.f32 0.0, %v2779
        %v2781 = vpop.f32.mrf.mxu0
        %v2782 = vadd.f32 0.0, %v2781
        %2783 = vmatmul.bf16.gmra.mxu0 %v2642
        %v2784 = vpop.f32.mrf.mxu0
        %v2785 = vadd.f32 0.0, %v2784
        %v2786 = vpop.f32.mrf.mxu0
        %v2787 = vadd.f32 0.0, %v2786
        %2788 = vmatmul.bf16.gmra.mxu0 %v2645
        %v2789 = vpop.f32.mrf.mxu0
        %v2790 = vadd.f32 0.0, %v2789
        %v2791 = vpop.f32.mrf.mxu0
        %v2792 = vadd.f32 0.0, %v2791
        %2793 = vdwg.mxu0
        %v2794 = vadd.f32 %v2097, %v2660
        %v2795 = vadd.f32 %v2098, %v2662
        %v2796 = vadd.f32 %v2099, %v2665
        %v2797 = vadd.f32 %v2100, %v2667
        %v2798 = vadd.f32 %v2101, %v2670
        %v2799 = vadd.f32 %v2102, %v2672
        %v2800 = vadd.f32 %v2103, %v2675
        %v2801 = vadd.f32 %v2104, %v2677
        %v2802 = vadd.f32 %v2105, %v2680
        %v2803 = vadd.f32 %v2106, %v2682
        %v2804 = vadd.f32 %v2107, %v2685
        %v2805 = vadd.f32 %v2108, %v2687
        %v2806 = vadd.f32 %v2109, %v2690
        %v2807 = vadd.f32 %v2110, %v2692
        %v2808 = vadd.f32 %v2111, %v2695
        %v2809 = vadd.f32 %v2112, %v2697
        %v2810 = vadd.f32 %v2113, %v2700
        %v2811 = vadd.f32 %v2114, %v2702
        %v2812 = vadd.f32 %v2115, %v2705
        %v2813 = vadd.f32 %v2116, %v2707
        %v2814 = vadd.f32 %v2117, %v2710
        %v2815 = vadd.f32 %v2118, %v2712
        %v2816 = vadd.f32 %v2119, %v2715
        %v2817 = vadd.f32 %v2120, %v2717
        %v2818 = vadd.f32 %v2121, %v2720
        %v2819 = vadd.f32 %v2122, %v2722
        %v2820 = vadd.f32 %v2123, %v2725
        %v2821 = vadd.f32 %v2124, %v2727
        %v2822 = vadd.f32 %v2125, %v2730
        %v2823 = vadd.f32 %v2126, %v2732
        %v2824 = vadd.f32 %v2127, %v2735
        %v2825 = vadd.f32 %v2128, %v2737
        %v2826 = vadd.f32 %v2129, %v2740
        %v2827 = vadd.f32 %v2130, %v2742
        %v2828 = vadd.f32 %v2131, %v2745
        %v2829 = vadd.f32 %v2132, %v2747
        %v2830 = vadd.f32 %v2133, %v2750
        %v2831 = vadd.f32 %v2134, %v2752
        %v2832 = vadd.f32 %v2135, %v2755
        %v2833 = vadd.f32 %v2136, %v2757
        %v2834 = vadd.f32 %v2137, %v2760
        %v2835 = vadd.f32 %v2138, %v2762
        %v2836 = vadd.f32 %v2139, %v2765
        %v2837 = vadd.f32 %v2140, %v2767
        %v2838 = vadd.f32 %v2141, %v2770
        %v2839 = vadd.f32 %v2142, %v2772
        %v2840 = vadd.f32 %v2143, %v2775
        %v2841 = vadd.f32 %v2144, %v2777
        %v2842 = vadd.f32 %v2145, %v2780
        %v2843 = vadd.f32 %v2146, %v2782
        %v2844 = vadd.f32 %v2147, %v2785
        %v2845 = vadd.f32 %v2148, %v2787
        %v2846 = vadd.f32 %v2149, %v2790
        %v2847 = vadd.f32 %v2150, %v2792
        %v2848 = vld [vmem:[#allocation2 + $0xc] sm:$0xe]
        %s2849 = scalar_lea.vmem %s350, 10
        %v2850 = vld [vmem:[%s2849] sm:$0x3]
        %v2852 = vunpack.c.l.b16 %v2848
        %v2853 = vpack.c.b16 %v2264, %v2852
        %v2854 = vrot.slane %v2853, 1
        %v2855 = vrot.slane %v2319, 1
        %v2856 = vsel %vm1340, %v2854, %v2855
        %v2857 = vrot.slane %v2320, 1
        %v2858 = vsel %vm1340, %v2855, %v2857
        %v2859 = vrot.slane %v2321, 1
        %v2860 = vsel %vm1340, %v2857, %v2859
        %v2861 = vrot.slane %v2322, 1
        %v2862 = vsel %vm1340, %v2859, %v2861
        %v2863 = vrot.slane %v2323, 1
        %v2864 = vsel %vm1340, %v2861, %v2863
        %v2865 = vrot.slane %v2324, 1
        %v2866 = vsel %vm1340, %v2863, %v2865
        %v2867 = vrot.slane %v2325, 1
        %v2868 = vsel %vm1340, %v2865, %v2867
        %v2869 = vrot.slane %v2326, 1
        %v2870 = vsel %vm1340, %v2867, %v2869
        %v2871 = vrot.slane %v2327, 1
        %v2872 = vsel %vm1340, %v2869, %v2871
        %v2873 = vrot.slane %v2328, 1
        %v2874 = vsel %vm1340, %v2871, %v2873
        %v2875 = vrot.slane %v2329, 1
        %v2876 = vsel %vm1340, %v2873, %v2875
        %v2877 = vrot.slane %v2330, 1
        %v2878 = vsel %vm1340, %v2875, %v2877
        %v2879 = vrot.slane %v2331, 1
        %v2880 = vsel %vm1340, %v2877, %v2879
        %v2881 = vrot.slane %v2332, 1
        %v2882 = vsel %vm1340, %v2879, %v2881
        %v2883 = vrot.slane %v2333, 1
        %v2884 = vsel %vm1340, %v2881, %v2883
        %v2885 = vrot.slane %v2334, 1
        %v2886 = vsel %vm1340, %v2883, %v2885
        %v2887 = vrot.slane %v2335, 1
        %v2888 = vsel %vm1340, %v2885, %v2887
        %v2889 = vrot.slane %v2336, 1
        %v2890 = vsel %vm1340, %v2887, %v2889
        %v2891 = vrot.slane %v2337, 1
        %v2892 = vsel %vm1340, %v2889, %v2891
        %v2893 = vrot.slane %v2338, 1
        %v2894 = vsel %vm1340, %v2891, %v2893
        %v2895 = vrot.slane %v2339, 1
        %v2896 = vsel %vm1340, %v2893, %v2895
        %v2897 = vrot.slane %v2340, 1
        %v2898 = vsel %vm1340, %v2895, %v2897
        %v2899 = vrot.slane %v2341, 1
        %v2900 = vsel %vm1340, %v2897, %v2899
        %v2901 = vrot.slane %v2342, 1
        %v2902 = vsel %vm1340, %v2899, %v2901
        %v2903 = vrot.slane %v2343, 1
        %v2904 = vsel %vm1340, %v2901, %v2903
        %v2905 = vrot.slane %v2344, 1
        %v2906 = vsel %vm1340, %v2903, %v2905
        %v2907 = vrot.slane %v2345, 1
        %v2908 = vsel %vm1340, %v2905, %v2907
        %v2910 = vsel %vm903, %v2856, 0
        %v2913 = vsel %vm903, %v2858, 0
        %v2916 = vsel %vm903, %v2860, 0
        %v2919 = vsel %vm903, %v2862, 0
        %v2922 = vsel %vm903, %v2864, 0
        %v2925 = vsel %vm903, %v2866, 0
        %v2928 = vsel %vm903, %v2868, 0
        %v2931 = vsel %vm903, %v2870, 0
        %v2934 = vsel %vm903, %v2872, 0
        %v2937 = vsel %vm903, %v2874, 0
        %v2940 = vsel %vm903, %v2876, 0
        %v2943 = vsel %vm903, %v2878, 0
        %v2946 = vsel %vm903, %v2880, 0
        %v2949 = vsel %vm903, %v2882, 0
        %v2952 = vsel %vm903, %v2884, 0
        %v2955 = vsel %vm903, %v2886, 0
        %v2958 = vsel %vm903, %v2888, 0
        %v2961 = vsel %vm903, %v2890, 0
        %v2964 = vsel %vm903, %v2892, 0
        %v2967 = vsel %vm903, %v2894, 0
        %v2970 = vsel %vm903, %v2896, 0
        %v2973 = vsel %vm903, %v2898, 0
        %v2976 = vsel %vm903, %v2900, 0
        %v2979 = vsel %vm903, %v2902, 0
        %v2982 = vsel %vm903, %v2904, 0
        %v2985 = vsel %vm903, %v2906, 0
        %v2988 = vsel %vm903, %v2908, 0
        %v2991 = vsel %vm985, %v2850, 0
        %2993 = vmatpush.bf16.msra.mxu0 0
        %2994 = vmatpush.bf16.msra.mxu0 0
        %2995 = vmatpush.bf16.msra.mxu0 0
        %2996 = vmatpush.bf16.msra.mxu0 0
        %2997 = vmatpush.bf16.msra.mxu0 0
        %2998 = vmatpush.bf16.msra.mxu0 0
        %2999 = vmatpush.bf16.msra.mxu0 0
        %3000 = vmatpush.bf16.msra.mxu0 %v2991
        %3001 = vmatmul.bf16.gmra.mxu0 %v2910
        %v3002 = vpop.f32.mrf.mxu0
        %v3003 = vadd.f32 0.0, %v3002
        %v3004 = vpop.f32.mrf.mxu0
        %v3005 = vadd.f32 0.0, %v3004
        %3006 = vmatmul.bf16.gmra.mxu0 %v2913
        %v3007 = vpop.f32.mrf.mxu0
        %v3008 = vadd.f32 0.0, %v3007
        %v3009 = vpop.f32.mrf.mxu0
        %v3010 = vadd.f32 0.0, %v3009
        %3011 = vmatmul.bf16.gmra.mxu0 %v2916
        %v3012 = vpop.f32.mrf.mxu0
        %v3013 = vadd.f32 0.0, %v3012
        %v3014 = vpop.f32.mrf.mxu0
        %v3015 = vadd.f32 0.0, %v3014
        %3016 = vmatmul.bf16.gmra.mxu0 %v2919
        %v3017 = vpop.f32.mrf.mxu0
        %v3018 = vadd.f32 0.0, %v3017
        %v3019 = vpop.f32.mrf.mxu0
        %v3020 = vadd.f32 0.0, %v3019
        %3021 = vmatmul.bf16.gmra.mxu0 %v2922
        %v3022 = vpop.f32.mrf.mxu0
        %v3023 = vadd.f32 0.0, %v3022
        %v3024 = vpop.f32.mrf.mxu0
        %v3025 = vadd.f32 0.0, %v3024
        %3026 = vmatmul.bf16.gmra.mxu0 %v2925
        %v3027 = vpop.f32.mrf.mxu0
        %v3028 = vadd.f32 0.0, %v3027
        %v3029 = vpop.f32.mrf.mxu0
        %v3030 = vadd.f32 0.0, %v3029
        %3031 = vmatmul.bf16.gmra.mxu0 %v2928
        %v3032 = vpop.f32.mrf.mxu0
        %v3033 = vadd.f32 0.0, %v3032
        %v3034 = vpop.f32.mrf.mxu0
        %v3035 = vadd.f32 0.0, %v3034
        %3036 = vmatmul.bf16.gmra.mxu0 %v2931
        %v3037 = vpop.f32.mrf.mxu0
        %v3038 = vadd.f32 0.0, %v3037
        %v3039 = vpop.f32.mrf.mxu0
        %v3040 = vadd.f32 0.0, %v3039
        %3041 = vmatmul.bf16.gmra.mxu0 %v2934
        %v3042 = vpop.f32.mrf.mxu0
        %v3043 = vadd.f32 0.0, %v3042
        %v3044 = vpop.f32.mrf.mxu0
        %v3045 = vadd.f32 0.0, %v3044
        %3046 = vmatmul.bf16.gmra.mxu0 %v2937
        %v3047 = vpop.f32.mrf.mxu0
        %v3048 = vadd.f32 0.0, %v3047
        %v3049 = vpop.f32.mrf.mxu0
        %v3050 = vadd.f32 0.0, %v3049
        %3051 = vmatmul.bf16.gmra.mxu0 %v2940
        %v3052 = vpop.f32.mrf.mxu0
        %v3053 = vadd.f32 0.0, %v3052
        %v3054 = vpop.f32.mrf.mxu0
        %v3055 = vadd.f32 0.0, %v3054
        %3056 = vmatmul.bf16.gmra.mxu0 %v2943
        %v3057 = vpop.f32.mrf.mxu0
        %v3058 = vadd.f32 0.0, %v3057
        %v3059 = vpop.f32.mrf.mxu0
        %v3060 = vadd.f32 0.0, %v3059
        %3061 = vmatmul.bf16.gmra.mxu0 %v2946
        %v3062 = vpop.f32.mrf.mxu0
        %v3063 = vadd.f32 0.0, %v3062
        %v3064 = vpop.f32.mrf.mxu0
        %v3065 = vadd.f32 0.0, %v3064
        %3066 = vmatmul.bf16.gmra.mxu0 %v2949
        %v3067 = vpop.f32.mrf.mxu0
        %v3068 = vadd.f32 0.0, %v3067
        %v3069 = vpop.f32.mrf.mxu0
        %v3070 = vadd.f32 0.0, %v3069
        %3071 = vmatmul.bf16.gmra.mxu0 %v2952
        %v3072 = vpop.f32.mrf.mxu0
        %v3073 = vadd.f32 0.0, %v3072
        %v3074 = vpop.f32.mrf.mxu0
        %v3075 = vadd.f32 0.0, %v3074
        %3076 = vmatmul.bf16.gmra.mxu0 %v2955
        %v3077 = vpop.f32.mrf.mxu0
        %v3078 = vadd.f32 0.0, %v3077
        %v3079 = vpop.f32.mrf.mxu0
        %v3080 = vadd.f32 0.0, %v3079
        %3081 = vmatmul.bf16.gmra.mxu0 %v2958
        %v3082 = vpop.f32.mrf.mxu0
        %v3083 = vadd.f32 0.0, %v3082
        %v3084 = vpop.f32.mrf.mxu0
        %v3085 = vadd.f32 0.0, %v3084
        %3086 = vmatmul.bf16.gmra.mxu0 %v2961
        %v3087 = vpop.f32.mrf.mxu0
        %v3088 = vadd.f32 0.0, %v3087
        %v3089 = vpop.f32.mrf.mxu0
        %v3090 = vadd.f32 0.0, %v3089
        %3091 = vmatmul.bf16.gmra.mxu0 %v2964
        %v3092 = vpop.f32.mrf.mxu0
        %v3093 = vadd.f32 0.0, %v3092
        %v3094 = vpop.f32.mrf.mxu0
        %v3095 = vadd.f32 0.0, %v3094
        %3096 = vmatmul.bf16.gmra.mxu0 %v2967
        %v3097 = vpop.f32.mrf.mxu0
        %v3098 = vadd.f32 0.0, %v3097
        %v3099 = vpop.f32.mrf.mxu0
        %v3100 = vadd.f32 0.0, %v3099
        %3101 = vmatmul.bf16.gmra.mxu0 %v2970
        %v3102 = vpop.f32.mrf.mxu0
        %v3103 = vadd.f32 0.0, %v3102
        %v3104 = vpop.f32.mrf.mxu0
        %v3105 = vadd.f32 0.0, %v3104
        %3106 = vmatmul.bf16.gmra.mxu0 %v2973
        %v3107 = vpop.f32.mrf.mxu0
        %v3108 = vadd.f32 0.0, %v3107
        %v3109 = vpop.f32.mrf.mxu0
        %v3110 = vadd.f32 0.0, %v3109
        %3111 = vmatmul.bf16.gmra.mxu0 %v2976
        %v3112 = vpop.f32.mrf.mxu0
        %v3113 = vadd.f32 0.0, %v3112
        %v3114 = vpop.f32.mrf.mxu0
        %v3115 = vadd.f32 0.0, %v3114
        %3116 = vmatmul.bf16.gmra.mxu0 %v2979
        %v3117 = vpop.f32.mrf.mxu0
        %v3118 = vadd.f32 0.0, %v3117
        %v3119 = vpop.f32.mrf.mxu0
        %v3120 = vadd.f32 0.0, %v3119
        %3121 = vmatmul.bf16.gmra.mxu0 %v2982
        %v3122 = vpop.f32.mrf.mxu0
        %v3123 = vadd.f32 0.0, %v3122
        %v3124 = vpop.f32.mrf.mxu0
        %v3125 = vadd.f32 0.0, %v3124
        %3126 = vmatmul.bf16.gmra.mxu0 %v2985
        %v3127 = vpop.f32.mrf.mxu0
        %v3128 = vadd.f32 0.0, %v3127
        %v3129 = vpop.f32.mrf.mxu0
        %v3130 = vadd.f32 0.0, %v3129
        %3131 = vmatmul.bf16.gmra.mxu0 %v2988
        %v3132 = vpop.f32.mrf.mxu0
        %v3133 = vadd.f32 0.0, %v3132
        %v3134 = vpop.f32.mrf.mxu0
        %v3135 = vadd.f32 0.0, %v3134
        %3136 = vdwg.mxu0
        %v3137 = vadd.f32 %v2794, %v3003
        %v3138 = vadd.f32 %v2795, %v3005
        %v3139 = vadd.f32 %v2796, %v3008
        %v3140 = vadd.f32 %v2797, %v3010
        %v3141 = vadd.f32 %v2798, %v3013
        %v3142 = vadd.f32 %v2799, %v3015
        %v3143 = vadd.f32 %v2800, %v3018
        %v3144 = vadd.f32 %v2801, %v3020
        %v3145 = vadd.f32 %v2802, %v3023
        %v3146 = vadd.f32 %v2803, %v3025
        %v3147 = vadd.f32 %v2804, %v3028
        %v3148 = vadd.f32 %v2805, %v3030
        %v3149 = vadd.f32 %v2806, %v3033
        %v3150 = vadd.f32 %v2807, %v3035
        %v3151 = vadd.f32 %v2808, %v3038
        %v3152 = vadd.f32 %v2809, %v3040
        %v3153 = vadd.f32 %v2810, %v3043
        %v3154 = vadd.f32 %v2811, %v3045
        %v3155 = vadd.f32 %v2812, %v3048
        %v3156 = vadd.f32 %v2813, %v3050
        %v3157 = vadd.f32 %v2814, %v3053
        %v3158 = vadd.f32 %v2815, %v3055
        %v3159 = vadd.f32 %v2816, %v3058
        %v3160 = vadd.f32 %v2817, %v3060
        %v3161 = vadd.f32 %v2818, %v3063
        %v3162 = vadd.f32 %v2819, %v3065
        %v3163 = vadd.f32 %v2820, %v3068
        %v3164 = vadd.f32 %v2821, %v3070
        %v3165 = vadd.f32 %v2822, %v3073
        %v3166 = vadd.f32 %v2823, %v3075
        %v3167 = vadd.f32 %v2824, %v3078
        %v3168 = vadd.f32 %v2825, %v3080
        %v3169 = vadd.f32 %v2826, %v3083
        %v3170 = vadd.f32 %v2827, %v3085
        %v3171 = vadd.f32 %v2828, %v3088
        %v3172 = vadd.f32 %v2829, %v3090
        %v3173 = vadd.f32 %v2830, %v3093
        %v3174 = vadd.f32 %v2831, %v3095
        %v3175 = vadd.f32 %v2832, %v3098
        %v3176 = vadd.f32 %v2833, %v3100
        %v3177 = vadd.f32 %v2834, %v3103
        %v3178 = vadd.f32 %v2835, %v3105
        %v3179 = vadd.f32 %v2836, %v3108
        %v3180 = vadd.f32 %v2837, %v3110
        %v3181 = vadd.f32 %v2838, %v3113
        %v3182 = vadd.f32 %v2839, %v3115
        %v3183 = vadd.f32 %v2840, %v3118
        %v3184 = vadd.f32 %v2841, %v3120
        %v3185 = vadd.f32 %v2842, %v3123
        %v3186 = vadd.f32 %v2843, %v3125
        %v3187 = vadd.f32 %v2844, %v3128
        %v3188 = vadd.f32 %v2845, %v3130
        %v3189 = vadd.f32 %v2846, %v3133
        %v3190 = vadd.f32 %v2847, %v3135
        %v3191 = vld [vmem:[#allocation2 + $0x18] sm:$0xf]
        %v3192 = vld [vmem:[#allocation2 + $0x1c] sm:$0xf]
        %v3193 = vld [vmem:[#allocation2 + $0x20] sm:$0xf]
        %v3194 = vld [vmem:[#allocation2 + $0x24] sm:$0xf]
        %v3195 = vld [vmem:[#allocation2 + $0x28] sm:$0xf]
        %v3196 = vld [vmem:[#allocation2 + $0x2c] sm:$0xf]
        %v3197 = vld [vmem:[#allocation2 + $0x30] sm:$0xf]
        %v3198 = vld [vmem:[#allocation2 + $0x34] sm:$0xf]
        %v3199 = vld [vmem:[#allocation2 + $0x38] sm:$0xf]
        %v3200 = vld [vmem:[#allocation2 + $0x3c] sm:$0xf]
        %v3201 = vld [vmem:[#allocation2 + $0x40] sm:$0xf]
        %v3202 = vld [vmem:[#allocation2 + $0x44] sm:$0xf]
        %v3203 = vld [vmem:[#allocation2 + $0x48] sm:$0xf]
        %v3204 = vld [vmem:[#allocation2 + $0x4c] sm:$0xf]
        %v3205 = vld [vmem:[#allocation2 + $0x50] sm:$0xf]
        %v3206 = vld [vmem:[#allocation2 + $0x54] sm:$0xf]
        %v3207 = vld [vmem:[#allocation2 + $0x58] sm:$0xf]
        %v3208 = vld [vmem:[#allocation2 + $0x5c] sm:$0xf]
        %v3209 = vld [vmem:[#allocation2 + $0x60] sm:$0xf]
        %v3210 = vld [vmem:[#allocation2 + $0x64] sm:$0xf]
        %v3211 = vld [vmem:[#allocation2 + $0x68] sm:$0xf]
        %v3212 = vld [vmem:[#allocation2 + $0x6c] sm:$0xf]
        %v3213 = vld [vmem:[#allocation2 + $0x70] sm:$0xf]
        %v3214 = vld [vmem:[#allocation2 + $0x74] sm:$0xf]
        %v3215 = vld [vmem:[#allocation2 + $0x78] sm:$0xf]
        %v3216 = vld [vmem:[#allocation2 + $0x7c] sm:$0xf]
        %v3217 = vld [vmem:[#allocation2 + $0x80] sm:$0xf]
        %v3218 = vld [vmem:[#allocation2 + $0x84] sm:$0xf]
        %v3219 = vld [vmem:[#allocation2 + $0x88] sm:$0xf]
        %v3220 = vld [vmem:[#allocation2 + $0x8c] sm:$0xf]
        %v3221 = vld [vmem:[#allocation2 + $0x90] sm:$0xf]
        %v3222 = vld [vmem:[#allocation2 + $0x94] sm:$0xf]
        %v3223 = vld [vmem:[#allocation2 + $0x98] sm:$0xf]
        %v3224 = vld [vmem:[#allocation2 + $0x9c] sm:$0xf]
        %v3225 = vld [vmem:[#allocation2 + $0xa0] sm:$0xf]
        %v3226 = vld [vmem:[#allocation2 + $0xa4] sm:$0xf]
        %v3227 = vld [vmem:[#allocation2 + $0xa8] sm:$0xf]
        %v3228 = vld [vmem:[#allocation2 + $0xac] sm:$0xf]
        %v3229 = vld [vmem:[#allocation2 + $0xb0] sm:$0xf]
        %v3230 = vld [vmem:[#allocation2 + $0xb4] sm:$0xf]
        %v3231 = vld [vmem:[#allocation2 + $0xb8] sm:$0xf]
        %v3232 = vld [vmem:[#allocation2 + $0xbc] sm:$0xf]
        %v3233 = vld [vmem:[#allocation2 + $0xc0] sm:$0xf]
        %v3234 = vld [vmem:[#allocation2 + $0xc4] sm:$0xf]
        %v3235 = vld [vmem:[#allocation2 + $0xc8] sm:$0xf]
        %v3236 = vld [vmem:[#allocation2 + $0xcc] sm:$0xf]
        %v3237 = vld [vmem:[#allocation2 + $0xd0] sm:$0xf]
        %v3238 = vld [vmem:[#allocation2 + $0xd4] sm:$0xf]
        %v3239 = vld [vmem:[#allocation2 + $0xd8] sm:$0xf]
        %v3240 = vld [vmem:[#allocation2 + $0xdc] sm:$0xf]
        %v3241 = vld [vmem:[#allocation2 + $0xe0] sm:$0xf]
        %v3242 = vld [vmem:[#allocation2 + $0xe4] sm:$0xf]
        %v3243 = vld [vmem:[#allocation2 + $0xe8] sm:$0xf]
        %v3244 = vld [vmem:[#allocation2 + $0xec] sm:$0xf]
        %s3245 = scalar_lea.vmem %s350, 12
        %v3246 = vld [vmem:[%s3245] sm:$0x3]
        %v3301 = vunpack.c.l.b16 %v3191
        %v3302 = vunpack.c.l.b16 %v3192
        %v3303 = vunpack.c.l.b16 %v3193
        %v3304 = vunpack.c.l.b16 %v3194
        %v3305 = vunpack.c.l.b16 %v3195
        %v3306 = vunpack.c.l.b16 %v3196
        %v3307 = vunpack.c.l.b16 %v3197
        %v3308 = vunpack.c.l.b16 %v3198
        %v3309 = vunpack.c.l.b16 %v3199
        %v3310 = vunpack.c.l.b16 %v3200
        %v3311 = vunpack.c.l.b16 %v3201
        %v3312 = vunpack.c.l.b16 %v3202
        %v3313 = vunpack.c.l.b16 %v3203
        %v3314 = vunpack.c.l.b16 %v3204
        %v3315 = vunpack.c.l.b16 %v3205
        %v3316 = vunpack.c.l.b16 %v3206
        %v3317 = vunpack.c.l.b16 %v3207
        %v3318 = vunpack.c.l.b16 %v3208
        %v3319 = vunpack.c.l.b16 %v3209
        %v3320 = vunpack.c.l.b16 %v3210
        %v3321 = vunpack.c.l.b16 %v3211
        %v3322 = vunpack.c.l.b16 %v3212
        %v3323 = vunpack.c.l.b16 %v3213
        %v3324 = vunpack.c.l.b16 %v3214
        %v3325 = vunpack.c.l.b16 %v3215
        %v3326 = vunpack.c.l.b16 %v3216
        %v3327 = vunpack.c.l.b16 %v3217
        %v3328 = vunpack.c.l.b16 %v3218
        %v3329 = vunpack.c.l.b16 %v3219
        %v3330 = vunpack.c.l.b16 %v3220
        %v3331 = vunpack.c.l.b16 %v3221
        %v3332 = vunpack.c.l.b16 %v3222
        %v3333 = vunpack.c.l.b16 %v3223
        %v3334 = vunpack.c.l.b16 %v3224
        %v3335 = vunpack.c.l.b16 %v3225
        %v3336 = vunpack.c.l.b16 %v3226
        %v3337 = vunpack.c.l.b16 %v3227
        %v3338 = vunpack.c.l.b16 %v3228
        %v3339 = vunpack.c.l.b16 %v3229
        %v3340 = vunpack.c.l.b16 %v3230
        %v3341 = vunpack.c.l.b16 %v3231
        %v3342 = vunpack.c.l.b16 %v3232
        %v3343 = vunpack.c.l.b16 %v3233
        %v3344 = vunpack.c.l.b16 %v3234
        %v3345 = vunpack.c.l.b16 %v3235
        %v3346 = vunpack.c.l.b16 %v3236
        %v3347 = vunpack.c.l.b16 %v3237
        %v3348 = vunpack.c.l.b16 %v3238
        %v3349 = vunpack.c.l.b16 %v3239
        %v3350 = vunpack.c.l.b16 %v3240
        %v3351 = vunpack.c.l.b16 %v3241
        %v3352 = vunpack.c.l.b16 %v3242
        %v3353 = vunpack.c.l.b16 %v3243
        %v3354 = vunpack.c.l.b16 %v3244
        %v3355 = vpack.c.b16 %v3302, %v3301
        %v3356 = vpack.c.b16 %v3304, %v3303
        %v3357 = vpack.c.b16 %v3306, %v3305
        %v3358 = vpack.c.b16 %v3308, %v3307
        %v3359 = vpack.c.b16 %v3310, %v3309
        %v3360 = vpack.c.b16 %v3312, %v3311
        %v3361 = vpack.c.b16 %v3314, %v3313
        %v3362 = vpack.c.b16 %v3316, %v3315
        %v3363 = vpack.c.b16 %v3318, %v3317
        %v3364 = vpack.c.b16 %v3320, %v3319
        %v3365 = vpack.c.b16 %v3322, %v3321
        %v3366 = vpack.c.b16 %v3324, %v3323
        %v3367 = vpack.c.b16 %v3326, %v3325
        %v3368 = vpack.c.b16 %v3328, %v3327
        %v3369 = vpack.c.b16 %v3330, %v3329
        %v3370 = vpack.c.b16 %v3332, %v3331
        %v3371 = vpack.c.b16 %v3334, %v3333
        %v3372 = vpack.c.b16 %v3336, %v3335
        %v3373 = vpack.c.b16 %v3338, %v3337
        %v3374 = vpack.c.b16 %v3340, %v3339
        %v3375 = vpack.c.b16 %v3342, %v3341
        %v3376 = vpack.c.b16 %v3344, %v3343
        %v3377 = vpack.c.b16 %v3346, %v3345
        %v3378 = vpack.c.b16 %v3348, %v3347
        %v3379 = vpack.c.b16 %v3350, %v3349
        %v3380 = vpack.c.b16 %v3352, %v3351
        %v3381 = vpack.c.b16 %v3354, %v3353
        %v3383 = vsel %vm903, %v3355, 0
        %v3386 = vsel %vm903, %v3356, 0
        %v3389 = vsel %vm903, %v3357, 0
        %v3392 = vsel %vm903, %v3358, 0
        %v3395 = vsel %vm903, %v3359, 0
        %v3398 = vsel %vm903, %v3360, 0
        %v3401 = vsel %vm903, %v3361, 0
        %v3404 = vsel %vm903, %v3362, 0
        %v3407 = vsel %vm903, %v3363, 0
        %v3410 = vsel %vm903, %v3364, 0
        %v3413 = vsel %vm903, %v3365, 0
        %v3416 = vsel %vm903, %v3366, 0
        %v3419 = vsel %vm903, %v3367, 0
        %v3422 = vsel %vm903, %v3368, 0
        %v3425 = vsel %vm903, %v3369, 0
        %v3428 = vsel %vm903, %v3370, 0
        %v3431 = vsel %vm903, %v3371, 0
        %v3434 = vsel %vm903, %v3372, 0
        %v3437 = vsel %vm903, %v3373, 0
        %v3440 = vsel %vm903, %v3374, 0
        %v3443 = vsel %vm903, %v3375, 0
        %v3446 = vsel %vm903, %v3376, 0
        %v3449 = vsel %vm903, %v3377, 0
        %v3452 = vsel %vm903, %v3378, 0
        %v3455 = vsel %vm903, %v3379, 0
        %v3458 = vsel %vm903, %v3380, 0
        %v3461 = vsel %vm903, %v3381, 0
        %v3464 = vsel %vm985, %v3246, 0
        %3466 = vmatpush.bf16.msra.mxu0 0
        %3467 = vmatpush.bf16.msra.mxu0 0
        %3468 = vmatpush.bf16.msra.mxu0 0
        %3469 = vmatpush.bf16.msra.mxu0 0
        %3470 = vmatpush.bf16.msra.mxu0 0
        %3471 = vmatpush.bf16.msra.mxu0 0
        %3472 = vmatpush.bf16.msra.mxu0 0
        %3473 = vmatpush.bf16.msra.mxu0 %v3464
        %3474 = vmatmul.bf16.gmra.mxu0 %v3383
        %v3475 = vpop.f32.mrf.mxu0
        %v3476 = vadd.f32 0.0, %v3475
        %v3477 = vpop.f32.mrf.mxu0
        %v3478 = vadd.f32 0.0, %v3477
        %3479 = vmatmul.bf16.gmra.mxu0 %v3386
        %v3480 = vpop.f32.mrf.mxu0
        %v3481 = vadd.f32 0.0, %v3480
        %v3482 = vpop.f32.mrf.mxu0
        %v3483 = vadd.f32 0.0, %v3482
        %3484 = vmatmul.bf16.gmra.mxu0 %v3389
        %v3485 = vpop.f32.mrf.mxu0
        %v3486 = vadd.f32 0.0, %v3485
        %v3487 = vpop.f32.mrf.mxu0
        %v3488 = vadd.f32 0.0, %v3487
        %3489 = vmatmul.bf16.gmra.mxu0 %v3392
        %v3490 = vpop.f32.mrf.mxu0
        %v3491 = vadd.f32 0.0, %v3490
        %v3492 = vpop.f32.mrf.mxu0
        %v3493 = vadd.f32 0.0, %v3492
        %3494 = vmatmul.bf16.gmra.mxu0 %v3395
        %v3495 = vpop.f32.mrf.mxu0
        %v3496 = vadd.f32 0.0, %v3495
        %v3497 = vpop.f32.mrf.mxu0
        %v3498 = vadd.f32 0.0, %v3497
        %3499 = vmatmul.bf16.gmra.mxu0 %v3398
        %v3500 = vpop.f32.mrf.mxu0
        %v3501 = vadd.f32 0.0, %v3500
        %v3502 = vpop.f32.mrf.mxu0
        %v3503 = vadd.f32 0.0, %v3502
        %3504 = vmatmul.bf16.gmra.mxu0 %v3401
        %v3505 = vpop.f32.mrf.mxu0
        %v3506 = vadd.f32 0.0, %v3505
        %v3507 = vpop.f32.mrf.mxu0
        %v3508 = vadd.f32 0.0, %v3507
        %3509 = vmatmul.bf16.gmra.mxu0 %v3404
        %v3510 = vpop.f32.mrf.mxu0
        %v3511 = vadd.f32 0.0, %v3510
        %v3512 = vpop.f32.mrf.mxu0
        %v3513 = vadd.f32 0.0, %v3512
        %3514 = vmatmul.bf16.gmra.mxu0 %v3407
        %v3515 = vpop.f32.mrf.mxu0
        %v3516 = vadd.f32 0.0, %v3515
        %v3517 = vpop.f32.mrf.mxu0
        %v3518 = vadd.f32 0.0, %v3517
        %3519 = vmatmul.bf16.gmra.mxu0 %v3410
        %v3520 = vpop.f32.mrf.mxu0
        %v3521 = vadd.f32 0.0, %v3520
        %v3522 = vpop.f32.mrf.mxu0
        %v3523 = vadd.f32 0.0, %v3522
        %3524 = vmatmul.bf16.gmra.mxu0 %v3413
        %v3525 = vpop.f32.mrf.mxu0
        %v3526 = vadd.f32 0.0, %v3525
        %v3527 = vpop.f32.mrf.mxu0
        %v3528 = vadd.f32 0.0, %v3527
        %3529 = vmatmul.bf16.gmra.mxu0 %v3416
        %v3530 = vpop.f32.mrf.mxu0
        %v3531 = vadd.f32 0.0, %v3530
        %v3532 = vpop.f32.mrf.mxu0
        %v3533 = vadd.f32 0.0, %v3532
        %3534 = vmatmul.bf16.gmra.mxu0 %v3419
        %v3535 = vpop.f32.mrf.mxu0
        %v3536 = vadd.f32 0.0, %v3535
        %v3537 = vpop.f32.mrf.mxu0
        %v3538 = vadd.f32 0.0, %v3537
        %3539 = vmatmul.bf16.gmra.mxu0 %v3422
        %v3540 = vpop.f32.mrf.mxu0
        %v3541 = vadd.f32 0.0, %v3540
        %v3542 = vpop.f32.mrf.mxu0
        %v3543 = vadd.f32 0.0, %v3542
        %3544 = vmatmul.bf16.gmra.mxu0 %v3425
        %v3545 = vpop.f32.mrf.mxu0
        %v3546 = vadd.f32 0.0, %v3545
        %v3547 = vpop.f32.mrf.mxu0
        %v3548 = vadd.f32 0.0, %v3547
        %3549 = vmatmul.bf16.gmra.mxu0 %v3428
        %v3550 = vpop.f32.mrf.mxu0
        %v3551 = vadd.f32 0.0, %v3550
        %v3552 = vpop.f32.mrf.mxu0
        %v3553 = vadd.f32 0.0, %v3552
        %3554 = vmatmul.bf16.gmra.mxu0 %v3431
        %v3555 = vpop.f32.mrf.mxu0
        %v3556 = vadd.f32 0.0, %v3555
        %v3557 = vpop.f32.mrf.mxu0
        %v3558 = vadd.f32 0.0, %v3557
        %3559 = vmatmul.bf16.gmra.mxu0 %v3434
        %v3560 = vpop.f32.mrf.mxu0
        %v3561 = vadd.f32 0.0, %v3560
        %v3562 = vpop.f32.mrf.mxu0
        %v3563 = vadd.f32 0.0, %v3562
        %3564 = vmatmul.bf16.gmra.mxu0 %v3437
        %v3565 = vpop.f32.mrf.mxu0
        %v3566 = vadd.f32 0.0, %v3565
        %v3567 = vpop.f32.mrf.mxu0
        %v3568 = vadd.f32 0.0, %v3567
        %3569 = vmatmul.bf16.gmra.mxu0 %v3440
        %v3570 = vpop.f32.mrf.mxu0
        %v3571 = vadd.f32 0.0, %v3570
        %v3572 = vpop.f32.mrf.mxu0
        %v3573 = vadd.f32 0.0, %v3572
        %3574 = vmatmul.bf16.gmra.mxu0 %v3443
        %v3575 = vpop.f32.mrf.mxu0
        %v3576 = vadd.f32 0.0, %v3575
        %v3577 = vpop.f32.mrf.mxu0
        %v3578 = vadd.f32 0.0, %v3577
        %3579 = vmatmul.bf16.gmra.mxu0 %v3446
        %v3580 = vpop.f32.mrf.mxu0
        %v3581 = vadd.f32 0.0, %v3580
        %v3582 = vpop.f32.mrf.mxu0
        %v3583 = vadd.f32 0.0, %v3582
        %3584 = vmatmul.bf16.gmra.mxu0 %v3449
        %v3585 = vpop.f32.mrf.mxu0
        %v3586 = vadd.f32 0.0, %v3585
        %v3587 = vpop.f32.mrf.mxu0
        %v3588 = vadd.f32 0.0, %v3587
        %3589 = vmatmul.bf16.gmra.mxu0 %v3452
        %v3590 = vpop.f32.mrf.mxu0
        %v3591 = vadd.f32 0.0, %v3590
        %v3592 = vpop.f32.mrf.mxu0
        %v3593 = vadd.f32 0.0, %v3592
        %3594 = vmatmul.bf16.gmra.mxu0 %v3455
        %v3595 = vpop.f32.mrf.mxu0
        %v3596 = vadd.f32 0.0, %v3595
        %v3597 = vpop.f32.mrf.mxu0
        %v3598 = vadd.f32 0.0, %v3597
        %3599 = vmatmul.bf16.gmra.mxu0 %v3458
        %v3600 = vpop.f32.mrf.mxu0
        %v3601 = vadd.f32 0.0, %v3600
        %v3602 = vpop.f32.mrf.mxu0
        %v3603 = vadd.f32 0.0, %v3602
        %3604 = vmatmul.bf16.gmra.mxu0 %v3461
        %v3605 = vpop.f32.mrf.mxu0
        %v3606 = vadd.f32 0.0, %v3605
        %v3607 = vpop.f32.mrf.mxu0
        %v3608 = vadd.f32 0.0, %v3607
        %3609 = vdwg.mxu0
        %v3610 = vadd.f32 %v3137, %v3476
        %v3611 = vadd.f32 %v3138, %v3478
        %v3612 = vadd.f32 %v3139, %v3481
        %v3613 = vadd.f32 %v3140, %v3483
        %v3614 = vadd.f32 %v3141, %v3486
        %v3615 = vadd.f32 %v3142, %v3488
        %v3616 = vadd.f32 %v3143, %v3491
        %v3617 = vadd.f32 %v3144, %v3493
        %v3618 = vadd.f32 %v3145, %v3496
        %v3619 = vadd.f32 %v3146, %v3498
        %v3620 = vadd.f32 %v3147, %v3501
        %v3621 = vadd.f32 %v3148, %v3503
        %v3622 = vadd.f32 %v3149, %v3506
        %v3623 = vadd.f32 %v3150, %v3508
        %v3624 = vadd.f32 %v3151, %v3511
        %v3625 = vadd.f32 %v3152, %v3513
        %v3626 = vadd.f32 %v3153, %v3516
        %v3627 = vadd.f32 %v3154, %v3518
        %v3628 = vadd.f32 %v3155, %v3521
        %v3629 = vadd.f32 %v3156, %v3523
        %v3630 = vadd.f32 %v3157, %v3526
        %v3631 = vadd.f32 %v3158, %v3528
        %v3632 = vadd.f32 %v3159, %v3531
        %v3633 = vadd.f32 %v3160, %v3533
        %v3634 = vadd.f32 %v3161, %v3536
        %v3635 = vadd.f32 %v3162, %v3538
        %v3636 = vadd.f32 %v3163, %v3541
        %v3637 = vadd.f32 %v3164, %v3543
        %v3638 = vadd.f32 %v3165, %v3546
        %v3639 = vadd.f32 %v3166, %v3548
        %v3640 = vadd.f32 %v3167, %v3551
        %v3641 = vadd.f32 %v3168, %v3553
        %v3642 = vadd.f32 %v3169, %v3556
        %v3643 = vadd.f32 %v3170, %v3558
        %v3644 = vadd.f32 %v3171, %v3561
        %v3645 = vadd.f32 %v3172, %v3563
        %v3646 = vadd.f32 %v3173, %v3566
        %v3647 = vadd.f32 %v3174, %v3568
        %v3648 = vadd.f32 %v3175, %v3571
        %v3649 = vadd.f32 %v3176, %v3573
        %v3650 = vadd.f32 %v3177, %v3576
        %v3651 = vadd.f32 %v3178, %v3578
        %v3652 = vadd.f32 %v3179, %v3581
        %v3653 = vadd.f32 %v3180, %v3583
        %v3654 = vadd.f32 %v3181, %v3586
        %v3655 = vadd.f32 %v3182, %v3588
        %v3656 = vadd.f32 %v3183, %v3591
        %v3657 = vadd.f32 %v3184, %v3593
        %v3658 = vadd.f32 %v3185, %v3596
        %v3659 = vadd.f32 %v3186, %v3598
        %v3660 = vadd.f32 %v3187, %v3601
        %v3661 = vadd.f32 %v3188, %v3603
        %v3662 = vadd.f32 %v3189, %v3606
        %v3663 = vadd.f32 %v3190, %v3608
        %v3664 = vld [vmem:[#allocation2 + $0x18] sm:$0xf]
        %v3665 = vld [vmem:[#allocation2 + $0x1c] sm:$0xf]
        %v3666 = vld [vmem:[#allocation2 + $0x20] sm:$0xf]
        %v3667 = vld [vmem:[#allocation2 + $0x24] sm:$0xf]
        %v3668 = vld [vmem:[#allocation2 + $0x28] sm:$0xf]
        %v3669 = vld [vmem:[#allocation2 + $0x2c] sm:$0xf]
        %v3670 = vld [vmem:[#allocation2 + $0x30] sm:$0xf]
        %v3671 = vld [vmem:[#allocation2 + $0x34] sm:$0xf]
        %v3672 = vld [vmem:[#allocation2 + $0x38] sm:$0xf]
        %v3673 = vld [vmem:[#allocation2 + $0x3c] sm:$0xf]
        %v3674 = vld [vmem:[#allocation2 + $0x40] sm:$0xf]
        %v3675 = vld [vmem:[#allocation2 + $0x44] sm:$0xf]
        %v3676 = vld [vmem:[#allocation2 + $0x48] sm:$0xf]
        %v3677 = vld [vmem:[#allocation2 + $0x4c] sm:$0xf]
        %v3678 = vld [vmem:[#allocation2 + $0x50] sm:$0xf]
        %v3679 = vld [vmem:[#allocation2 + $0x54] sm:$0xf]
        %v3680 = vld [vmem:[#allocation2 + $0x58] sm:$0xf]
        %v3681 = vld [vmem:[#allocation2 + $0x5c] sm:$0xf]
        %v3682 = vld [vmem:[#allocation2 + $0x60] sm:$0xf]
        %v3683 = vld [vmem:[#allocation2 + $0x64] sm:$0xf]
        %v3684 = vld [vmem:[#allocation2 + $0x68] sm:$0xf]
        %v3685 = vld [vmem:[#allocation2 + $0x6c] sm:$0xf]
        %v3686 = vld [vmem:[#allocation2 + $0x70] sm:$0xf]
        %v3687 = vld [vmem:[#allocation2 + $0x74] sm:$0xf]
        %v3688 = vld [vmem:[#allocation2 + $0x78] sm:$0xf]
        %v3689 = vld [vmem:[#allocation2 + $0x7c] sm:$0xf]
        %v3690 = vld [vmem:[#allocation2 + $0x80] sm:$0xf]
        %v3691 = vld [vmem:[#allocation2 + $0x84] sm:$0xf]
        %v3692 = vld [vmem:[#allocation2 + $0x88] sm:$0xf]
        %v3693 = vld [vmem:[#allocation2 + $0x8c] sm:$0xf]
        %v3694 = vld [vmem:[#allocation2 + $0x90] sm:$0xf]
        %v3695 = vld [vmem:[#allocation2 + $0x94] sm:$0xf]
        %v3696 = vld [vmem:[#allocation2 + $0x98] sm:$0xf]
        %v3697 = vld [vmem:[#allocation2 + $0x9c] sm:$0xf]
        %v3698 = vld [vmem:[#allocation2 + $0xa0] sm:$0xf]
        %v3699 = vld [vmem:[#allocation2 + $0xa4] sm:$0xf]
        %v3700 = vld [vmem:[#allocation2 + $0xa8] sm:$0xf]
        %v3701 = vld [vmem:[#allocation2 + $0xac] sm:$0xf]
        %v3702 = vld [vmem:[#allocation2 + $0xb0] sm:$0xf]
        %v3703 = vld [vmem:[#allocation2 + $0xb4] sm:$0xf]
        %v3704 = vld [vmem:[#allocation2 + $0xb8] sm:$0xf]
        %v3705 = vld [vmem:[#allocation2 + $0xbc] sm:$0xf]
        %v3706 = vld [vmem:[#allocation2 + $0xc0] sm:$0xf]
        %v3707 = vld [vmem:[#allocation2 + $0xc4] sm:$0xf]
        %v3708 = vld [vmem:[#allocation2 + $0xc8] sm:$0xf]
        %v3709 = vld [vmem:[#allocation2 + $0xcc] sm:$0xf]
        %v3710 = vld [vmem:[#allocation2 + $0xd0] sm:$0xf]
        %v3711 = vld [vmem:[#allocation2 + $0xd4] sm:$0xf]
        %v3712 = vld [vmem:[#allocation2 + $0xd8] sm:$0xf]
        %v3713 = vld [vmem:[#allocation2 + $0xdc] sm:$0xf]
        %v3714 = vld [vmem:[#allocation2 + $0xe0] sm:$0xf]
        %v3715 = vld [vmem:[#allocation2 + $0xe4] sm:$0xf]
        %v3716 = vld [vmem:[#allocation2 + $0xe8] sm:$0xf]
        %v3717 = vld [vmem:[#allocation2 + $0xec] sm:$0xf]
        %v3718 = vld [vmem:[#allocation2 + $0xf0] sm:$0x1]
        %s3719 = scalar_lea.vmem %s350, 14
        %v3720 = vld [vmem:[%s3719] sm:$0x3]
        %v3776 = vunpack.c.l.b16 %v3664
        %v3777 = vunpack.c.l.b16 %v3665
        %v3778 = vunpack.c.l.b16 %v3666
        %v3779 = vunpack.c.l.b16 %v3667
        %v3780 = vunpack.c.l.b16 %v3668
        %v3781 = vunpack.c.l.b16 %v3669
        %v3782 = vunpack.c.l.b16 %v3670
        %v3783 = vunpack.c.l.b16 %v3671
        %v3784 = vunpack.c.l.b16 %v3672
        %v3785 = vunpack.c.l.b16 %v3673
        %v3786 = vunpack.c.l.b16 %v3674
        %v3787 = vunpack.c.l.b16 %v3675
        %v3788 = vunpack.c.l.b16 %v3676
        %v3789 = vunpack.c.l.b16 %v3677
        %v3790 = vunpack.c.l.b16 %v3678
        %v3791 = vunpack.c.l.b16 %v3679
        %v3792 = vunpack.c.l.b16 %v3680
        %v3793 = vunpack.c.l.b16 %v3681
        %v3794 = vunpack.c.l.b16 %v3682
        %v3795 = vunpack.c.l.b16 %v3683
        %v3796 = vunpack.c.l.b16 %v3684
        %v3797 = vunpack.c.l.b16 %v3685
        %v3798 = vunpack.c.l.b16 %v3686
        %v3799 = vunpack.c.l.b16 %v3687
        %v3800 = vunpack.c.l.b16 %v3688
        %v3801 = vunpack.c.l.b16 %v3689
        %v3802 = vunpack.c.l.b16 %v3690
        %v3803 = vunpack.c.l.b16 %v3691
        %v3804 = vunpack.c.l.b16 %v3692
        %v3805 = vunpack.c.l.b16 %v3693
        %v3806 = vunpack.c.l.b16 %v3694
        %v3807 = vunpack.c.l.b16 %v3695
        %v3808 = vunpack.c.l.b16 %v3696
        %v3809 = vunpack.c.l.b16 %v3697
        %v3810 = vunpack.c.l.b16 %v3698
        %v3811 = vunpack.c.l.b16 %v3699
        %v3812 = vunpack.c.l.b16 %v3700
        %v3813 = vunpack.c.l.b16 %v3701
        %v3814 = vunpack.c.l.b16 %v3702
        %v3815 = vunpack.c.l.b16 %v3703
        %v3816 = vunpack.c.l.b16 %v3704
        %v3817 = vunpack.c.l.b16 %v3705
        %v3818 = vunpack.c.l.b16 %v3706
        %v3819 = vunpack.c.l.b16 %v3707
        %v3820 = vunpack.c.l.b16 %v3708
        %v3821 = vunpack.c.l.b16 %v3709
        %v3822 = vunpack.c.l.b16 %v3710
        %v3823 = vunpack.c.l.b16 %v3711
        %v3824 = vunpack.c.l.b16 %v3712
        %v3825 = vunpack.c.l.b16 %v3713
        %v3826 = vunpack.c.l.b16 %v3714
        %v3827 = vunpack.c.l.b16 %v3715
        %v3828 = vunpack.c.l.b16 %v3716
        %v3829 = vunpack.c.l.b16 %v3717
        %v3830 = vunpack.c.l.b16 %v3718
        %v3831 = vpack.c.b16 %v3777, %v3776
        %v3832 = vpack.c.b16 %v3779, %v3778
        %v3833 = vpack.c.b16 %v3781, %v3780
        %v3834 = vpack.c.b16 %v3783, %v3782
        %v3835 = vpack.c.b16 %v3785, %v3784
        %v3836 = vpack.c.b16 %v3787, %v3786
        %v3837 = vpack.c.b16 %v3789, %v3788
        %v3838 = vpack.c.b16 %v3791, %v3790
        %v3839 = vpack.c.b16 %v3793, %v3792
        %v3840 = vpack.c.b16 %v3795, %v3794
        %v3841 = vpack.c.b16 %v3797, %v3796
        %v3842 = vpack.c.b16 %v3799, %v3798
        %v3843 = vpack.c.b16 %v3801, %v3800
        %v3844 = vpack.c.b16 %v3803, %v3802
        %v3845 = vpack.c.b16 %v3805, %v3804
        %v3846 = vpack.c.b16 %v3807, %v3806
        %v3847 = vpack.c.b16 %v3809, %v3808
        %v3848 = vpack.c.b16 %v3811, %v3810
        %v3849 = vpack.c.b16 %v3813, %v3812
        %v3850 = vpack.c.b16 %v3815, %v3814
        %v3851 = vpack.c.b16 %v3817, %v3816
        %v3852 = vpack.c.b16 %v3819, %v3818
        %v3853 = vpack.c.b16 %v3821, %v3820
        %v3854 = vpack.c.b16 %v3823, %v3822
        %v3855 = vpack.c.b16 %v3825, %v3824
        %v3856 = vpack.c.b16 %v3827, %v3826
        %v3857 = vpack.c.b16 %v3829, %v3828
        %v3858 = vpack.c.b16 %v3830, %v3830
        %v3860 = vshrl.u32 %v3831, 16
        %v3862 = vshll.u32 %v3831, 16
        %v3864 = vrot.slane %v3862, 1
        %v3865 = vor.u32 %v3860, %v3864
        %v3867 = vshll.u32 %v3832, 16
        %v3869 = vrot.slane %v3867, 1
        %v3870 = vsel %vm682, %v3865, %v3869
        %v3871 = vshrl.u32 %v3832, 16
        %v3873 = vor.u32 %v3871, %v3869
        %v3875 = vshll.u32 %v3833, 16
        %v3877 = vrot.slane %v3875, 1
        %v3878 = vsel %vm682, %v3873, %v3877
        %v3879 = vshrl.u32 %v3833, 16
        %v3881 = vor.u32 %v3879, %v3877
        %v3883 = vshll.u32 %v3834, 16
        %v3885 = vrot.slane %v3883, 1
        %v3886 = vsel %vm682, %v3881, %v3885
        %v3887 = vshrl.u32 %v3834, 16
        %v3889 = vor.u32 %v3887, %v3885
        %v3891 = vshll.u32 %v3835, 16
        %v3893 = vrot.slane %v3891, 1
        %v3894 = vsel %vm682, %v3889, %v3893
        %v3895 = vshrl.u32 %v3835, 16
        %v3897 = vor.u32 %v3895, %v3893
        %v3899 = vshll.u32 %v3836, 16
        %v3901 = vrot.slane %v3899, 1
        %v3902 = vsel %vm682, %v3897, %v3901
        %v3903 = vshrl.u32 %v3836, 16
        %v3905 = vor.u32 %v3903, %v3901
        %v3907 = vshll.u32 %v3837, 16
        %v3909 = vrot.slane %v3907, 1
        %v3910 = vsel %vm682, %v3905, %v3909
        %v3911 = vshrl.u32 %v3837, 16
        %v3913 = vor.u32 %v3911, %v3909
        %v3915 = vshll.u32 %v3838, 16
        %v3917 = vrot.slane %v3915, 1
        %v3918 = vsel %vm682, %v3913, %v3917
        %v3919 = vshrl.u32 %v3838, 16
        %v3921 = vor.u32 %v3919, %v3917
        %v3923 = vshll.u32 %v3839, 16
        %v3925 = vrot.slane %v3923, 1
        %v3926 = vsel %vm682, %v3921, %v3925
        %v3927 = vshrl.u32 %v3839, 16
        %v3929 = vor.u32 %v3927, %v3925
        %v3931 = vshll.u32 %v3840, 16
        %v3933 = vrot.slane %v3931, 1
        %v3934 = vsel %vm682, %v3929, %v3933
        %v3935 = vshrl.u32 %v3840, 16
        %v3937 = vor.u32 %v3935, %v3933
        %v3939 = vshll.u32 %v3841, 16
        %v3941 = vrot.slane %v3939, 1
        %v3942 = vsel %vm682, %v3937, %v3941
        %v3943 = vshrl.u32 %v3841, 16
        %v3945 = vor.u32 %v3943, %v3941
        %v3947 = vshll.u32 %v3842, 16
        %v3949 = vrot.slane %v3947, 1
        %v3950 = vsel %vm682, %v3945, %v3949
        %v3951 = vshrl.u32 %v3842, 16
        %v3953 = vor.u32 %v3951, %v3949
        %v3955 = vshll.u32 %v3843, 16
        %v3957 = vrot.slane %v3955, 1
        %v3958 = vsel %vm682, %v3953, %v3957
        %v3959 = vshrl.u32 %v3843, 16
        %v3961 = vor.u32 %v3959, %v3957
        %v3963 = vshll.u32 %v3844, 16
        %v3965 = vrot.slane %v3963, 1
        %v3966 = vsel %vm682, %v3961, %v3965
        %v3967 = vshrl.u32 %v3844, 16
        %v3969 = vor.u32 %v3967, %v3965
        %v3971 = vshll.u32 %v3845, 16
        %v3973 = vrot.slane %v3971, 1
        %v3974 = vsel %vm682, %v3969, %v3973
        %v3975 = vshrl.u32 %v3845, 16
        %v3977 = vor.u32 %v3975, %v3973
        %v3979 = vshll.u32 %v3846, 16
        %v3981 = vrot.slane %v3979, 1
        %v3982 = vsel %vm682, %v3977, %v3981
        %v3983 = vshrl.u32 %v3846, 16
        %v3985 = vor.u32 %v3983, %v3981
        %v3987 = vshll.u32 %v3847, 16
        %v3989 = vrot.slane %v3987, 1
        %v3990 = vsel %vm682, %v3985, %v3989
        %v3991 = vshrl.u32 %v3847, 16
        %v3993 = vor.u32 %v3991, %v3989
        %v3995 = vshll.u32 %v3848, 16
        %v3997 = vrot.slane %v3995, 1
        %v3998 = vsel %vm682, %v3993, %v3997
        %v3999 = vshrl.u32 %v3848, 16
        %v4001 = vor.u32 %v3999, %v3997
        %v4003 = vshll.u32 %v3849, 16
        %v4005 = vrot.slane %v4003, 1
        %v4006 = vsel %vm682, %v4001, %v4005
        %v4007 = vshrl.u32 %v3849, 16
        %v4009 = vor.u32 %v4007, %v4005
        %v4011 = vshll.u32 %v3850, 16
        %v4013 = vrot.slane %v4011, 1
        %v4014 = vsel %vm682, %v4009, %v4013
        %v4015 = vshrl.u32 %v3850, 16
        %v4017 = vor.u32 %v4015, %v4013
        %v4019 = vshll.u32 %v3851, 16
        %v4021 = vrot.slane %v4019, 1
        %v4022 = vsel %vm682, %v4017, %v4021
        %v4023 = vshrl.u32 %v3851, 16
        %v4025 = vor.u32 %v4023, %v4021
        %v4027 = vshll.u32 %v3852, 16
        %v4029 = vrot.slane %v4027, 1
        %v4030 = vsel %vm682, %v4025, %v4029
        %v4031 = vshrl.u32 %v3852, 16
        %v4033 = vor.u32 %v4031, %v4029
        %v4035 = vshll.u32 %v3853, 16
        %v4037 = vrot.slane %v4035, 1
        %v4038 = vsel %vm682, %v4033, %v4037
        %v4039 = vshrl.u32 %v3853, 16
        %v4041 = vor.u32 %v4039, %v4037
        %v4043 = vshll.u32 %v3854, 16
        %v4045 = vrot.slane %v4043, 1
        %v4046 = vsel %vm682, %v4041, %v4045
        %v4047 = vshrl.u32 %v3854, 16
        %v4049 = vor.u32 %v4047, %v4045
        %v4051 = vshll.u32 %v3855, 16
        %v4053 = vrot.slane %v4051, 1
        %v4054 = vsel %vm682, %v4049, %v4053
        %v4055 = vshrl.u32 %v3855, 16
        %v4057 = vor.u32 %v4055, %v4053
        %v4059 = vshll.u32 %v3856, 16
        %v4061 = vrot.slane %v4059, 1
        %v4062 = vsel %vm682, %v4057, %v4061
        %v4063 = vshrl.u32 %v3856, 16
        %v4065 = vor.u32 %v4063, %v4061
        %v4067 = vshll.u32 %v3857, 16
        %v4069 = vrot.slane %v4067, 1
        %v4070 = vsel %vm682, %v4065, %v4069
        %v4071 = vshrl.u32 %v3857, 16
        %v4073 = vor.u32 %v4071, %v4069
        %v4075 = vshll.u32 %v3858, 16
        %v4077 = vrot.slane %v4075, 1
        %v4078 = vsel %vm682, %v4073, %v4077
        %v4080 = vsel %vm903, %v3870, 0
        %v4083 = vsel %vm903, %v3878, 0
        %v4086 = vsel %vm903, %v3886, 0
        %v4089 = vsel %vm903, %v3894, 0
        %v4092 = vsel %vm903, %v3902, 0
        %v4095 = vsel %vm903, %v3910, 0
        %v4098 = vsel %vm903, %v3918, 0
        %v4101 = vsel %vm903, %v3926, 0
        %v4104 = vsel %vm903, %v3934, 0
        %v4107 = vsel %vm903, %v3942, 0
        %v4110 = vsel %vm903, %v3950, 0
        %v4113 = vsel %vm903, %v3958, 0
        %v4116 = vsel %vm903, %v3966, 0
        %v4119 = vsel %vm903, %v3974, 0
        %v4122 = vsel %vm903, %v3982, 0
        %v4125 = vsel %vm903, %v3990, 0
        %v4128 = vsel %vm903, %v3998, 0
        %v4131 = vsel %vm903, %v4006, 0
        %v4134 = vsel %vm903, %v4014, 0
        %v4137 = vsel %vm903, %v4022, 0
        %v4140 = vsel %vm903, %v4030, 0
        %v4143 = vsel %vm903, %v4038, 0
        %v4146 = vsel %vm903, %v4046, 0
        %v4149 = vsel %vm903, %v4054, 0
        %v4152 = vsel %vm903, %v4062, 0
        %v4155 = vsel %vm903, %v4070, 0
        %v4158 = vsel %vm903, %v4078, 0
        %v4161 = vsel %vm985, %v3720, 0
        %4163 = vmatpush.bf16.msra.mxu0 0
        %4164 = vmatpush.bf16.msra.mxu0 0
        %4165 = vmatpush.bf16.msra.mxu0 0
        %4166 = vmatpush.bf16.msra.mxu0 0
        %4167 = vmatpush.bf16.msra.mxu0 0
        %4168 = vmatpush.bf16.msra.mxu0 0
        %4169 = vmatpush.bf16.msra.mxu0 0
        %4170 = vmatpush.bf16.msra.mxu0 %v4161
        %4171 = vmatmul.bf16.gmra.mxu0 %v4080
        %v4172 = vpop.f32.mrf.mxu0
        %v4173 = vadd.f32 0.0, %v4172
        %v4174 = vpop.f32.mrf.mxu0
        %v4175 = vadd.f32 0.0, %v4174
        %4176 = vmatmul.bf16.gmra.mxu0 %v4083
        %v4177 = vpop.f32.mrf.mxu0
        %v4178 = vadd.f32 0.0, %v4177
        %v4179 = vpop.f32.mrf.mxu0
        %v4180 = vadd.f32 0.0, %v4179
        %4181 = vmatmul.bf16.gmra.mxu0 %v4086
        %v4182 = vpop.f32.mrf.mxu0
        %v4183 = vadd.f32 0.0, %v4182
        %v4184 = vpop.f32.mrf.mxu0
        %v4185 = vadd.f32 0.0, %v4184
        %4186 = vmatmul.bf16.gmra.mxu0 %v4089
        %v4187 = vpop.f32.mrf.mxu0
        %v4188 = vadd.f32 0.0, %v4187
        %v4189 = vpop.f32.mrf.mxu0
        %v4190 = vadd.f32 0.0, %v4189
        %4191 = vmatmul.bf16.gmra.mxu0 %v4092
        %v4192 = vpop.f32.mrf.mxu0
        %v4193 = vadd.f32 0.0, %v4192
        %v4194 = vpop.f32.mrf.mxu0
        %v4195 = vadd.f32 0.0, %v4194
        %4196 = vmatmul.bf16.gmra.mxu0 %v4095
        %v4197 = vpop.f32.mrf.mxu0
        %v4198 = vadd.f32 0.0, %v4197
        %v4199 = vpop.f32.mrf.mxu0
        %v4200 = vadd.f32 0.0, %v4199
        %4201 = vmatmul.bf16.gmra.mxu0 %v4098
        %v4202 = vpop.f32.mrf.mxu0
        %v4203 = vadd.f32 0.0, %v4202
        %v4204 = vpop.f32.mrf.mxu0
        %v4205 = vadd.f32 0.0, %v4204
        %4206 = vmatmul.bf16.gmra.mxu0 %v4101
        %v4207 = vpop.f32.mrf.mxu0
        %v4208 = vadd.f32 0.0, %v4207
        %v4209 = vpop.f32.mrf.mxu0
        %v4210 = vadd.f32 0.0, %v4209
        %4211 = vmatmul.bf16.gmra.mxu0 %v4104
        %v4212 = vpop.f32.mrf.mxu0
        %v4213 = vadd.f32 0.0, %v4212
        %v4214 = vpop.f32.mrf.mxu0
        %v4215 = vadd.f32 0.0, %v4214
        %4216 = vmatmul.bf16.gmra.mxu0 %v4107
        %v4217 = vpop.f32.mrf.mxu0
        %v4218 = vadd.f32 0.0, %v4217
        %v4219 = vpop.f32.mrf.mxu0
        %v4220 = vadd.f32 0.0, %v4219
        %4221 = vmatmul.bf16.gmra.mxu0 %v4110
        %v4222 = vpop.f32.mrf.mxu0
        %v4223 = vadd.f32 0.0, %v4222
        %v4224 = vpop.f32.mrf.mxu0
        %v4225 = vadd.f32 0.0, %v4224
        %4226 = vmatmul.bf16.gmra.mxu0 %v4113
        %v4227 = vpop.f32.mrf.mxu0
        %v4228 = vadd.f32 0.0, %v4227
        %v4229 = vpop.f32.mrf.mxu0
        %v4230 = vadd.f32 0.0, %v4229
        %4231 = vmatmul.bf16.gmra.mxu0 %v4116
        %v4232 = vpop.f32.mrf.mxu0
        %v4233 = vadd.f32 0.0, %v4232
        %v4234 = vpop.f32.mrf.mxu0
        %v4235 = vadd.f32 0.0, %v4234
        %4236 = vmatmul.bf16.gmra.mxu0 %v4119
        %v4237 = vpop.f32.mrf.mxu0
        %v4238 = vadd.f32 0.0, %v4237
        %v4239 = vpop.f32.mrf.mxu0
        %v4240 = vadd.f32 0.0, %v4239
        %4241 = vmatmul.bf16.gmra.mxu0 %v4122
        %v4242 = vpop.f32.mrf.mxu0
        %v4243 = vadd.f32 0.0, %v4242
        %v4244 = vpop.f32.mrf.mxu0
        %v4245 = vadd.f32 0.0, %v4244
        %4246 = vmatmul.bf16.gmra.mxu0 %v4125
        %v4247 = vpop.f32.mrf.mxu0
        %v4248 = vadd.f32 0.0, %v4247
        %v4249 = vpop.f32.mrf.mxu0
        %v4250 = vadd.f32 0.0, %v4249
        %4251 = vmatmul.bf16.gmra.mxu0 %v4128
        %v4252 = vpop.f32.mrf.mxu0
        %v4253 = vadd.f32 0.0, %v4252
        %v4254 = vpop.f32.mrf.mxu0
        %v4255 = vadd.f32 0.0, %v4254
        %4256 = vmatmul.bf16.gmra.mxu0 %v4131
        %v4257 = vpop.f32.mrf.mxu0
        %v4258 = vadd.f32 0.0, %v4257
        %v4259 = vpop.f32.mrf.mxu0
        %v4260 = vadd.f32 0.0, %v4259
        %4261 = vmatmul.bf16.gmra.mxu0 %v4134
        %v4262 = vpop.f32.mrf.mxu0
        %v4263 = vadd.f32 0.0, %v4262
        %v4264 = vpop.f32.mrf.mxu0
        %v4265 = vadd.f32 0.0, %v4264
        %4266 = vmatmul.bf16.gmra.mxu0 %v4137
        %v4267 = vpop.f32.mrf.mxu0
        %v4268 = vadd.f32 0.0, %v4267
        %v4269 = vpop.f32.mrf.mxu0
        %v4270 = vadd.f32 0.0, %v4269
        %4271 = vmatmul.bf16.gmra.mxu0 %v4140
        %v4272 = vpop.f32.mrf.mxu0
        %v4273 = vadd.f32 0.0, %v4272
        %v4274 = vpop.f32.mrf.mxu0
        %v4275 = vadd.f32 0.0, %v4274
        %4276 = vmatmul.bf16.gmra.mxu0 %v4143
        %v4277 = vpop.f32.mrf.mxu0
        %v4278 = vadd.f32 0.0, %v4277
        %v4279 = vpop.f32.mrf.mxu0
        %v4280 = vadd.f32 0.0, %v4279
        %4281 = vmatmul.bf16.gmra.mxu0 %v4146
        %v4282 = vpop.f32.mrf.mxu0
        %v4283 = vadd.f32 0.0, %v4282
        %v4284 = vpop.f32.mrf.mxu0
        %v4285 = vadd.f32 0.0, %v4284
        %4286 = vmatmul.bf16.gmra.mxu0 %v4149
        %v4287 = vpop.f32.mrf.mxu0
        %v4288 = vadd.f32 0.0, %v4287
        %v4289 = vpop.f32.mrf.mxu0
        %v4290 = vadd.f32 0.0, %v4289
        %4291 = vmatmul.bf16.gmra.mxu0 %v4152
        %v4292 = vpop.f32.mrf.mxu0
        %v4293 = vadd.f32 0.0, %v4292
        %v4294 = vpop.f32.mrf.mxu0
        %v4295 = vadd.f32 0.0, %v4294
        %4296 = vmatmul.bf16.gmra.mxu0 %v4155
        %v4297 = vpop.f32.mrf.mxu0
        %v4298 = vadd.f32 0.0, %v4297
        %v4299 = vpop.f32.mrf.mxu0
        %v4300 = vadd.f32 0.0, %v4299
        %4301 = vmatmul.bf16.gmra.mxu0 %v4158
        %v4302 = vpop.f32.mrf.mxu0
        %v4303 = vadd.f32 0.0, %v4302
        %v4304 = vpop.f32.mrf.mxu0
        %v4305 = vadd.f32 0.0, %v4304
        %4306 = vdwg.mxu0
        %v4307 = vadd.f32 %v3610, %v4173
        %v4308 = vadd.f32 %v3611, %v4175
        %v4309 = vadd.f32 %v3612, %v4178
        %v4310 = vadd.f32 %v3613, %v4180
        %v4311 = vadd.f32 %v3614, %v4183
        %v4312 = vadd.f32 %v3615, %v4185
        %v4313 = vadd.f32 %v3616, %v4188
        %v4314 = vadd.f32 %v3617, %v4190
        %v4315 = vadd.f32 %v3618, %v4193
        %v4316 = vadd.f32 %v3619, %v4195
        %v4317 = vadd.f32 %v3620, %v4198
        %v4318 = vadd.f32 %v3621, %v4200
        %v4319 = vadd.f32 %v3622, %v4203
        %v4320 = vadd.f32 %v3623, %v4205
        %v4321 = vadd.f32 %v3624, %v4208
        %v4322 = vadd.f32 %v3625, %v4210
        %v4323 = vadd.f32 %v3626, %v4213
        %v4324 = vadd.f32 %v3627, %v4215
        %v4325 = vadd.f32 %v3628, %v4218
        %v4326 = vadd.f32 %v3629, %v4220
        %v4327 = vadd.f32 %v3630, %v4223
        %v4328 = vadd.f32 %v3631, %v4225
        %v4329 = vadd.f32 %v3632, %v4228
        %v4330 = vadd.f32 %v3633, %v4230
        %v4331 = vadd.f32 %v3634, %v4233
        %v4332 = vadd.f32 %v3635, %v4235
        %v4333 = vadd.f32 %v3636, %v4238
        %v4334 = vadd.f32 %v3637, %v4240
        %v4335 = vadd.f32 %v3638, %v4243
        %v4336 = vadd.f32 %v3639, %v4245
        %v4337 = vadd.f32 %v3640, %v4248
        %v4338 = vadd.f32 %v3641, %v4250
        %v4339 = vadd.f32 %v3642, %v4253
        %v4340 = vadd.f32 %v3643, %v4255
        %v4341 = vadd.f32 %v3644, %v4258
        %v4342 = vadd.f32 %v3645, %v4260
        %v4343 = vadd.f32 %v3646, %v4263
        %v4344 = vadd.f32 %v3647, %v4265
        %v4345 = vadd.f32 %v3648, %v4268
        %v4346 = vadd.f32 %v3649, %v4270
        %v4347 = vadd.f32 %v3650, %v4273
        %v4348 = vadd.f32 %v3651, %v4275
        %v4349 = vadd.f32 %v3652, %v4278
        %v4350 = vadd.f32 %v3653, %v4280
        %v4351 = vadd.f32 %v3654, %v4283
        %v4352 = vadd.f32 %v3655, %v4285
        %v4353 = vadd.f32 %v3656, %v4288
        %v4354 = vadd.f32 %v3657, %v4290
        %v4355 = vadd.f32 %v3658, %v4293
        %v4356 = vadd.f32 %v3659, %v4295
        %v4357 = vadd.f32 %v3660, %v4298
        %v4358 = vadd.f32 %v3661, %v4300
        %v4359 = vadd.f32 %v3662, %v4303
        %v4360 = vadd.f32 %v3663, %v4305
        %v4361 = vld [vmem:[#allocation2 + $0x18] sm:$0xe]
        %s4362 = scalar_lea.vmem %s350, 16
        %v4363 = vld [vmem:[%s4362] sm:$0x3]
        %v4365 = vunpack.c.l.b16 %v4361
        %v4366 = vpack.c.b16 %v3777, %v4365
        %v4367 = vrot.slane %v4366, 1
        %v4368 = vrot.slane %v3832, 1
        %v4369 = vsel %vm1340, %v4367, %v4368
        %v4370 = vrot.slane %v3833, 1
        %v4371 = vsel %vm1340, %v4368, %v4370
        %v4372 = vrot.slane %v3834, 1
        %v4373 = vsel %vm1340, %v4370, %v4372
        %v4374 = vrot.slane %v3835, 1
        %v4375 = vsel %vm1340, %v4372, %v4374
        %v4376 = vrot.slane %v3836, 1
        %v4377 = vsel %vm1340, %v4374, %v4376
        %v4378 = vrot.slane %v3837, 1
        %v4379 = vsel %vm1340, %v4376, %v4378
        %v4380 = vrot.slane %v3838, 1
        %v4381 = vsel %vm1340, %v4378, %v4380
        %v4382 = vrot.slane %v3839, 1
        %v4383 = vsel %vm1340, %v4380, %v4382
        %v4384 = vrot.slane %v3840, 1
        %v4385 = vsel %vm1340, %v4382, %v4384
        %v4386 = vrot.slane %v3841, 1
        %v4387 = vsel %vm1340, %v4384, %v4386
        %v4388 = vrot.slane %v3842, 1
        %v4389 = vsel %vm1340, %v4386, %v4388
        %v4390 = vrot.slane %v3843, 1
        %v4391 = vsel %vm1340, %v4388, %v4390
        %v4392 = vrot.slane %v3844, 1
        %v4393 = vsel %vm1340, %v4390, %v4392
        %v4394 = vrot.slane %v3845, 1
        %v4395 = vsel %vm1340, %v4392, %v4394
        %v4396 = vrot.slane %v3846, 1
        %v4397 = vsel %vm1340, %v4394, %v4396
        %v4398 = vrot.slane %v3847, 1
        %v4399 = vsel %vm1340, %v4396, %v4398
        %v4400 = vrot.slane %v3848, 1
        %v4401 = vsel %vm1340, %v4398, %v4400
        %v4402 = vrot.slane %v3849, 1
        %v4403 = vsel %vm1340, %v4400, %v4402
        %v4404 = vrot.slane %v3850, 1
        %v4405 = vsel %vm1340, %v4402, %v4404
        %v4406 = vrot.slane %v3851, 1
        %v4407 = vsel %vm1340, %v4404, %v4406
        %v4408 = vrot.slane %v3852, 1
        %v4409 = vsel %vm1340, %v4406, %v4408
        %v4410 = vrot.slane %v3853, 1
        %v4411 = vsel %vm1340, %v4408, %v4410
        %v4412 = vrot.slane %v3854, 1
        %v4413 = vsel %vm1340, %v4410, %v4412
        %v4414 = vrot.slane %v3855, 1
        %v4415 = vsel %vm1340, %v4412, %v4414
        %v4416 = vrot.slane %v3856, 1
        %v4417 = vsel %vm1340, %v4414, %v4416
        %v4418 = vrot.slane %v3857, 1
        %v4419 = vsel %vm1340, %v4416, %v4418
        %v4420 = vrot.slane %v3858, 1
        %v4421 = vsel %vm1340, %v4418, %v4420
        %v4423 = vsel %vm903, %v4369, 0
        %v4426 = vsel %vm903, %v4371, 0
        %v4429 = vsel %vm903, %v4373, 0
        %v4432 = vsel %vm903, %v4375, 0
        %v4435 = vsel %vm903, %v4377, 0
        %v4438 = vsel %vm903, %v4379, 0
        %v4441 = vsel %vm903, %v4381, 0
        %v4444 = vsel %vm903, %v4383, 0
        %v4447 = vsel %vm903, %v4385, 0
        %v4450 = vsel %vm903, %v4387, 0
        %v4453 = vsel %vm903, %v4389, 0
        %v4456 = vsel %vm903, %v4391, 0
        %v4459 = vsel %vm903, %v4393, 0
        %v4462 = vsel %vm903, %v4395, 0
        %v4465 = vsel %vm903, %v4397, 0
        %v4468 = vsel %vm903, %v4399, 0
        %v4471 = vsel %vm903, %v4401, 0
        %v4474 = vsel %vm903, %v4403, 0
        %v4477 = vsel %vm903, %v4405, 0
        %v4480 = vsel %vm903, %v4407, 0
        %v4483 = vsel %vm903, %v4409, 0
        %v4486 = vsel %vm903, %v4411, 0
        %v4489 = vsel %vm903, %v4413, 0
        %v4492 = vsel %vm903, %v4415, 0
        %v4495 = vsel %vm903, %v4417, 0
        %v4498 = vsel %vm903, %v4419, 0
        %v4501 = vsel %vm903, %v4421, 0
        %v4504 = vsel %vm985, %v4363, 0
        %4506 = vmatpush.bf16.msra.mxu0 0
        %4507 = vmatpush.bf16.msra.mxu0 0
        %4508 = vmatpush.bf16.msra.mxu0 0
        %4509 = vmatpush.bf16.msra.mxu0 0
        %4510 = vmatpush.bf16.msra.mxu0 0
        %4511 = vmatpush.bf16.msra.mxu0 0
        %4512 = vmatpush.bf16.msra.mxu0 0
        %4513 = vmatpush.bf16.msra.mxu0 %v4504
        %4514 = vmatmul.bf16.gmra.mxu0 %v4423
        %v4515 = vpop.f32.mrf.mxu0
        %v4516 = vadd.f32 0.0, %v4515
        %v4517 = vpop.f32.mrf.mxu0
        %v4518 = vadd.f32 0.0, %v4517
        %4519 = vmatmul.bf16.gmra.mxu0 %v4426
        %v4520 = vpop.f32.mrf.mxu0
        %v4521 = vadd.f32 0.0, %v4520
        %v4522 = vpop.f32.mrf.mxu0
        %v4523 = vadd.f32 0.0, %v4522
        %4524 = vmatmul.bf16.gmra.mxu0 %v4429
        %v4525 = vpop.f32.mrf.mxu0
        %v4526 = vadd.f32 0.0, %v4525
        %v4527 = vpop.f32.mrf.mxu0
        %v4528 = vadd.f32 0.0, %v4527
        %4529 = vmatmul.bf16.gmra.mxu0 %v4432
        %v4530 = vpop.f32.mrf.mxu0
        %v4531 = vadd.f32 0.0, %v4530
        %v4532 = vpop.f32.mrf.mxu0
        %v4533 = vadd.f32 0.0, %v4532
        %4534 = vmatmul.bf16.gmra.mxu0 %v4435
        %v4535 = vpop.f32.mrf.mxu0
        %v4536 = vadd.f32 0.0, %v4535
        %v4537 = vpop.f32.mrf.mxu0
        %v4538 = vadd.f32 0.0, %v4537
        %4539 = vmatmul.bf16.gmra.mxu0 %v4438
        %v4540 = vpop.f32.mrf.mxu0
        %v4541 = vadd.f32 0.0, %v4540
        %v4542 = vpop.f32.mrf.mxu0
        %v4543 = vadd.f32 0.0, %v4542
        %4544 = vmatmul.bf16.gmra.mxu0 %v4441
        %v4545 = vpop.f32.mrf.mxu0
        %v4546 = vadd.f32 0.0, %v4545
        %v4547 = vpop.f32.mrf.mxu0
        %v4548 = vadd.f32 0.0, %v4547
        %4549 = vmatmul.bf16.gmra.mxu0 %v4444
        %v4550 = vpop.f32.mrf.mxu0
        %v4551 = vadd.f32 0.0, %v4550
        %v4552 = vpop.f32.mrf.mxu0
        %v4553 = vadd.f32 0.0, %v4552
        %4554 = vmatmul.bf16.gmra.mxu0 %v4447
        %v4555 = vpop.f32.mrf.mxu0
        %v4556 = vadd.f32 0.0, %v4555
        %v4557 = vpop.f32.mrf.mxu0
        %v4558 = vadd.f32 0.0, %v4557
        %4559 = vmatmul.bf16.gmra.mxu0 %v4450
        %v4560 = vpop.f32.mrf.mxu0
        %v4561 = vadd.f32 0.0, %v4560
        %v4562 = vpop.f32.mrf.mxu0
        %v4563 = vadd.f32 0.0, %v4562
        %4564 = vmatmul.bf16.gmra.mxu0 %v4453
        %v4565 = vpop.f32.mrf.mxu0
        %v4566 = vadd.f32 0.0, %v4565
        %v4567 = vpop.f32.mrf.mxu0
        %v4568 = vadd.f32 0.0, %v4567
        %4569 = vmatmul.bf16.gmra.mxu0 %v4456
        %v4570 = vpop.f32.mrf.mxu0
        %v4571 = vadd.f32 0.0, %v4570
        %v4572 = vpop.f32.mrf.mxu0
        %v4573 = vadd.f32 0.0, %v4572
        %4574 = vmatmul.bf16.gmra.mxu0 %v4459
        %v4575 = vpop.f32.mrf.mxu0
        %v4576 = vadd.f32 0.0, %v4575
        %v4577 = vpop.f32.mrf.mxu0
        %v4578 = vadd.f32 0.0, %v4577
        %4579 = vmatmul.bf16.gmra.mxu0 %v4462
        %v4580 = vpop.f32.mrf.mxu0
        %v4581 = vadd.f32 0.0, %v4580
        %v4582 = vpop.f32.mrf.mxu0
        %v4583 = vadd.f32 0.0, %v4582
        %4584 = vmatmul.bf16.gmra.mxu0 %v4465
        %v4585 = vpop.f32.mrf.mxu0
        %v4586 = vadd.f32 0.0, %v4585
        %v4587 = vpop.f32.mrf.mxu0
        %v4588 = vadd.f32 0.0, %v4587
        %4589 = vmatmul.bf16.gmra.mxu0 %v4468
        %v4590 = vpop.f32.mrf.mxu0
        %v4591 = vadd.f32 0.0, %v4590
        %v4592 = vpop.f32.mrf.mxu0
        %v4593 = vadd.f32 0.0, %v4592
        %4594 = vmatmul.bf16.gmra.mxu0 %v4471
        %v4595 = vpop.f32.mrf.mxu0
        %v4596 = vadd.f32 0.0, %v4595
        %v4597 = vpop.f32.mrf.mxu0
        %v4598 = vadd.f32 0.0, %v4597
        %4599 = vmatmul.bf16.gmra.mxu0 %v4474
        %v4600 = vpop.f32.mrf.mxu0
        %v4601 = vadd.f32 0.0, %v4600
        %v4602 = vpop.f32.mrf.mxu0
        %v4603 = vadd.f32 0.0, %v4602
        %4604 = vmatmul.bf16.gmra.mxu0 %v4477
        %v4605 = vpop.f32.mrf.mxu0
        %v4606 = vadd.f32 0.0, %v4605
        %v4607 = vpop.f32.mrf.mxu0
        %v4608 = vadd.f32 0.0, %v4607
        %4609 = vmatmul.bf16.gmra.mxu0 %v4480
        %v4610 = vpop.f32.mrf.mxu0
        %v4611 = vadd.f32 0.0, %v4610
        %v4612 = vpop.f32.mrf.mxu0
        %v4613 = vadd.f32 0.0, %v4612
        %4614 = vmatmul.bf16.gmra.mxu0 %v4483
        %v4615 = vpop.f32.mrf.mxu0
        %v4616 = vadd.f32 0.0, %v4615
        %v4617 = vpop.f32.mrf.mxu0
        %v4618 = vadd.f32 0.0, %v4617
        %4619 = vmatmul.bf16.gmra.mxu0 %v4486
        %v4620 = vpop.f32.mrf.mxu0
        %v4621 = vadd.f32 0.0, %v4620
        %v4622 = vpop.f32.mrf.mxu0
        %v4623 = vadd.f32 0.0, %v4622
        %4624 = vmatmul.bf16.gmra.mxu0 %v4489
        %v4625 = vpop.f32.mrf.mxu0
        %v4626 = vadd.f32 0.0, %v4625
        %v4627 = vpop.f32.mrf.mxu0
        %v4628 = vadd.f32 0.0, %v4627
        %4629 = vmatmul.bf16.gmra.mxu0 %v4492
        %v4630 = vpop.f32.mrf.mxu0
        %v4631 = vadd.f32 0.0, %v4630
        %v4632 = vpop.f32.mrf.mxu0
        %v4633 = vadd.f32 0.0, %v4632
        %4634 = vmatmul.bf16.gmra.mxu0 %v4495
        %v4635 = vpop.f32.mrf.mxu0
        %v4636 = vadd.f32 0.0, %v4635
        %v4637 = vpop.f32.mrf.mxu0
        %v4638 = vadd.f32 0.0, %v4637
        %4639 = vmatmul.bf16.gmra.mxu0 %v4498
        %v4640 = vpop.f32.mrf.mxu0
        %v4641 = vadd.f32 0.0, %v4640
        %v4642 = vpop.f32.mrf.mxu0
        %v4643 = vadd.f32 0.0, %v4642
        %4644 = vmatmul.bf16.gmra.mxu0 %v4501
        %v4645 = vpop.f32.mrf.mxu0
        %v4646 = vadd.f32 0.0, %v4645
        %v4647 = vpop.f32.mrf.mxu0
        %v4648 = vadd.f32 0.0, %v4647
        %4649 = vdwg.mxu0
        %v4650 = vadd.f32 %v4307, %v4516
        %v4651 = vadd.f32 %v4308, %v4518
        %v4652 = vadd.f32 %v4309, %v4521
        %v4653 = vadd.f32 %v4310, %v4523
        %v4654 = vadd.f32 %v4311, %v4526
        %v4655 = vadd.f32 %v4312, %v4528
        %v4656 = vadd.f32 %v4313, %v4531
        %v4657 = vadd.f32 %v4314, %v4533
        %v4658 = vadd.f32 %v4315, %v4536
        %v4659 = vadd.f32 %v4316, %v4538
        %v4660 = vadd.f32 %v4317, %v4541
        %v4661 = vadd.f32 %v4318, %v4543
        %v4662 = vadd.f32 %v4319, %v4546
        %v4663 = vadd.f32 %v4320, %v4548
        %v4664 = vadd.f32 %v4321, %v4551
        %v4665 = vadd.f32 %v4322, %v4553
        %v4666 = vadd.f32 %v4323, %v4556
        %v4667 = vadd.f32 %v4324, %v4558
        %v4668 = vadd.f32 %v4325, %v4561
        %v4669 = vadd.f32 %v4326, %v4563
        %v4670 = vadd.f32 %v4327, %v4566
        %v4671 = vadd.f32 %v4328, %v4568
        %v4672 = vadd.f32 %v4329, %v4571
        %v4673 = vadd.f32 %v4330, %v4573
        %v4674 = vadd.f32 %v4331, %v4576
        %v4675 = vadd.f32 %v4332, %v4578
        %v4676 = vadd.f32 %v4333, %v4581
        %v4677 = vadd.f32 %v4334, %v4583
        %v4678 = vadd.f32 %v4335, %v4586
        %v4679 = vadd.f32 %v4336, %v4588
        %v4680 = vadd.f32 %v4337, %v4591
        %v4681 = vadd.f32 %v4338, %v4593
        %v4682 = vadd.f32 %v4339, %v4596
        %v4683 = vadd.f32 %v4340, %v4598
        %v4684 = vadd.f32 %v4341, %v4601
        %v4685 = vadd.f32 %v4342, %v4603
        %v4686 = vadd.f32 %v4343, %v4606
        %v4687 = vadd.f32 %v4344, %v4608
        %v4688 = vadd.f32 %v4345, %v4611
        %v4689 = vadd.f32 %v4346, %v4613
        %v4690 = vadd.f32 %v4347, %v4616
        %v4691 = vadd.f32 %v4348, %v4618
        %v4692 = vadd.f32 %v4349, %v4621
        %v4693 = vadd.f32 %v4350, %v4623
        %v4694 = vadd.f32 %v4351, %v4626
        %v4695 = vadd.f32 %v4352, %v4628
        %v4696 = vadd.f32 %v4353, %v4631
        %v4697 = vadd.f32 %v4354, %v4633
        %v4698 = vadd.f32 %v4355, %v4636
        %v4699 = vadd.f32 %v4356, %v4638
        %v4700 = vadd.f32 %v4357, %v4641
        %v4701 = vadd.f32 %v4358, %v4643
        %v4702 = vadd.f32 %v4359, %v4646
        %v4703 = vadd.f32 %v4360, %v4648
        %v4704 = vld [vmem:[%s353] sm:$0x1]
        %v4706 = vperm.slane %v4704, 0
        %v4708 = vmul.f32 %v4650, %v4706
        %v4709 = vmul.f32 %v4651, %v4706
        %v4710 = vmul.f32 %v4652, %v4706
        %v4711 = vmul.f32 %v4653, %v4706
        %v4712 = vmul.f32 %v4654, %v4706
        %v4713 = vmul.f32 %v4655, %v4706
        %v4714 = vmul.f32 %v4656, %v4706
        %v4715 = vmul.f32 %v4657, %v4706
        %v4716 = vmul.f32 %v4658, %v4706
        %v4717 = vmul.f32 %v4659, %v4706
        %v4718 = vmul.f32 %v4660, %v4706
        %v4719 = vmul.f32 %v4661, %v4706
        %v4720 = vmul.f32 %v4662, %v4706
        %v4721 = vmul.f32 %v4663, %v4706
        %v4722 = vmul.f32 %v4664, %v4706
        %v4723 = vmul.f32 %v4665, %v4706
        %v4724 = vmul.f32 %v4666, %v4706
        %v4725 = vmul.f32 %v4667, %v4706
        %v4726 = vmul.f32 %v4668, %v4706
        %v4727 = vmul.f32 %v4669, %v4706
        %v4728 = vmul.f32 %v4670, %v4706
        %v4729 = vmul.f32 %v4671, %v4706
        %v4730 = vmul.f32 %v4672, %v4706
        %v4731 = vmul.f32 %v4673, %v4706
        %v4732 = vmul.f32 %v4674, %v4706
        %v4733 = vmul.f32 %v4675, %v4706
        %v4734 = vmul.f32 %v4676, %v4706
        %v4735 = vmul.f32 %v4677, %v4706
        %v4736 = vmul.f32 %v4678, %v4706
        %v4737 = vmul.f32 %v4679, %v4706
        %v4738 = vmul.f32 %v4680, %v4706
        %v4739 = vmul.f32 %v4681, %v4706
        %v4740 = vmul.f32 %v4682, %v4706
        %v4741 = vmul.f32 %v4683, %v4706
        %v4742 = vmul.f32 %v4684, %v4706
        %v4743 = vmul.f32 %v4685, %v4706
        %v4744 = vmul.f32 %v4686, %v4706
        %v4745 = vmul.f32 %v4687, %v4706
        %v4746 = vmul.f32 %v4688, %v4706
        %v4747 = vmul.f32 %v4689, %v4706
        %v4748 = vmul.f32 %v4690, %v4706
        %v4749 = vmul.f32 %v4691, %v4706
        %v4750 = vmul.f32 %v4692, %v4706
        %v4751 = vmul.f32 %v4693, %v4706
        %v4752 = vmul.f32 %v4694, %v4706
        %v4753 = vmul.f32 %v4695, %v4706
        %v4754 = vmul.f32 %v4696, %v4706
        %v4755 = vmul.f32 %v4697, %v4706
        %v4756 = vmul.f32 %v4698, %v4706
        %v4757 = vmul.f32 %v4699, %v4706
        %v4758 = vmul.f32 %v4700, %v4706
        %v4759 = vmul.f32 %v4701, %v4706
        %v4760 = vmul.f32 %v4702, %v4706
        %v4761 = vmul.f32 %v4703, %v4706
        %v4762 = vld [vmem:[%s356] sm:$0x1]
        %v4764 = vperm.slane %v4762, 0
        %v4766 = vadd.f32 %v4708, %v4764
        %v4767 = vadd.f32 %v4709, %v4764
        %v4768 = vadd.f32 %v4710, %v4764
        %v4769 = vadd.f32 %v4711, %v4764
        %v4770 = vadd.f32 %v4712, %v4764
        %v4771 = vadd.f32 %v4713, %v4764
        %v4772 = vadd.f32 %v4714, %v4764
        %v4773 = vadd.f32 %v4715, %v4764
        %v4774 = vadd.f32 %v4716, %v4764
        %v4775 = vadd.f32 %v4717, %v4764
        %v4776 = vadd.f32 %v4718, %v4764
        %v4777 = vadd.f32 %v4719, %v4764
        %v4778 = vadd.f32 %v4720, %v4764
        %v4779 = vadd.f32 %v4721, %v4764
        %v4780 = vadd.f32 %v4722, %v4764
        %v4781 = vadd.f32 %v4723, %v4764
        %v4782 = vadd.f32 %v4724, %v4764
        %v4783 = vadd.f32 %v4725, %v4764
        %v4784 = vadd.f32 %v4726, %v4764
        %v4785 = vadd.f32 %v4727, %v4764
        %v4786 = vadd.f32 %v4728, %v4764
        %v4787 = vadd.f32 %v4729, %v4764
        %v4788 = vadd.f32 %v4730, %v4764
        %v4789 = vadd.f32 %v4731, %v4764
        %v4790 = vadd.f32 %v4732, %v4764
        %v4791 = vadd.f32 %v4733, %v4764
        %v4792 = vadd.f32 %v4734, %v4764
        %v4793 = vadd.f32 %v4735, %v4764
        %v4794 = vadd.f32 %v4736, %v4764
        %v4795 = vadd.f32 %v4737, %v4764
        %v4796 = vadd.f32 %v4738, %v4764
        %v4797 = vadd.f32 %v4739, %v4764
        %v4798 = vadd.f32 %v4740, %v4764
        %v4799 = vadd.f32 %v4741, %v4764
        %v4800 = vadd.f32 %v4742, %v4764
        %v4801 = vadd.f32 %v4743, %v4764
        %v4802 = vadd.f32 %v4744, %v4764
        %v4803 = vadd.f32 %v4745, %v4764
        %v4804 = vadd.f32 %v4746, %v4764
        %v4805 = vadd.f32 %v4747, %v4764
        %v4806 = vadd.f32 %v4748, %v4764
        %v4807 = vadd.f32 %v4749, %v4764
        %v4808 = vadd.f32 %v4750, %v4764
        %v4809 = vadd.f32 %v4751, %v4764
        %v4810 = vadd.f32 %v4752, %v4764
        %v4811 = vadd.f32 %v4753, %v4764
        %v4812 = vadd.f32 %v4754, %v4764
        %v4813 = vadd.f32 %v4755, %v4764
        %v4814 = vadd.f32 %v4756, %v4764
        %v4815 = vadd.f32 %v4757, %v4764
        %v4816 = vadd.f32 %v4758, %v4764
        %v4817 = vadd.f32 %v4759, %v4764
        %v4818 = vadd.f32 %v4760, %v4764
        %v4819 = vadd.f32 %v4761, %v4764
        %v4820 = vxor.u32 %v4766, 2147483648
        %v4821 = vxor.u32 %v4767, 2147483648
        %v4822 = vxor.u32 %v4768, 2147483648
        %v4823 = vxor.u32 %v4769, 2147483648
        %v4824 = vxor.u32 %v4770, 2147483648
        %v4825 = vxor.u32 %v4771, 2147483648
        %v4826 = vxor.u32 %v4772, 2147483648
        %v4827 = vxor.u32 %v4773, 2147483648
        %v4828 = vxor.u32 %v4774, 2147483648
        %v4829 = vxor.u32 %v4775, 2147483648
        %v4830 = vxor.u32 %v4776, 2147483648
        %v4831 = vxor.u32 %v4777, 2147483648
        %v4832 = vxor.u32 %v4778, 2147483648
        %v4833 = vxor.u32 %v4779, 2147483648
        %v4834 = vxor.u32 %v4780, 2147483648
        %v4835 = vxor.u32 %v4781, 2147483648
        %v4836 = vxor.u32 %v4782, 2147483648
        %v4837 = vxor.u32 %v4783, 2147483648
        %v4838 = vxor.u32 %v4784, 2147483648
        %v4839 = vxor.u32 %v4785, 2147483648
        %v4840 = vxor.u32 %v4786, 2147483648
        %v4841 = vxor.u32 %v4787, 2147483648
        %v4842 = vxor.u32 %v4788, 2147483648
        %v4843 = vxor.u32 %v4789, 2147483648
        %v4844 = vxor.u32 %v4790, 2147483648
        %v4845 = vxor.u32 %v4791, 2147483648
        %v4846 = vxor.u32 %v4792, 2147483648
        %v4847 = vxor.u32 %v4793, 2147483648
        %v4848 = vxor.u32 %v4794, 2147483648
        %v4849 = vxor.u32 %v4795, 2147483648
        %v4850 = vxor.u32 %v4796, 2147483648
        %v4851 = vxor.u32 %v4797, 2147483648
        %v4852 = vxor.u32 %v4798, 2147483648
        %v4853 = vxor.u32 %v4799, 2147483648
        %v4854 = vxor.u32 %v4800, 2147483648
        %v4855 = vxor.u32 %v4801, 2147483648
        %v4856 = vxor.u32 %v4802, 2147483648
        %v4857 = vxor.u32 %v4803, 2147483648
        %v4858 = vxor.u32 %v4804, 2147483648
        %v4859 = vxor.u32 %v4805, 2147483648
        %v4860 = vxor.u32 %v4806, 2147483648
        %v4861 = vxor.u32 %v4807, 2147483648
        %v4862 = vxor.u32 %v4808, 2147483648
        %v4863 = vxor.u32 %v4809, 2147483648
        %v4864 = vxor.u32 %v4810, 2147483648
        %v4865 = vxor.u32 %v4811, 2147483648
        %v4866 = vxor.u32 %v4812, 2147483648
        %v4867 = vxor.u32 %v4813, 2147483648
        %v4868 = vxor.u32 %v4814, 2147483648
        %v4869 = vxor.u32 %v4815, 2147483648
        %v4870 = vxor.u32 %v4816, 2147483648
        %v4871 = vxor.u32 %v4817, 2147483648
        %v4872 = vxor.u32 %v4818, 2147483648
        %v4873 = vxor.u32 %v4819, 2147483648
        %v4874 = vmul.f32 %v4820, 1.442695
        %v4875 = vpow.pop %v4874
        %v4876 = vmul.f32 %v4821, 1.442695
        %v4877 = vpow.pop %v4876
        %v4878 = vmul.f32 %v4822, 1.442695
        %v4879 = vpow.pop %v4878
        %v4880 = vmul.f32 %v4823, 1.442695
        %v4881 = vpow.pop %v4880
        %v4882 = vmul.f32 %v4824, 1.442695
        %v4883 = vpow.pop %v4882
        %v4884 = vmul.f32 %v4825, 1.442695
        %v4885 = vpow.pop %v4884
        %v4886 = vmul.f32 %v4826, 1.442695
        %v4887 = vpow.pop %v4886
        %v4888 = vmul.f32 %v4827, 1.442695
        %v4889 = vpow.pop %v4888
        %v4890 = vmul.f32 %v4828, 1.442695
        %v4891 = vpow.pop %v4890
        %v4892 = vmul.f32 %v4829, 1.442695
        %v4893 = vpow.pop %v4892
        %v4894 = vmul.f32 %v4830, 1.442695
        %v4895 = vpow.pop %v4894
        %v4896 = vmul.f32 %v4831, 1.442695
        %v4897 = vpow.pop %v4896
        %v4898 = vmul.f32 %v4832, 1.442695
        %v4899 = vpow.pop %v4898
        %v4900 = vmul.f32 %v4833, 1.442695
        %v4901 = vpow.pop %v4900
        %v4902 = vmul.f32 %v4834, 1.442695
        %v4903 = vpow.pop %v4902
        %v4904 = vmul.f32 %v4835, 1.442695
        %v4905 = vpow.pop %v4904
        %v4906 = vmul.f32 %v4836, 1.442695
        %v4907 = vpow.pop %v4906
        %v4908 = vmul.f32 %v4837, 1.442695
        %v4909 = vpow.pop %v4908
        %v4910 = vmul.f32 %v4838, 1.442695
        %v4911 = vpow.pop %v4910
        %v4912 = vmul.f32 %v4839, 1.442695
        %v4913 = vpow.pop %v4912
        %v4914 = vmul.f32 %v4840, 1.442695
        %v4915 = vpow.pop %v4914
        %v4916 = vmul.f32 %v4841, 1.442695
        %v4917 = vpow.pop %v4916
        %v4918 = vmul.f32 %v4842, 1.442695
        %v4919 = vpow.pop %v4918
        %v4920 = vmul.f32 %v4843, 1.442695
        %v4921 = vpow.pop %v4920
        %v4922 = vmul.f32 %v4844, 1.442695
        %v4923 = vpow.pop %v4922
        %v4924 = vmul.f32 %v4845, 1.442695
        %v4925 = vpow.pop %v4924
        %v4926 = vmul.f32 %v4846, 1.442695
        %v4927 = vpow.pop %v4926
        %v4928 = vmul.f32 %v4847, 1.442695
        %v4929 = vpow.pop %v4928
        %v4930 = vmul.f32 %v4848, 1.442695
        %v4931 = vpow.pop %v4930
        %v4932 = vmul.f32 %v4849, 1.442695
        %v4933 = vpow.pop %v4932
        %v4934 = vmul.f32 %v4850, 1.442695
        %v4935 = vpow.pop %v4934
        %v4936 = vmul.f32 %v4851, 1.442695
        %v4937 = vpow.pop %v4936
        %v4938 = vmul.f32 %v4852, 1.442695
        %v4939 = vpow.pop %v4938
        %v4940 = vmul.f32 %v4853, 1.442695
        %v4941 = vpow.pop %v4940
        %v4942 = vmul.f32 %v4854, 1.442695
        %v4943 = vpow.pop %v4942
        %v4944 = vmul.f32 %v4855, 1.442695
        %v4945 = vpow.pop %v4944
        %v4946 = vmul.f32 %v4856, 1.442695
        %v4947 = vpow.pop %v4946
        %v4948 = vmul.f32 %v4857, 1.442695
        %v4949 = vpow.pop %v4948
        %v4950 = vmul.f32 %v4858, 1.442695
        %v4951 = vpow.pop %v4950
        %v4952 = vmul.f32 %v4859, 1.442695
        %v4953 = vpow.pop %v4952
        %v4954 = vmul.f32 %v4860, 1.442695
        %v4955 = vpow.pop %v4954
        %v4956 = vmul.f32 %v4861, 1.442695
        %v4957 = vpow.pop %v4956
        %v4958 = vmul.f32 %v4862, 1.442695
        %v4959 = vpow.pop %v4958
        %v4960 = vmul.f32 %v4863, 1.442695
        %v4961 = vpow.pop %v4960
        %v4962 = vmul.f32 %v4864, 1.442695
        %v4963 = vpow.pop %v4962
        %v4964 = vmul.f32 %v4865, 1.442695
        %v4965 = vpow.pop %v4964
        %v4966 = vmul.f32 %v4866, 1.442695
        %v4967 = vpow.pop %v4966
        %v4968 = vmul.f32 %v4867, 1.442695
        %v4969 = vpow.pop %v4968
        %v4970 = vmul.f32 %v4868, 1.442695
        %v4971 = vpow.pop %v4970
        %v4972 = vmul.f32 %v4869, 1.442695
        %v4973 = vpow.pop %v4972
        %v4974 = vmul.f32 %v4870, 1.442695
        %v4975 = vpow.pop %v4974
        %v4976 = vmul.f32 %v4871, 1.442695
        %v4977 = vpow.pop %v4976
        %v4978 = vmul.f32 %v4872, 1.442695
        %v4979 = vpow.pop %v4978
        %v4980 = vmul.f32 %v4873, 1.442695
        %v4981 = vpow.pop %v4980
        %v4982 = vadd.f32 %v4875, 1.0
        %v4983 = vadd.f32 %v4877, 1.0
        %v4984 = vadd.f32 %v4879, 1.0
        %v4985 = vadd.f32 %v4881, 1.0
        %v4986 = vadd.f32 %v4883, 1.0
        %v4987 = vadd.f32 %v4885, 1.0
        %v4988 = vadd.f32 %v4887, 1.0
        %v4989 = vadd.f32 %v4889, 1.0
        %v4990 = vadd.f32 %v4891, 1.0
        %v4991 = vadd.f32 %v4893, 1.0
        %v4992 = vadd.f32 %v4895, 1.0
        %v4993 = vadd.f32 %v4897, 1.0
        %v4994 = vadd.f32 %v4899, 1.0
        %v4995 = vadd.f32 %v4901, 1.0
        %v4996 = vadd.f32 %v4903, 1.0
        %v4997 = vadd.f32 %v4905, 1.0
        %v4998 = vadd.f32 %v4907, 1.0
        %v4999 = vadd.f32 %v4909, 1.0
        %v5000 = vadd.f32 %v4911, 1.0
        %v5001 = vadd.f32 %v4913, 1.0
        %v5002 = vadd.f32 %v4915, 1.0
        %v5003 = vadd.f32 %v4917, 1.0
        %v5004 = vadd.f32 %v4919, 1.0
        %v5005 = vadd.f32 %v4921, 1.0
        %v5006 = vadd.f32 %v4923, 1.0
        %v5007 = vadd.f32 %v4925, 1.0
        %v5008 = vadd.f32 %v4927, 1.0
        %v5009 = vadd.f32 %v4929, 1.0
        %v5010 = vadd.f32 %v4931, 1.0
        %v5011 = vadd.f32 %v4933, 1.0
        %v5012 = vadd.f32 %v4935, 1.0
        %v5013 = vadd.f32 %v4937, 1.0
        %v5014 = vadd.f32 %v4939, 1.0
        %v5015 = vadd.f32 %v4941, 1.0
        %v5016 = vadd.f32 %v4943, 1.0
        %v5017 = vadd.f32 %v4945, 1.0
        %v5018 = vadd.f32 %v4947, 1.0
        %v5019 = vadd.f32 %v4949, 1.0
        %v5020 = vadd.f32 %v4951, 1.0
        %v5021 = vadd.f32 %v4953, 1.0
        %v5022 = vadd.f32 %v4955, 1.0
        %v5023 = vadd.f32 %v4957, 1.0
        %v5024 = vadd.f32 %v4959, 1.0
        %v5025 = vadd.f32 %v4961, 1.0
        %v5026 = vadd.f32 %v4963, 1.0
        %v5027 = vadd.f32 %v4965, 1.0
        %v5028 = vadd.f32 %v4967, 1.0
        %v5029 = vadd.f32 %v4969, 1.0
        %v5030 = vadd.f32 %v4971, 1.0
        %v5031 = vadd.f32 %v4973, 1.0
        %v5032 = vadd.f32 %v4975, 1.0
        %v5033 = vadd.f32 %v4977, 1.0
        %v5034 = vadd.f32 %v4979, 1.0
        %v5035 = vadd.f32 %v4981, 1.0
        %v5036 = vrcp.pop %v4982
        %v5037 = vmul.f32 %v4982, %v5036
        %v5038 = vsub.f32 1.0, %v5037
        %v5039 = vmul.f32 %v5036, %v5038
        %v5040 = vadd.f32 %v5036, %v5039
        %vm5041 = vweird.f32 %v4982
        %vm5042 = vweird.f32 %v5036
        %vm5043 = vmor %vm5041, %vm5042
        %v5044 = vsel %vm5043, %v5036, %v5040
        %v5045 = vand.u32 2147483647, %v4982
        %vm5046 = vcmp.eq.f32.partialorder %v5045, 8.507059e+37
        %v5047 = vand.u32 %v4982, 2147483648
        %v5048 = vor.u32 1.1754944e-38, %v5047
        %v5049 = vsel %vm5046, %v5048, %v5044
        %v5050 = vmul.f32 1.0, %v5049
        %v5051 = vrcp.pop %v4983
        %v5052 = vmul.f32 %v4983, %v5051
        %v5053 = vsub.f32 1.0, %v5052
        %v5054 = vmul.f32 %v5051, %v5053
        %v5055 = vadd.f32 %v5051, %v5054
        %vm5056 = vweird.f32 %v4983
        %vm5057 = vweird.f32 %v5051
        %vm5058 = vmor %vm5056, %vm5057
        %v5059 = vsel %vm5058, %v5051, %v5055
        %v5060 = vand.u32 2147483647, %v4983
        %vm5061 = vcmp.eq.f32.partialorder %v5060, 8.507059e+37
        %v5062 = vand.u32 %v4983, 2147483648
        %v5063 = vor.u32 1.1754944e-38, %v5062
        %v5064 = vsel %vm5061, %v5063, %v5059
        %v5065 = vmul.f32 1.0, %v5064
        %v5066 = vrcp.pop %v4984
        %v5067 = vmul.f32 %v4984, %v5066
        %v5068 = vsub.f32 1.0, %v5067
        %v5069 = vmul.f32 %v5066, %v5068
        %v5070 = vadd.f32 %v5066, %v5069
        %vm5071 = vweird.f32 %v4984
        %vm5072 = vweird.f32 %v5066
        %vm5073 = vmor %vm5071, %vm5072
        %v5074 = vsel %vm5073, %v5066, %v5070
        %v5075 = vand.u32 2147483647, %v4984
        %vm5076 = vcmp.eq.f32.partialorder %v5075, 8.507059e+37
        %v5077 = vand.u32 %v4984, 2147483648
        %v5078 = vor.u32 1.1754944e-38, %v5077
        %v5079 = vsel %vm5076, %v5078, %v5074
        %v5080 = vmul.f32 1.0, %v5079
        %v5081 = vrcp.pop %v4985
        %v5082 = vmul.f32 %v4985, %v5081
        %v5083 = vsub.f32 1.0, %v5082
        %v5084 = vmul.f32 %v5081, %v5083
        %v5085 = vadd.f32 %v5081, %v5084
        %vm5086 = vweird.f32 %v4985
        %vm5087 = vweird.f32 %v5081
        %vm5088 = vmor %vm5086, %vm5087
        %v5089 = vsel %vm5088, %v5081, %v5085
        %v5090 = vand.u32 2147483647, %v4985
        %vm5091 = vcmp.eq.f32.partialorder %v5090, 8.507059e+37
        %v5092 = vand.u32 %v4985, 2147483648
        %v5093 = vor.u32 1.1754944e-38, %v5092
        %v5094 = vsel %vm5091, %v5093, %v5089
        %v5095 = vmul.f32 1.0, %v5094
        %v5096 = vrcp.pop %v4986
        %v5097 = vmul.f32 %v4986, %v5096
        %v5098 = vsub.f32 1.0, %v5097
        %v5099 = vmul.f32 %v5096, %v5098
        %v5100 = vadd.f32 %v5096, %v5099
        %vm5101 = vweird.f32 %v4986
        %vm5102 = vweird.f32 %v5096
        %vm5103 = vmor %vm5101, %vm5102
        %v5104 = vsel %vm5103, %v5096, %v5100
        %v5105 = vand.u32 2147483647, %v4986
        %vm5106 = vcmp.eq.f32.partialorder %v5105, 8.507059e+37
        %v5107 = vand.u32 %v4986, 2147483648
        %v5108 = vor.u32 1.1754944e-38, %v5107
        %v5109 = vsel %vm5106, %v5108, %v5104
        %v5110 = vmul.f32 1.0, %v5109
        %v5111 = vrcp.pop %v4987
        %v5112 = vmul.f32 %v4987, %v5111
        %v5113 = vsub.f32 1.0, %v5112
        %v5114 = vmul.f32 %v5111, %v5113
        %v5115 = vadd.f32 %v5111, %v5114
        %vm5116 = vweird.f32 %v4987
        %vm5117 = vweird.f32 %v5111
        %vm5118 = vmor %vm5116, %vm5117
        %v5119 = vsel %vm5118, %v5111, %v5115
        %v5120 = vand.u32 2147483647, %v4987
        %vm5121 = vcmp.eq.f32.partialorder %v5120, 8.507059e+37
        %v5122 = vand.u32 %v4987, 2147483648
        %v5123 = vor.u32 1.1754944e-38, %v5122
        %v5124 = vsel %vm5121, %v5123, %v5119
        %v5125 = vmul.f32 1.0, %v5124
        %v5126 = vrcp.pop %v4988
        %v5127 = vmul.f32 %v4988, %v5126
        %v5128 = vsub.f32 1.0, %v5127
        %v5129 = vmul.f32 %v5126, %v5128
        %v5130 = vadd.f32 %v5126, %v5129
        %vm5131 = vweird.f32 %v4988
        %vm5132 = vweird.f32 %v5126
        %vm5133 = vmor %vm5131, %vm5132
        %v5134 = vsel %vm5133, %v5126, %v5130
        %v5135 = vand.u32 2147483647, %v4988
        %vm5136 = vcmp.eq.f32.partialorder %v5135, 8.507059e+37
        %v5137 = vand.u32 %v4988, 2147483648
        %v5138 = vor.u32 1.1754944e-38, %v5137
        %v5139 = vsel %vm5136, %v5138, %v5134
        %v5140 = vmul.f32 1.0, %v5139
        %v5141 = vrcp.pop %v4989
        %v5142 = vmul.f32 %v4989, %v5141
        %v5143 = vsub.f32 1.0, %v5142
        %v5144 = vmul.f32 %v5141, %v5143
        %v5145 = vadd.f32 %v5141, %v5144
        %vm5146 = vweird.f32 %v4989
        %vm5147 = vweird.f32 %v5141
        %vm5148 = vmor %vm5146, %vm5147
        %v5149 = vsel %vm5148, %v5141, %v5145
        %v5150 = vand.u32 2147483647, %v4989
        %vm5151 = vcmp.eq.f32.partialorder %v5150, 8.507059e+37
        %v5152 = vand.u32 %v4989, 2147483648
        %v5153 = vor.u32 1.1754944e-38, %v5152
        %v5154 = vsel %vm5151, %v5153, %v5149
        %v5155 = vmul.f32 1.0, %v5154
        %v5156 = vrcp.pop %v4990
        %v5157 = vmul.f32 %v4990, %v5156
        %v5158 = vsub.f32 1.0, %v5157
        %v5159 = vmul.f32 %v5156, %v5158
        %v5160 = vadd.f32 %v5156, %v5159
        %vm5161 = vweird.f32 %v4990
        %vm5162 = vweird.f32 %v5156
        %vm5163 = vmor %vm5161, %vm5162
        %v5164 = vsel %vm5163, %v5156, %v5160
        %v5165 = vand.u32 2147483647, %v4990
        %vm5166 = vcmp.eq.f32.partialorder %v5165, 8.507059e+37
        %v5167 = vand.u32 %v4990, 2147483648
        %v5168 = vor.u32 1.1754944e-38, %v5167
        %v5169 = vsel %vm5166, %v5168, %v5164
        %v5170 = vmul.f32 1.0, %v5169
        %v5171 = vrcp.pop %v4991
        %v5172 = vmul.f32 %v4991, %v5171
        %v5173 = vsub.f32 1.0, %v5172
        %v5174 = vmul.f32 %v5171, %v5173
        %v5175 = vadd.f32 %v5171, %v5174
        %vm5176 = vweird.f32 %v4991
        %vm5177 = vweird.f32 %v5171
        %vm5178 = vmor %vm5176, %vm5177
        %v5179 = vsel %vm5178, %v5171, %v5175
        %v5180 = vand.u32 2147483647, %v4991
        %vm5181 = vcmp.eq.f32.partialorder %v5180, 8.507059e+37
        %v5182 = vand.u32 %v4991, 2147483648
        %v5183 = vor.u32 1.1754944e-38, %v5182
        %v5184 = vsel %vm5181, %v5183, %v5179
        %v5185 = vmul.f32 1.0, %v5184
        %v5186 = vrcp.pop %v4992
        %v5187 = vmul.f32 %v4992, %v5186
        %v5188 = vsub.f32 1.0, %v5187
        %v5189 = vmul.f32 %v5186, %v5188
        %v5190 = vadd.f32 %v5186, %v5189
        %vm5191 = vweird.f32 %v4992
        %vm5192 = vweird.f32 %v5186
        %vm5193 = vmor %vm5191, %vm5192
        %v5194 = vsel %vm5193, %v5186, %v5190
        %v5195 = vand.u32 2147483647, %v4992
        %vm5196 = vcmp.eq.f32.partialorder %v5195, 8.507059e+37
        %v5197 = vand.u32 %v4992, 2147483648
        %v5198 = vor.u32 1.1754944e-38, %v5197
        %v5199 = vsel %vm5196, %v5198, %v5194
        %v5200 = vmul.f32 1.0, %v5199
        %v5201 = vrcp.pop %v4993
        %v5202 = vmul.f32 %v4993, %v5201
        %v5203 = vsub.f32 1.0, %v5202
        %v5204 = vmul.f32 %v5201, %v5203
        %v5205 = vadd.f32 %v5201, %v5204
        %vm5206 = vweird.f32 %v4993
        %vm5207 = vweird.f32 %v5201
        %vm5208 = vmor %vm5206, %vm5207
        %v5209 = vsel %vm5208, %v5201, %v5205
        %v5210 = vand.u32 2147483647, %v4993
        %vm5211 = vcmp.eq.f32.partialorder %v5210, 8.507059e+37
        %v5212 = vand.u32 %v4993, 2147483648
        %v5213 = vor.u32 1.1754944e-38, %v5212
        %v5214 = vsel %vm5211, %v5213, %v5209
        %v5215 = vmul.f32 1.0, %v5214
        %v5216 = vrcp.pop %v4994
        %v5217 = vmul.f32 %v4994, %v5216
        %v5218 = vsub.f32 1.0, %v5217
        %v5219 = vmul.f32 %v5216, %v5218
        %v5220 = vadd.f32 %v5216, %v5219
        %vm5221 = vweird.f32 %v4994
        %vm5222 = vweird.f32 %v5216
        %vm5223 = vmor %vm5221, %vm5222
        %v5224 = vsel %vm5223, %v5216, %v5220
        %v5225 = vand.u32 2147483647, %v4994
        %vm5226 = vcmp.eq.f32.partialorder %v5225, 8.507059e+37
        %v5227 = vand.u32 %v4994, 2147483648
        %v5228 = vor.u32 1.1754944e-38, %v5227
        %v5229 = vsel %vm5226, %v5228, %v5224
        %v5230 = vmul.f32 1.0, %v5229
        %v5231 = vrcp.pop %v4995
        %v5232 = vmul.f32 %v4995, %v5231
        %v5233 = vsub.f32 1.0, %v5232
        %v5234 = vmul.f32 %v5231, %v5233
        %v5235 = vadd.f32 %v5231, %v5234
        %vm5236 = vweird.f32 %v4995
        %vm5237 = vweird.f32 %v5231
        %vm5238 = vmor %vm5236, %vm5237
        %v5239 = vsel %vm5238, %v5231, %v5235
        %v5240 = vand.u32 2147483647, %v4995
        %vm5241 = vcmp.eq.f32.partialorder %v5240, 8.507059e+37
        %v5242 = vand.u32 %v4995, 2147483648
        %v5243 = vor.u32 1.1754944e-38, %v5242
        %v5244 = vsel %vm5241, %v5243, %v5239
        %v5245 = vmul.f32 1.0, %v5244
        %v5246 = vrcp.pop %v4996
        %v5247 = vmul.f32 %v4996, %v5246
        %v5248 = vsub.f32 1.0, %v5247
        %v5249 = vmul.f32 %v5246, %v5248
        %v5250 = vadd.f32 %v5246, %v5249
        %vm5251 = vweird.f32 %v4996
        %vm5252 = vweird.f32 %v5246
        %vm5253 = vmor %vm5251, %vm5252
        %v5254 = vsel %vm5253, %v5246, %v5250
        %v5255 = vand.u32 2147483647, %v4996
        %vm5256 = vcmp.eq.f32.partialorder %v5255, 8.507059e+37
        %v5257 = vand.u32 %v4996, 2147483648
        %v5258 = vor.u32 1.1754944e-38, %v5257
        %v5259 = vsel %vm5256, %v5258, %v5254
        %v5260 = vmul.f32 1.0, %v5259
        %v5261 = vrcp.pop %v4997
        %v5262 = vmul.f32 %v4997, %v5261
        %v5263 = vsub.f32 1.0, %v5262
        %v5264 = vmul.f32 %v5261, %v5263
        %v5265 = vadd.f32 %v5261, %v5264
        %vm5266 = vweird.f32 %v4997
        %vm5267 = vweird.f32 %v5261
        %vm5268 = vmor %vm5266, %vm5267
        %v5269 = vsel %vm5268, %v5261, %v5265
        %v5270 = vand.u32 2147483647, %v4997
        %vm5271 = vcmp.eq.f32.partialorder %v5270, 8.507059e+37
        %v5272 = vand.u32 %v4997, 2147483648
        %v5273 = vor.u32 1.1754944e-38, %v5272
        %v5274 = vsel %vm5271, %v5273, %v5269
        %v5275 = vmul.f32 1.0, %v5274
        %v5276 = vrcp.pop %v4998
        %v5277 = vmul.f32 %v4998, %v5276
        %v5278 = vsub.f32 1.0, %v5277
        %v5279 = vmul.f32 %v5276, %v5278
        %v5280 = vadd.f32 %v5276, %v5279
        %vm5281 = vweird.f32 %v4998
        %vm5282 = vweird.f32 %v5276
        %vm5283 = vmor %vm5281, %vm5282
        %v5284 = vsel %vm5283, %v5276, %v5280
        %v5285 = vand.u32 2147483647, %v4998
        %vm5286 = vcmp.eq.f32.partialorder %v5285, 8.507059e+37
        %v5287 = vand.u32 %v4998, 2147483648
        %v5288 = vor.u32 1.1754944e-38, %v5287
        %v5289 = vsel %vm5286, %v5288, %v5284
        %v5290 = vmul.f32 1.0, %v5289
        %v5291 = vrcp.pop %v4999
        %v5292 = vmul.f32 %v4999, %v5291
        %v5293 = vsub.f32 1.0, %v5292
        %v5294 = vmul.f32 %v5291, %v5293
        %v5295 = vadd.f32 %v5291, %v5294
        %vm5296 = vweird.f32 %v4999
        %vm5297 = vweird.f32 %v5291
        %vm5298 = vmor %vm5296, %vm5297
        %v5299 = vsel %vm5298, %v5291, %v5295
        %v5300 = vand.u32 2147483647, %v4999
        %vm5301 = vcmp.eq.f32.partialorder %v5300, 8.507059e+37
        %v5302 = vand.u32 %v4999, 2147483648
        %v5303 = vor.u32 1.1754944e-38, %v5302
        %v5304 = vsel %vm5301, %v5303, %v5299
        %v5305 = vmul.f32 1.0, %v5304
        %v5306 = vrcp.pop %v5000
        %v5307 = vmul.f32 %v5000, %v5306
        %v5308 = vsub.f32 1.0, %v5307
        %v5309 = vmul.f32 %v5306, %v5308
        %v5310 = vadd.f32 %v5306, %v5309
        %vm5311 = vweird.f32 %v5000
        %vm5312 = vweird.f32 %v5306
        %vm5313 = vmor %vm5311, %vm5312
        %v5314 = vsel %vm5313, %v5306, %v5310
        %v5315 = vand.u32 2147483647, %v5000
        %vm5316 = vcmp.eq.f32.partialorder %v5315, 8.507059e+37
        %v5317 = vand.u32 %v5000, 2147483648
        %v5318 = vor.u32 1.1754944e-38, %v5317
        %v5319 = vsel %vm5316, %v5318, %v5314
        %v5320 = vmul.f32 1.0, %v5319
        %v5321 = vrcp.pop %v5001
        %v5322 = vmul.f32 %v5001, %v5321
        %v5323 = vsub.f32 1.0, %v5322
        %v5324 = vmul.f32 %v5321, %v5323
        %v5325 = vadd.f32 %v5321, %v5324
        %vm5326 = vweird.f32 %v5001
        %vm5327 = vweird.f32 %v5321
        %vm5328 = vmor %vm5326, %vm5327
        %v5329 = vsel %vm5328, %v5321, %v5325
        %v5330 = vand.u32 2147483647, %v5001
        %vm5331 = vcmp.eq.f32.partialorder %v5330, 8.507059e+37
        %v5332 = vand.u32 %v5001, 2147483648
        %v5333 = vor.u32 1.1754944e-38, %v5332
        %v5334 = vsel %vm5331, %v5333, %v5329
        %v5335 = vmul.f32 1.0, %v5334
        %v5336 = vrcp.pop %v5002
        %v5337 = vmul.f32 %v5002, %v5336
        %v5338 = vsub.f32 1.0, %v5337
        %v5339 = vmul.f32 %v5336, %v5338
        %v5340 = vadd.f32 %v5336, %v5339
        %vm5341 = vweird.f32 %v5002
        %vm5342 = vweird.f32 %v5336
        %vm5343 = vmor %vm5341, %vm5342
        %v5344 = vsel %vm5343, %v5336, %v5340
        %v5345 = vand.u32 2147483647, %v5002
        %vm5346 = vcmp.eq.f32.partialorder %v5345, 8.507059e+37
        %v5347 = vand.u32 %v5002, 2147483648
        %v5348 = vor.u32 1.1754944e-38, %v5347
        %v5349 = vsel %vm5346, %v5348, %v5344
        %v5350 = vmul.f32 1.0, %v5349
        %v5351 = vrcp.pop %v5003
        %v5352 = vmul.f32 %v5003, %v5351
        %v5353 = vsub.f32 1.0, %v5352
        %v5354 = vmul.f32 %v5351, %v5353
        %v5355 = vadd.f32 %v5351, %v5354
        %vm5356 = vweird.f32 %v5003
        %vm5357 = vweird.f32 %v5351
        %vm5358 = vmor %vm5356, %vm5357
        %v5359 = vsel %vm5358, %v5351, %v5355
        %v5360 = vand.u32 2147483647, %v5003
        %vm5361 = vcmp.eq.f32.partialorder %v5360, 8.507059e+37
        %v5362 = vand.u32 %v5003, 2147483648
        %v5363 = vor.u32 1.1754944e-38, %v5362
        %v5364 = vsel %vm5361, %v5363, %v5359
        %v5365 = vmul.f32 1.0, %v5364
        %v5366 = vrcp.pop %v5004
        %v5367 = vmul.f32 %v5004, %v5366
        %v5368 = vsub.f32 1.0, %v5367
        %v5369 = vmul.f32 %v5366, %v5368
        %v5370 = vadd.f32 %v5366, %v5369
        %vm5371 = vweird.f32 %v5004
        %vm5372 = vweird.f32 %v5366
        %vm5373 = vmor %vm5371, %vm5372
        %v5374 = vsel %vm5373, %v5366, %v5370
        %v5375 = vand.u32 2147483647, %v5004
        %vm5376 = vcmp.eq.f32.partialorder %v5375, 8.507059e+37
        %v5377 = vand.u32 %v5004, 2147483648
        %v5378 = vor.u32 1.1754944e-38, %v5377
        %v5379 = vsel %vm5376, %v5378, %v5374
        %v5380 = vmul.f32 1.0, %v5379
        %v5381 = vrcp.pop %v5005
        %v5382 = vmul.f32 %v5005, %v5381
        %v5383 = vsub.f32 1.0, %v5382
        %v5384 = vmul.f32 %v5381, %v5383
        %v5385 = vadd.f32 %v5381, %v5384
        %vm5386 = vweird.f32 %v5005
        %vm5387 = vweird.f32 %v5381
        %vm5388 = vmor %vm5386, %vm5387
        %v5389 = vsel %vm5388, %v5381, %v5385
        %v5390 = vand.u32 2147483647, %v5005
        %vm5391 = vcmp.eq.f32.partialorder %v5390, 8.507059e+37
        %v5392 = vand.u32 %v5005, 2147483648
        %v5393 = vor.u32 1.1754944e-38, %v5392
        %v5394 = vsel %vm5391, %v5393, %v5389
        %v5395 = vmul.f32 1.0, %v5394
        %v5396 = vrcp.pop %v5006
        %v5397 = vmul.f32 %v5006, %v5396
        %v5398 = vsub.f32 1.0, %v5397
        %v5399 = vmul.f32 %v5396, %v5398
        %v5400 = vadd.f32 %v5396, %v5399
        %vm5401 = vweird.f32 %v5006
        %vm5402 = vweird.f32 %v5396
        %vm5403 = vmor %vm5401, %vm5402
        %v5404 = vsel %vm5403, %v5396, %v5400
        %v5405 = vand.u32 2147483647, %v5006
        %vm5406 = vcmp.eq.f32.partialorder %v5405, 8.507059e+37
        %v5407 = vand.u32 %v5006, 2147483648
        %v5408 = vor.u32 1.1754944e-38, %v5407
        %v5409 = vsel %vm5406, %v5408, %v5404
        %v5410 = vmul.f32 1.0, %v5409
        %v5411 = vrcp.pop %v5007
        %v5412 = vmul.f32 %v5007, %v5411
        %v5413 = vsub.f32 1.0, %v5412
        %v5414 = vmul.f32 %v5411, %v5413
        %v5415 = vadd.f32 %v5411, %v5414
        %vm5416 = vweird.f32 %v5007
        %vm5417 = vweird.f32 %v5411
        %vm5418 = vmor %vm5416, %vm5417
        %v5419 = vsel %vm5418, %v5411, %v5415
        %v5420 = vand.u32 2147483647, %v5007
        %vm5421 = vcmp.eq.f32.partialorder %v5420, 8.507059e+37
        %v5422 = vand.u32 %v5007, 2147483648
        %v5423 = vor.u32 1.1754944e-38, %v5422
        %v5424 = vsel %vm5421, %v5423, %v5419
        %v5425 = vmul.f32 1.0, %v5424
        %v5426 = vrcp.pop %v5008
        %v5427 = vmul.f32 %v5008, %v5426
        %v5428 = vsub.f32 1.0, %v5427
        %v5429 = vmul.f32 %v5426, %v5428
        %v5430 = vadd.f32 %v5426, %v5429
        %vm5431 = vweird.f32 %v5008
        %vm5432 = vweird.f32 %v5426
        %vm5433 = vmor %vm5431, %vm5432
        %v5434 = vsel %vm5433, %v5426, %v5430
        %v5435 = vand.u32 2147483647, %v5008
        %vm5436 = vcmp.eq.f32.partialorder %v5435, 8.507059e+37
        %v5437 = vand.u32 %v5008, 2147483648
        %v5438 = vor.u32 1.1754944e-38, %v5437
        %v5439 = vsel %vm5436, %v5438, %v5434
        %v5440 = vmul.f32 1.0, %v5439
        %v5441 = vrcp.pop %v5009
        %v5442 = vmul.f32 %v5009, %v5441
        %v5443 = vsub.f32 1.0, %v5442
        %v5444 = vmul.f32 %v5441, %v5443
        %v5445 = vadd.f32 %v5441, %v5444
        %vm5446 = vweird.f32 %v5009
        %vm5447 = vweird.f32 %v5441
        %vm5448 = vmor %vm5446, %vm5447
        %v5449 = vsel %vm5448, %v5441, %v5445
        %v5450 = vand.u32 2147483647, %v5009
        %vm5451 = vcmp.eq.f32.partialorder %v5450, 8.507059e+37
        %v5452 = vand.u32 %v5009, 2147483648
        %v5453 = vor.u32 1.1754944e-38, %v5452
        %v5454 = vsel %vm5451, %v5453, %v5449
        %v5455 = vmul.f32 1.0, %v5454
        %v5456 = vrcp.pop %v5010
        %v5457 = vmul.f32 %v5010, %v5456
        %v5458 = vsub.f32 1.0, %v5457
        %v5459 = vmul.f32 %v5456, %v5458
        %v5460 = vadd.f32 %v5456, %v5459
        %vm5461 = vweird.f32 %v5010
        %vm5462 = vweird.f32 %v5456
        %vm5463 = vmor %vm5461, %vm5462
        %v5464 = vsel %vm5463, %v5456, %v5460
        %v5465 = vand.u32 2147483647, %v5010
        %vm5466 = vcmp.eq.f32.partialorder %v5465, 8.507059e+37
        %v5467 = vand.u32 %v5010, 2147483648
        %v5468 = vor.u32 1.1754944e-38, %v5467
        %v5469 = vsel %vm5466, %v5468, %v5464
        %v5470 = vmul.f32 1.0, %v5469
        %v5471 = vrcp.pop %v5011
        %v5472 = vmul.f32 %v5011, %v5471
        %v5473 = vsub.f32 1.0, %v5472
        %v5474 = vmul.f32 %v5471, %v5473
        %v5475 = vadd.f32 %v5471, %v5474
        %vm5476 = vweird.f32 %v5011
        %vm5477 = vweird.f32 %v5471
        %vm5478 = vmor %vm5476, %vm5477
        %v5479 = vsel %vm5478, %v5471, %v5475
        %v5480 = vand.u32 2147483647, %v5011
        %vm5481 = vcmp.eq.f32.partialorder %v5480, 8.507059e+37
        %v5482 = vand.u32 %v5011, 2147483648
        %v5483 = vor.u32 1.1754944e-38, %v5482
        %v5484 = vsel %vm5481, %v5483, %v5479
        %v5485 = vmul.f32 1.0, %v5484
        %v5486 = vrcp.pop %v5012
        %v5487 = vmul.f32 %v5012, %v5486
        %v5488 = vsub.f32 1.0, %v5487
        %v5489 = vmul.f32 %v5486, %v5488
        %v5490 = vadd.f32 %v5486, %v5489
        %vm5491 = vweird.f32 %v5012
        %vm5492 = vweird.f32 %v5486
        %vm5493 = vmor %vm5491, %vm5492
        %v5494 = vsel %vm5493, %v5486, %v5490
        %v5495 = vand.u32 2147483647, %v5012
        %vm5496 = vcmp.eq.f32.partialorder %v5495, 8.507059e+37
        %v5497 = vand.u32 %v5012, 2147483648
        %v5498 = vor.u32 1.1754944e-38, %v5497
        %v5499 = vsel %vm5496, %v5498, %v5494
        %v5500 = vmul.f32 1.0, %v5499
        %v5501 = vrcp.pop %v5013
        %v5502 = vmul.f32 %v5013, %v5501
        %v5503 = vsub.f32 1.0, %v5502
        %v5504 = vmul.f32 %v5501, %v5503
        %v5505 = vadd.f32 %v5501, %v5504
        %vm5506 = vweird.f32 %v5013
        %vm5507 = vweird.f32 %v5501
        %vm5508 = vmor %vm5506, %vm5507
        %v5509 = vsel %vm5508, %v5501, %v5505
        %v5510 = vand.u32 2147483647, %v5013
        %vm5511 = vcmp.eq.f32.partialorder %v5510, 8.507059e+37
        %v5512 = vand.u32 %v5013, 2147483648
        %v5513 = vor.u32 1.1754944e-38, %v5512
        %v5514 = vsel %vm5511, %v5513, %v5509
        %v5515 = vmul.f32 1.0, %v5514
        %v5516 = vrcp.pop %v5014
        %v5517 = vmul.f32 %v5014, %v5516
        %v5518 = vsub.f32 1.0, %v5517
        %v5519 = vmul.f32 %v5516, %v5518
        %v5520 = vadd.f32 %v5516, %v5519
        %vm5521 = vweird.f32 %v5014
        %vm5522 = vweird.f32 %v5516
        %vm5523 = vmor %vm5521, %vm5522
        %v5524 = vsel %vm5523, %v5516, %v5520
        %v5525 = vand.u32 2147483647, %v5014
        %vm5526 = vcmp.eq.f32.partialorder %v5525, 8.507059e+37
        %v5527 = vand.u32 %v5014, 2147483648
        %v5528 = vor.u32 1.1754944e-38, %v5527
        %v5529 = vsel %vm5526, %v5528, %v5524
        %v5530 = vmul.f32 1.0, %v5529
        %v5531 = vrcp.pop %v5015
        %v5532 = vmul.f32 %v5015, %v5531
        %v5533 = vsub.f32 1.0, %v5532
        %v5534 = vmul.f32 %v5531, %v5533
        %v5535 = vadd.f32 %v5531, %v5534
        %vm5536 = vweird.f32 %v5015
        %vm5537 = vweird.f32 %v5531
        %vm5538 = vmor %vm5536, %vm5537
        %v5539 = vsel %vm5538, %v5531, %v5535
        %v5540 = vand.u32 2147483647, %v5015
        %vm5541 = vcmp.eq.f32.partialorder %v5540, 8.507059e+37
        %v5542 = vand.u32 %v5015, 2147483648
        %v5543 = vor.u32 1.1754944e-38, %v5542
        %v5544 = vsel %vm5541, %v5543, %v5539
        %v5545 = vmul.f32 1.0, %v5544
        %v5546 = vrcp.pop %v5016
        %v5547 = vmul.f32 %v5016, %v5546
        %v5548 = vsub.f32 1.0, %v5547
        %v5549 = vmul.f32 %v5546, %v5548
        %v5550 = vadd.f32 %v5546, %v5549
        %vm5551 = vweird.f32 %v5016
        %vm5552 = vweird.f32 %v5546
        %vm5553 = vmor %vm5551, %vm5552
        %v5554 = vsel %vm5553, %v5546, %v5550
        %v5555 = vand.u32 2147483647, %v5016
        %vm5556 = vcmp.eq.f32.partialorder %v5555, 8.507059e+37
        %v5557 = vand.u32 %v5016, 2147483648
        %v5558 = vor.u32 1.1754944e-38, %v5557
        %v5559 = vsel %vm5556, %v5558, %v5554
        %v5560 = vmul.f32 1.0, %v5559
        %v5561 = vrcp.pop %v5017
        %v5562 = vmul.f32 %v5017, %v5561
        %v5563 = vsub.f32 1.0, %v5562
        %v5564 = vmul.f32 %v5561, %v5563
        %v5565 = vadd.f32 %v5561, %v5564
        %vm5566 = vweird.f32 %v5017
        %vm5567 = vweird.f32 %v5561
        %vm5568 = vmor %vm5566, %vm5567
        %v5569 = vsel %vm5568, %v5561, %v5565
        %v5570 = vand.u32 2147483647, %v5017
        %vm5571 = vcmp.eq.f32.partialorder %v5570, 8.507059e+37
        %v5572 = vand.u32 %v5017, 2147483648
        %v5573 = vor.u32 1.1754944e-38, %v5572
        %v5574 = vsel %vm5571, %v5573, %v5569
        %v5575 = vmul.f32 1.0, %v5574
        %v5576 = vrcp.pop %v5018
        %v5577 = vmul.f32 %v5018, %v5576
        %v5578 = vsub.f32 1.0, %v5577
        %v5579 = vmul.f32 %v5576, %v5578
        %v5580 = vadd.f32 %v5576, %v5579
        %vm5581 = vweird.f32 %v5018
        %vm5582 = vweird.f32 %v5576
        %vm5583 = vmor %vm5581, %vm5582
        %v5584 = vsel %vm5583, %v5576, %v5580
        %v5585 = vand.u32 2147483647, %v5018
        %vm5586 = vcmp.eq.f32.partialorder %v5585, 8.507059e+37
        %v5587 = vand.u32 %v5018, 2147483648
        %v5588 = vor.u32 1.1754944e-38, %v5587
        %v5589 = vsel %vm5586, %v5588, %v5584
        %v5590 = vmul.f32 1.0, %v5589
        %v5591 = vrcp.pop %v5019
        %v5592 = vmul.f32 %v5019, %v5591
        %v5593 = vsub.f32 1.0, %v5592
        %v5594 = vmul.f32 %v5591, %v5593
        %v5595 = vadd.f32 %v5591, %v5594
        %vm5596 = vweird.f32 %v5019
        %vm5597 = vweird.f32 %v5591
        %vm5598 = vmor %vm5596, %vm5597
        %v5599 = vsel %vm5598, %v5591, %v5595
        %v5600 = vand.u32 2147483647, %v5019
        %vm5601 = vcmp.eq.f32.partialorder %v5600, 8.507059e+37
        %v5602 = vand.u32 %v5019, 2147483648
        %v5603 = vor.u32 1.1754944e-38, %v5602
        %v5604 = vsel %vm5601, %v5603, %v5599
        %v5605 = vmul.f32 1.0, %v5604
        %v5606 = vrcp.pop %v5020
        %v5607 = vmul.f32 %v5020, %v5606
        %v5608 = vsub.f32 1.0, %v5607
        %v5609 = vmul.f32 %v5606, %v5608
        %v5610 = vadd.f32 %v5606, %v5609
        %vm5611 = vweird.f32 %v5020
        %vm5612 = vweird.f32 %v5606
        %vm5613 = vmor %vm5611, %vm5612
        %v5614 = vsel %vm5613, %v5606, %v5610
        %v5615 = vand.u32 2147483647, %v5020
        %vm5616 = vcmp.eq.f32.partialorder %v5615, 8.507059e+37
        %v5617 = vand.u32 %v5020, 2147483648
        %v5618 = vor.u32 1.1754944e-38, %v5617
        %v5619 = vsel %vm5616, %v5618, %v5614
        %v5620 = vmul.f32 1.0, %v5619
        %v5621 = vrcp.pop %v5021
        %v5622 = vmul.f32 %v5021, %v5621
        %v5623 = vsub.f32 1.0, %v5622
        %v5624 = vmul.f32 %v5621, %v5623
        %v5625 = vadd.f32 %v5621, %v5624
        %vm5626 = vweird.f32 %v5021
        %vm5627 = vweird.f32 %v5621
        %vm5628 = vmor %vm5626, %vm5627
        %v5629 = vsel %vm5628, %v5621, %v5625
        %v5630 = vand.u32 2147483647, %v5021
        %vm5631 = vcmp.eq.f32.partialorder %v5630, 8.507059e+37
        %v5632 = vand.u32 %v5021, 2147483648
        %v5633 = vor.u32 1.1754944e-38, %v5632
        %v5634 = vsel %vm5631, %v5633, %v5629
        %v5635 = vmul.f32 1.0, %v5634
        %v5636 = vrcp.pop %v5022
        %v5637 = vmul.f32 %v5022, %v5636
        %v5638 = vsub.f32 1.0, %v5637
        %v5639 = vmul.f32 %v5636, %v5638
        %v5640 = vadd.f32 %v5636, %v5639
        %vm5641 = vweird.f32 %v5022
        %vm5642 = vweird.f32 %v5636
        %vm5643 = vmor %vm5641, %vm5642
        %v5644 = vsel %vm5643, %v5636, %v5640
        %v5645 = vand.u32 2147483647, %v5022
        %vm5646 = vcmp.eq.f32.partialorder %v5645, 8.507059e+37
        %v5647 = vand.u32 %v5022, 2147483648
        %v5648 = vor.u32 1.1754944e-38, %v5647
        %v5649 = vsel %vm5646, %v5648, %v5644
        %v5650 = vmul.f32 1.0, %v5649
        %v5651 = vrcp.pop %v5023
        %v5652 = vmul.f32 %v5023, %v5651
        %v5653 = vsub.f32 1.0, %v5652
        %v5654 = vmul.f32 %v5651, %v5653
        %v5655 = vadd.f32 %v5651, %v5654
        %vm5656 = vweird.f32 %v5023
        %vm5657 = vweird.f32 %v5651
        %vm5658 = vmor %vm5656, %vm5657
        %v5659 = vsel %vm5658, %v5651, %v5655
        %v5660 = vand.u32 2147483647, %v5023
        %vm5661 = vcmp.eq.f32.partialorder %v5660, 8.507059e+37
        %v5662 = vand.u32 %v5023, 2147483648
        %v5663 = vor.u32 1.1754944e-38, %v5662
        %v5664 = vsel %vm5661, %v5663, %v5659
        %v5665 = vmul.f32 1.0, %v5664
        %v5666 = vrcp.pop %v5024
        %v5667 = vmul.f32 %v5024, %v5666
        %v5668 = vsub.f32 1.0, %v5667
        %v5669 = vmul.f32 %v5666, %v5668
        %v5670 = vadd.f32 %v5666, %v5669
        %vm5671 = vweird.f32 %v5024
        %vm5672 = vweird.f32 %v5666
        %vm5673 = vmor %vm5671, %vm5672
        %v5674 = vsel %vm5673, %v5666, %v5670
        %v5675 = vand.u32 2147483647, %v5024
        %vm5676 = vcmp.eq.f32.partialorder %v5675, 8.507059e+37
        %v5677 = vand.u32 %v5024, 2147483648
        %v5678 = vor.u32 1.1754944e-38, %v5677
        %v5679 = vsel %vm5676, %v5678, %v5674
        %v5680 = vmul.f32 1.0, %v5679
        %v5681 = vrcp.pop %v5025
        %v5682 = vmul.f32 %v5025, %v5681
        %v5683 = vsub.f32 1.0, %v5682
        %v5684 = vmul.f32 %v5681, %v5683
        %v5685 = vadd.f32 %v5681, %v5684
        %vm5686 = vweird.f32 %v5025
        %vm5687 = vweird.f32 %v5681
        %vm5688 = vmor %vm5686, %vm5687
        %v5689 = vsel %vm5688, %v5681, %v5685
        %v5690 = vand.u32 2147483647, %v5025
        %vm5691 = vcmp.eq.f32.partialorder %v5690, 8.507059e+37
        %v5692 = vand.u32 %v5025, 2147483648
        %v5693 = vor.u32 1.1754944e-38, %v5692
        %v5694 = vsel %vm5691, %v5693, %v5689
        %v5695 = vmul.f32 1.0, %v5694
        %v5696 = vrcp.pop %v5026
        %v5697 = vmul.f32 %v5026, %v5696
        %v5698 = vsub.f32 1.0, %v5697
        %v5699 = vmul.f32 %v5696, %v5698
        %v5700 = vadd.f32 %v5696, %v5699
        %vm5701 = vweird.f32 %v5026
        %vm5702 = vweird.f32 %v5696
        %vm5703 = vmor %vm5701, %vm5702
        %v5704 = vsel %vm5703, %v5696, %v5700
        %v5705 = vand.u32 2147483647, %v5026
        %vm5706 = vcmp.eq.f32.partialorder %v5705, 8.507059e+37
        %v5707 = vand.u32 %v5026, 2147483648
        %v5708 = vor.u32 1.1754944e-38, %v5707
        %v5709 = vsel %vm5706, %v5708, %v5704
        %v5710 = vmul.f32 1.0, %v5709
        %v5711 = vrcp.pop %v5027
        %v5712 = vmul.f32 %v5027, %v5711
        %v5713 = vsub.f32 1.0, %v5712
        %v5714 = vmul.f32 %v5711, %v5713
        %v5715 = vadd.f32 %v5711, %v5714
        %vm5716 = vweird.f32 %v5027
        %vm5717 = vweird.f32 %v5711
        %vm5718 = vmor %vm5716, %vm5717
        %v5719 = vsel %vm5718, %v5711, %v5715
        %v5720 = vand.u32 2147483647, %v5027
        %vm5721 = vcmp.eq.f32.partialorder %v5720, 8.507059e+37
        %v5722 = vand.u32 %v5027, 2147483648
        %v5723 = vor.u32 1.1754944e-38, %v5722
        %v5724 = vsel %vm5721, %v5723, %v5719
        %v5725 = vmul.f32 1.0, %v5724
        %v5726 = vrcp.pop %v5028
        %v5727 = vmul.f32 %v5028, %v5726
        %v5728 = vsub.f32 1.0, %v5727
        %v5729 = vmul.f32 %v5726, %v5728
        %v5730 = vadd.f32 %v5726, %v5729
        %vm5731 = vweird.f32 %v5028
        %vm5732 = vweird.f32 %v5726
        %vm5733 = vmor %vm5731, %vm5732
        %v5734 = vsel %vm5733, %v5726, %v5730
        %v5735 = vand.u32 2147483647, %v5028
        %vm5736 = vcmp.eq.f32.partialorder %v5735, 8.507059e+37
        %v5737 = vand.u32 %v5028, 2147483648
        %v5738 = vor.u32 1.1754944e-38, %v5737
        %v5739 = vsel %vm5736, %v5738, %v5734
        %v5740 = vmul.f32 1.0, %v5739
        %v5741 = vrcp.pop %v5029
        %v5742 = vmul.f32 %v5029, %v5741
        %v5743 = vsub.f32 1.0, %v5742
        %v5744 = vmul.f32 %v5741, %v5743
        %v5745 = vadd.f32 %v5741, %v5744
        %vm5746 = vweird.f32 %v5029
        %vm5747 = vweird.f32 %v5741
        %vm5748 = vmor %vm5746, %vm5747
        %v5749 = vsel %vm5748, %v5741, %v5745
        %v5750 = vand.u32 2147483647, %v5029
        %vm5751 = vcmp.eq.f32.partialorder %v5750, 8.507059e+37
        %v5752 = vand.u32 %v5029, 2147483648
        %v5753 = vor.u32 1.1754944e-38, %v5752
        %v5754 = vsel %vm5751, %v5753, %v5749
        %v5755 = vmul.f32 1.0, %v5754
        %v5756 = vrcp.pop %v5030
        %v5757 = vmul.f32 %v5030, %v5756
        %v5758 = vsub.f32 1.0, %v5757
        %v5759 = vmul.f32 %v5756, %v5758
        %v5760 = vadd.f32 %v5756, %v5759
        %vm5761 = vweird.f32 %v5030
        %vm5762 = vweird.f32 %v5756
        %vm5763 = vmor %vm5761, %vm5762
        %v5764 = vsel %vm5763, %v5756, %v5760
        %v5765 = vand.u32 2147483647, %v5030
        %vm5766 = vcmp.eq.f32.partialorder %v5765, 8.507059e+37
        %v5767 = vand.u32 %v5030, 2147483648
        %v5768 = vor.u32 1.1754944e-38, %v5767
        %v5769 = vsel %vm5766, %v5768, %v5764
        %v5770 = vmul.f32 1.0, %v5769
        %v5771 = vrcp.pop %v5031
        %v5772 = vmul.f32 %v5031, %v5771
        %v5773 = vsub.f32 1.0, %v5772
        %v5774 = vmul.f32 %v5771, %v5773
        %v5775 = vadd.f32 %v5771, %v5774
        %vm5776 = vweird.f32 %v5031
        %vm5777 = vweird.f32 %v5771
        %vm5778 = vmor %vm5776, %vm5777
        %v5779 = vsel %vm5778, %v5771, %v5775
        %v5780 = vand.u32 2147483647, %v5031
        %vm5781 = vcmp.eq.f32.partialorder %v5780, 8.507059e+37
        %v5782 = vand.u32 %v5031, 2147483648
        %v5783 = vor.u32 1.1754944e-38, %v5782
        %v5784 = vsel %vm5781, %v5783, %v5779
        %v5785 = vmul.f32 1.0, %v5784
        %v5786 = vrcp.pop %v5032
        %v5787 = vmul.f32 %v5032, %v5786
        %v5788 = vsub.f32 1.0, %v5787
        %v5789 = vmul.f32 %v5786, %v5788
        %v5790 = vadd.f32 %v5786, %v5789
        %vm5791 = vweird.f32 %v5032
        %vm5792 = vweird.f32 %v5786
        %vm5793 = vmor %vm5791, %vm5792
        %v5794 = vsel %vm5793, %v5786, %v5790
        %v5795 = vand.u32 2147483647, %v5032
        %vm5796 = vcmp.eq.f32.partialorder %v5795, 8.507059e+37
        %v5797 = vand.u32 %v5032, 2147483648
        %v5798 = vor.u32 1.1754944e-38, %v5797
        %v5799 = vsel %vm5796, %v5798, %v5794
        %v5800 = vmul.f32 1.0, %v5799
        %v5801 = vrcp.pop %v5033
        %v5802 = vmul.f32 %v5033, %v5801
        %v5803 = vsub.f32 1.0, %v5802
        %v5804 = vmul.f32 %v5801, %v5803
        %v5805 = vadd.f32 %v5801, %v5804
        %vm5806 = vweird.f32 %v5033
        %vm5807 = vweird.f32 %v5801
        %vm5808 = vmor %vm5806, %vm5807
        %v5809 = vsel %vm5808, %v5801, %v5805
        %v5810 = vand.u32 2147483647, %v5033
        %vm5811 = vcmp.eq.f32.partialorder %v5810, 8.507059e+37
        %v5812 = vand.u32 %v5033, 2147483648
        %v5813 = vor.u32 1.1754944e-38, %v5812
        %v5814 = vsel %vm5811, %v5813, %v5809
        %v5815 = vmul.f32 1.0, %v5814
        %v5816 = vrcp.pop %v5034
        %v5817 = vmul.f32 %v5034, %v5816
        %v5818 = vsub.f32 1.0, %v5817
        %v5819 = vmul.f32 %v5816, %v5818
        %v5820 = vadd.f32 %v5816, %v5819
        %vm5821 = vweird.f32 %v5034
        %vm5822 = vweird.f32 %v5816
        %vm5823 = vmor %vm5821, %vm5822
        %v5824 = vsel %vm5823, %v5816, %v5820
        %v5825 = vand.u32 2147483647, %v5034
        %vm5826 = vcmp.eq.f32.partialorder %v5825, 8.507059e+37
        %v5827 = vand.u32 %v5034, 2147483648
        %v5828 = vor.u32 1.1754944e-38, %v5827
        %v5829 = vsel %vm5826, %v5828, %v5824
        %v5830 = vmul.f32 1.0, %v5829
        %v5831 = vrcp.pop %v5035
        %v5832 = vmul.f32 %v5035, %v5831
        %v5833 = vsub.f32 1.0, %v5832
        %v5834 = vmul.f32 %v5831, %v5833
        %v5835 = vadd.f32 %v5831, %v5834
        %vm5836 = vweird.f32 %v5035
        %vm5837 = vweird.f32 %v5831
        %vm5838 = vmor %vm5836, %vm5837
        %v5839 = vsel %vm5838, %v5831, %v5835
        %v5840 = vand.u32 2147483647, %v5035
        %vm5841 = vcmp.eq.f32.partialorder %v5840, 8.507059e+37
        %v5842 = vand.u32 %v5035, 2147483648
        %v5843 = vor.u32 1.1754944e-38, %v5842
        %v5844 = vsel %vm5841, %v5843, %v5839
        %v5845 = vmul.f32 1.0, %v5844
        %v5846 = vmul.f32 %v4766, %v5050
        %v5847 = vmul.f32 %v4767, %v5065
        %v5848 = vmul.f32 %v4768, %v5080
        %v5849 = vmul.f32 %v4769, %v5095
        %v5850 = vmul.f32 %v4770, %v5110
        %v5851 = vmul.f32 %v4771, %v5125
        %v5852 = vmul.f32 %v4772, %v5140
        %v5853 = vmul.f32 %v4773, %v5155
        %v5854 = vmul.f32 %v4774, %v5170
        %v5855 = vmul.f32 %v4775, %v5185
        %v5856 = vmul.f32 %v4776, %v5200
        %v5857 = vmul.f32 %v4777, %v5215
        %v5858 = vmul.f32 %v4778, %v5230
        %v5859 = vmul.f32 %v4779, %v5245
        %v5860 = vmul.f32 %v4780, %v5260
        %v5861 = vmul.f32 %v4781, %v5275
        %v5862 = vmul.f32 %v4782, %v5290
        %v5863 = vmul.f32 %v4783, %v5305
        %v5864 = vmul.f32 %v4784, %v5320
        %v5865 = vmul.f32 %v4785, %v5335
        %v5866 = vmul.f32 %v4786, %v5350
        %v5867 = vmul.f32 %v4787, %v5365
        %v5868 = vmul.f32 %v4788, %v5380
        %v5869 = vmul.f32 %v4789, %v5395
        %v5870 = vmul.f32 %v4790, %v5410
        %v5871 = vmul.f32 %v4791, %v5425
        %v5872 = vmul.f32 %v4792, %v5440
        %v5873 = vmul.f32 %v4793, %v5455
        %v5874 = vmul.f32 %v4794, %v5470
        %v5875 = vmul.f32 %v4795, %v5485
        %v5876 = vmul.f32 %v4796, %v5500
        %v5877 = vmul.f32 %v4797, %v5515
        %v5878 = vmul.f32 %v4798, %v5530
        %v5879 = vmul.f32 %v4799, %v5545
        %v5880 = vmul.f32 %v4800, %v5560
        %v5881 = vmul.f32 %v4801, %v5575
        %v5882 = vmul.f32 %v4802, %v5590
        %v5883 = vmul.f32 %v4803, %v5605
        %v5884 = vmul.f32 %v4804, %v5620
        %v5885 = vmul.f32 %v4805, %v5635
        %v5886 = vmul.f32 %v4806, %v5650
        %v5887 = vmul.f32 %v4807, %v5665
        %v5888 = vmul.f32 %v4808, %v5680
        %v5889 = vmul.f32 %v4809, %v5695
        %v5890 = vmul.f32 %v4810, %v5710
        %v5891 = vmul.f32 %v4811, %v5725
        %v5892 = vmul.f32 %v4812, %v5740
        %v5893 = vmul.f32 %v4813, %v5755
        %v5894 = vmul.f32 %v4814, %v5770
        %v5895 = vmul.f32 %v4815, %v5785
        %v5896 = vmul.f32 %v4816, %v5800
        %v5897 = vmul.f32 %v4817, %v5815
        %v5898 = vmul.f32 %v4818, %v5830
        %v5899 = vmul.f32 %v4819, %v5845
        %5900 = vst [vmem:[%s322] sm:$0xff] %v5846
        %5901 = vst [vmem:[%s322 + $0x8] sm:$0xff] %v5847
        %5902 = vst [vmem:[%s322 + $0x10] sm:$0xff] %v5848
        %5903 = vst [vmem:[%s322 + $0x18] sm:$0xff] %v5849
        %5904 = vst [vmem:[%s322 + $0x20] sm:$0xff] %v5850
        %5905 = vst [vmem:[%s322 + $0x28] sm:$0xff] %v5851
        %5906 = vst [vmem:[%s322 + $0x30] sm:$0xff] %v5852
        %5907 = vst [vmem:[%s322 + $0x38] sm:$0xff] %v5853
        %5908 = vst [vmem:[%s322 + $0x40] sm:$0xff] %v5854
        %5909 = vst [vmem:[%s322 + $0x48] sm:$0xff] %v5855
        %5910 = vst [vmem:[%s322 + $0x50] sm:$0xff] %v5856
        %5911 = vst [vmem:[%s322 + $0x58] sm:$0xff] %v5857
        %5912 = vst [vmem:[%s322 + $0x60] sm:$0xff] %v5858
        %5913 = vst [vmem:[%s322 + $0x68] sm:$0xff] %v5859
        %5914 = vst [vmem:[%s322 + $0x70] sm:$0xff] %v5860
        %5915 = vst [vmem:[%s322 + $0x78] sm:$0xff] %v5861
        %5916 = vst [vmem:[%s322 + $0x80] sm:$0xff] %v5862
        %5917 = vst [vmem:[%s322 + $0x88] sm:$0xff] %v5863
        %5918 = vst [vmem:[%s322 + $0x90] sm:$0xff] %v5864
        %5919 = vst [vmem:[%s322 + $0x98] sm:$0xff] %v5865
        %5920 = vst [vmem:[%s322 + $0xa0] sm:$0xff] %v5866
        %5921 = vst [vmem:[%s322 + $0xa8] sm:$0xff] %v5867
        %5922 = vst [vmem:[%s322 + $0xb0] sm:$0xff] %v5868
        %5923 = vst [vmem:[%s322 + $0xb8] sm:$0xff] %v5869
        %5924 = vst [vmem:[%s322 + $0xc0] sm:$0xff] %v5870
        %5925 = vst [vmem:[%s322 + $0xc8] sm:$0xff] %v5871
        %5926 = vst [vmem:[%s322 + $0xd0] sm:$0xff] %v5872
        %5927 = vst [vmem:[%s322 + $0xd8] sm:$0xff] %v5873
        %5928 = vst [vmem:[%s322 + $0xe0] sm:$0xff] %v5874
        %5929 = vst [vmem:[%s322 + $0xe8] sm:$0xff] %v5875
        %5930 = vst [vmem:[%s322 + $0xf0] sm:$0xff] %v5876
        %5931 = vst [vmem:[%s322 + $0xf8] sm:$0xff] %v5877
        %5932 = vst [vmem:[%s322 + $0x100] sm:$0xff] %v5878
        %5933 = vst [vmem:[%s322 + $0x108] sm:$0xff] %v5879
        %5934 = vst [vmem:[%s322 + $0x110] sm:$0xff] %v5880
        %5935 = vst [vmem:[%s322 + $0x118] sm:$0xff] %v5881
        %5936 = vst [vmem:[%s322 + $0x120] sm:$0xff] %v5882
        %5937 = vst [vmem:[%s322 + $0x128] sm:$0xff] %v5883
        %5938 = vst [vmem:[%s322 + $0x130] sm:$0xff] %v5884
        %5939 = vst [vmem:[%s322 + $0x138] sm:$0xff] %v5885
        %5940 = vst [vmem:[%s322 + $0x140] sm:$0xff] %v5886
        %5941 = vst [vmem:[%s322 + $0x148] sm:$0xff] %v5887
        %5942 = vst [vmem:[%s322 + $0x150] sm:$0xff] %v5888
        %5943 = vst [vmem:[%s322 + $0x158] sm:$0xff] %v5889
        %5944 = vst [vmem:[%s322 + $0x160] sm:$0xff] %v5890
        %5945 = vst [vmem:[%s322 + $0x168] sm:$0xff] %v5891
        %5946 = vst [vmem:[%s322 + $0x170] sm:$0xff] %v5892
        %5947 = vst [vmem:[%s322 + $0x178] sm:$0xff] %v5893
        %5948 = vst [vmem:[%s322 + $0x180] sm:$0xff] %v5894
        %5949 = vst [vmem:[%s322 + $0x188] sm:$0xff] %v5895
        %5950 = vst [vmem:[%s322 + $0x190] sm:$0xff] %v5896
        %5951 = vst [vmem:[%s322 + $0x198] sm:$0xff] %v5897
        %5952 = vst [vmem:[%s322 + $0x1a0] sm:$0xff] %v5898
        %5953 = vst [vmem:[%s322 + $0x1a8] sm:$0xff] %v5899
        %s5954 = sand.u32 %s188, 1
        %s5955 = scalar_lea.sflag [#allocation4], %s5954
        %s5956 = sand.u32 %s188, 1
        %s5957 = smul.addr %s5956, 432
        %s5958 = scalar_lea.vmem [#allocation3], %s5957
        // Predicated region
        $region41: #{tpu_custom_call.1} parent=39 // pred_check
          %p5959 = pneg %p198
        $region42: #{tpu_custom_call.1} parent=39 // pred_check_branch
          %5961 = sbr.rel (%p5959) target = $region44
        $region43: #{tpu_custom_call.1} parent=39 // pred_region
          %s5962 = smul.u32 54, %s25
          %5964 = vsyncadd %s5955, 0
          %s5965 = sadd.s32 %s26, %s5962
          %s5966 = smul.addr %s24, 54
          %s5967 = sadd.s32 %s5965, %s5966
          %s5968 = smul.addr %s5967, 8
          %s5969 = scalar_lea.hbm %s5, %s5968
          %s5970 = sshll.u32 %s5958, 4
          %s5971 = int_to_ptr.vmem [resolvable:$true] %s5970
          %s5972 = sshll.u32 %s5969, 4
          %s5973 = int_to_ptr.hbm [resolvable:$true] %s5972
          %5978 = dma.vmem_to_hbm [thread:$0]  %s5971, 6912, %s5973, %s5955, 128, 128, 8
        $region44: #{tpu_custom_call.1} parent=39 // pred_fallthru
          _
      $region40: #{tpu_custom_call.1} parent=5 // pred_fallthru
        _
      %p5979 = scmp.le.s32.totalorder 2, %s14
      // Predicated region
      $region45: #{tpu_custom_call.1} parent=5 // pred_check
        %p5980 = pneg %p5979
      $region46: #{tpu_custom_call.1} parent=5 // pred_check_branch
        %5982 = sbr.rel (%p5980) target = $region48
      $region47: #{tpu_custom_call.1} parent=5 // pred_region
        %s5983 = ssub.s32 %s14, 2
        // Predicated region
        $region49: #{tpu_custom_call.1} parent=47 // pred_check
          %p5984 = pneg %p204
        $region50: #{tpu_custom_call.1} parent=47 // pred_check_branch
          %5986 = sbr.rel (%p5984) target = $region52
        $region51: #{tpu_custom_call.1} parent=47 // pred_region
          %s5987 = sand.u32 %s189, 1
          %s5988 = scalar_lea.sflag [#allocation4], %s5987
          %s5989 = sand.u32 %s189, 1
          %s5990 = smul.addr %s5989, 432
          %s5991 = scalar_lea.vmem [#allocation3], %s5990
          %5993 = dma.done %s5988, 6912
        $region52: #{tpu_custom_call.1} parent=47 // pred_fallthru
          _
      $region48: #{tpu_custom_call.1} parent=5 // pred_fallthru
        _
    $region6: #{tpu_custom_call.1} parent=1 // loop_footer
      %s18 = sadd.s32 1, %s14
    $region7: #{tpu_custom_call.1} parent=1 // loop_footer_branch
      %13 = sbr.rel target = $region3
    $region8: #{tpu_custom_call.1} parent=1 // loop_exit
      _
    %5994 = vsyncpa [#allocation4], 1
    %s5995 = scalar_lea.sflag [#allocation4], 1
    %5996 = vsyncpa %s5995, 1

</llo_original>
